<compile_context>
chip_gen: v6e
topology: v6e:2x2x1
jax: 0.10.0
libtpu: 0.0.40
codegen_flags: <defaults>
</compile_context>

<pallas_src>
import functools

import jax
import jax.numpy as jnp
from jax.experimental import pallas as pl
from jax.experimental.pallas import tpu as pltpu


def _round_up(x, m):
    return ((x + m - 1) // m) * m


def _vmem_capacity_bytes():
    """Per-core VMEM; falls back to the smallest generation (v7x, 64 MiB)."""
    try:
        return int(pltpu.get_tpu_info().vmem_capacity_bytes)
    except Exception:
        return 64 << 20


def _const_block_spec(shape):
    """BlockSpec for a grid-invariant input; single-buffered when supported."""
    index_map = lambda t: (0,) * len(shape)
    if hasattr(pl, "Buffered"):
        for make in (lambda: pl.Buffered(buffer_count=1),
                     lambda: pl.Buffered(1)):
            try:
                return pl.BlockSpec(shape, index_map, pipeline_mode=make())
            except (TypeError, ValueError):
                continue
    return pl.BlockSpec(shape, index_map)


def _lstm_layer_kernel(x_ref, wih_ref, whh_ref, b_ref, h0_ref, c0_ref,
                       out_ref, hn_ref, cn_ref,
                       h_scr, c_scr, xp_scr,
                       *, tt, batch, seq_len, unroll):
    """One LSTM layer, one chunk of `tt` timesteps per grid iteration.

    x_ref   : (tt*batch, INp) bf16  flattened time-major input chunk
    wih_ref : (INp, 4*Hp)     bf16  fused gate-major input weights (i|f|g|o)
    whh_ref : (Hp, 4*Hp)      bf16  fused gate-major recurrent weights
    b_ref   : (1, 4*Hp)       f32   bias_ih + bias_hh (gate-major, padded)
    h0_ref/c0_ref : (batch, Hp) f32 initial state
    out_ref : (tt*batch, Hp)
    hn_ref/cn_ref : (batch, Hp)     resident blocks, written on last step
    h_scr/c_scr   : (batch, Hp) f32 carried state across time chunks
    xp_scr  : (tt*batch, 4*Hp) f32  per-chunk input projection
    """
    tc = pl.program_id(0)

    @pl.when(tc == 0)
    def _():
        h_scr[...] = h0_ref[...].astype(jnp.float32)
        c_scr[...] = c0_ref[...].astype(jnp.float32)

    # Whole-chunk input projection: one lane-dense bf16 MXU matmul with f32
    # accumulation; bias folded in once (not per step / per gate).
    xp_scr[...] = (
        jnp.dot(x_ref[...], wih_ref[...], preferred_element_type=jnp.float32)
        + b_ref[...].astype(jnp.float32))

    whh = whh_ref[...]                     # bf16, hoisted; reused every step
    hp = whh.shape[0]
    needs_mask = (seq_len % tt) != 0       # static: only last chunk can pad

    def _sigmoid(v):
        # One EUP tanh instead of exp + divide; the gate phase is EUP-bound.
        return 0.5 * jnp.tanh(0.5 * v) + 0.5

    def step(i, carry):
        h, c = carry
        base = pl.multiple_of(i * batch, batch)
        # Single small lane-dense bf16 matmul on the recurrent critical path.
        gates = (xp_scr[pl.ds(base, batch), :]
                 + jnp.dot(h.astype(whh.dtype), whh,
                           preferred_element_type=jnp.float32))
        i_g = _sigmoid(gates[:, 0 * hp:1 * hp])
        f_g = _sigmoid(gates[:, 1 * hp:2 * hp])
        g_g = jnp.tanh(gates[:, 2 * hp:3 * hp])
        o_g = _sigmoid(gates[:, 3 * hp:4 * hp])
        c_new = f_g * c + i_g * g_g
        h_new = o_g * jnp.tanh(c_new)
        if needs_mask:
            valid = (tc * tt + i) < seq_len
            h_new = jnp.where(valid, h_new, h)
            c_new = jnp.where(valid, c_new, c)
        out_ref[pl.ds(base, batch), :] = h_new.astype(out_ref.dtype)
        return h_new, c_new

    h_fin, c_fin = jax.lax.fori_loop(
        0, tt, step, (h_scr[...], c_scr[...]), unroll=unroll)

    h_scr[...] = h_fin
    c_scr[...] = c_fin

    @pl.when(tc == pl.num_programs(0) - 1)
    def _():
        hn_ref[...] = h_fin.astype(hn_ref.dtype)
        cn_ref[...] = c_fin.astype(cn_ref.dtype)


def _choose_time_chunk(T, B, INp, Hp, in_itemsize, out_itemsize):
    """Largest TT whose working set fits ~60% of this generation's VMEM."""
    budget = int(_vmem_capacity_bytes() * 0.6)
    fixed = ((INp + Hp) * 4 * Hp * 2          # bf16 weights (single-buffered)
             + 4 * Hp * 4                     # bias (f32)
             + 4 * B * Hp * 4                 # h0/c0 inputs (conservative x2)
             + 4 * B * Hp * 4                 # hn/cn outputs (x2)
             + 2 * B * Hp * 4)                # h/c f32 scratch
    per_tt = (2 * B * INp * in_itemsize       # x chunk, double-buffered
              + 2 * B * Hp * out_itemsize     # out chunk, double-buffered
              + B * 4 * Hp * 4)               # xp scratch (f32)
    tt = (budget - fixed) // per_tt
    return int(max(1, min(tt, T, 64)))


def _run_lstm_layer(x2, w_ih, w_hh, bias, h0, c0, *, seq_len, tt, out_dtype):
    """x2: (T_pad*B, INp) time-major flattened bf16. Returns (out, h_n, c_n)."""
    TB, INp = x2.shape
    B, Hp = h0.shape
    t_pad = TB // B

    footprint = (
        2 * tt * B * INp * x2.dtype.itemsize
        + 2 * tt * B * Hp * jnp.dtype(out_dtype).itemsize
        + (INp + Hp) * 4 * Hp * w_ih.dtype.itemsize + 4 * Hp * 4
        + 8 * B * Hp * 4
        + (2 * B * Hp + tt * B * 4 * Hp) * 4)
    cp_kwargs = dict(dimension_semantics=("arbitrary",))
    if footprint > (12 << 20):
        # Never request more scoped VMEM than ~90% of physical (v7x: 64 MiB).
        cp_kwargs["vmem_limit_bytes"] = min(
            int(footprint * 1.4) + (4 << 20),
            int(_vmem_capacity_bytes() * 0.9))

    kernel = functools.partial(
        _lstm_layer_kernel, tt=tt, batch=B, seq_len=seq_len,
        unroll=min(tt, 8))

    grid_spec = pltpu.PrefetchScalarGridSpec(
        num_scalar_prefetch=0,
        grid=(t_pad // tt,),
        in_specs=[
            pl.BlockSpec((tt * B, INp), lambda t: (t, 0)),
            _const_block_spec((INp, 4 * Hp)),
            _const_block_spec((Hp, 4 * Hp)),
            _const_block_spec((1, 4 * Hp)),
            _const_block_spec((B, Hp)),
            _const_block_spec((B, Hp)),
        ],
        out_specs=[
            pl.BlockSpec((tt * B, Hp), lambda t: (t, 0)),
            pl.BlockSpec((B, Hp), lambda t: (0, 0)),
            pl.BlockSpec((B, Hp), lambda t: (0, 0)),
        ],
        scratch_shapes=[
            pltpu.VMEM((B, Hp), jnp.float32),
            pltpu.VMEM((B, Hp), jnp.float32),
            pltpu.VMEM((tt * B, 4 * Hp), jnp.float32),
        ],
    )

    out, h_n, c_n = pl.pallas_call(
        kernel,
        grid_spec=grid_spec,
        out_shape=(
            jax.ShapeDtypeStruct((t_pad * B, Hp), out_dtype),
            jax.ShapeDtypeStruct((B, Hp), jnp.float32),
            jax.ShapeDtypeStruct((B, Hp), jnp.float32),
        ),
        compiler_params=pltpu.CompilerParams(**cp_kwargs),
    )(x2, w_ih, w_hh, bias, h0, c0)
    return out, h_n, c_n


def init_uni_lstm_params(key, xt_size, ht_size, num_layers):
    """Deterministic init matching PyTorch nn.LSTM parameter shapes/gate order."""
    params = []
    bound = 1.0 / jnp.sqrt(jnp.float32(ht_size))
    for layer in range(num_layers):
        in_size = xt_size if layer == 0 else ht_size
        key, k1, k2, k3, k4 = jax.random.split(key, 5)
        w_ih = jax.random.uniform(k1, (4 * ht_size, in_size), jnp.float32,
                                  -bound, bound)
        w_hh = jax.random.uniform(k2, (4 * ht_size, ht_size), jnp.float32,
                                  -bound, bound)
        b_ih = jax.random.uniform(k3, (4 * ht_size,), jnp.float32, -bound, bound)
        b_hh = jax.random.uniform(k4, (4 * ht_size,), jnp.float32, -bound, bound)
        params.append((w_ih, w_hh, b_ih, b_hh))
    return params


def prepare_uni_lstm_params(params):
    """One-time conversion from PyTorch layout to the fused kernel layout.

    Per layer returns:
        w_ih: (INp, 4*Hp) bf16, w_hh: (Hp, 4*Hp) bf16, bias: (1, 4*Hp) f32
    where Hp = round_up(H, 128), INp = round_up(in_size, 128); gate order
    i|f|g|o, each gate's column block zero-padded to Hp (lane-aligned slices);
    padded rows/columns are zero so padded state stays exactly zero.
    """
    prepared = []
    for w_ih, w_hh, b_ih, b_hh in params:
        four_h, in_size = w_ih.shape
        H = four_h // 4
        Hp = _round_up(H, 128)
        INp = _round_up(in_size, 128)
        w_ih_p = jnp.zeros((INp, 4 * Hp), jnp.float32)
        w_hh_p = jnp.zeros((Hp, 4 * Hp), jnp.float32)
        b_p = jnp.zeros((1, 4 * Hp), jnp.float32)
        b_sum = b_ih + b_hh
        for g in range(4):
            w_ih_p = w_ih_p.at[:in_size, g * Hp:g * Hp + H].set(
                w_ih[g * H:(g + 1) * H, :].T)
            w_hh_p = w_hh_p.at[:H, g * Hp:g * Hp + H].set(
                w_hh[g * H:(g + 1) * H, :].T)
            b_p = b_p.at[0, g * Hp:g * Hp + H].set(b_sum[g * H:(g + 1) * H])
        prepared.append((w_ih_p.astype(jnp.bfloat16),
                         w_hh_p.astype(jnp.bfloat16),
                         b_p))
    return prepared


@jax.jit
def uni_lstm_forward(x, h0, c0, *flat_params):
    """Pallas-backed equivalent of UniLSTM.forward.

    x  : (T, B, xt_size)   time-major (nn.LSTM with batch_first=False)
    h0 : (num_layers, B, ht_size)
    c0 : (num_layers, B, ht_size)
    flat_params: per layer (w_ih (INp,4Hp) bf16, w_hh (Hp,4Hp) bf16,
                 bias (1,4Hp) f32), flattened.
    returns (output (T,B,H), h_n (L,B,H), c_n (L,B,H))
    """
    T, B, IN = x.shape
    L, _, H = h0.shape
    assert len(flat_params) == 3 * L

    INp0 = flat_params[0].shape[0]     # layer-0 padded input features
    Hp = flat_params[1].shape[0]       # padded hidden size
    B_pad = _round_up(B, 8)

    act_dtype = jnp.bfloat16
    tt = _choose_time_chunk(T, B_pad, max(INp0, Hp), Hp,
                            jnp.dtype(act_dtype).itemsize,
                            jnp.dtype(act_dtype).itemsize)
    T_pad = _round_up(T, tt)

    # Pad batch -> 8 sublanes, features -> 128 lanes, time -> multiple of tt;
    # activations in bf16 (MXU operands, halved HBM traffic between layers).
    x_p = jnp.zeros((T_pad, B_pad, INp0), act_dtype)
    x_p = x_p.at[:T, :B, :IN].set(x.astype(act_dtype))
    h0_p = jnp.zeros((L, B_pad, Hp), jnp.float32)
    h0_p = h0_p.at[:, :B, :H].set(h0.astype(jnp.float32))
    c0_p = jnp.zeros((L, B_pad, Hp), jnp.float32)
    c0_p = c0_p.at[:, :B, :H].set(c0.astype(jnp.float32))

    layer_in = x_p.reshape(T_pad * B_pad, INp0)
    h_fin, c_fin = [], []
    for layer in range(L):
        w_ih, w_hh, bias = flat_params[3 * layer: 3 * layer + 3]
        last = layer == L - 1
        out, h_n, c_n = _run_lstm_layer(
            layer_in, w_ih, w_hh, bias, h0_p[layer], c0_p[layer],
            seq_len=T, tt=tt, out_dtype=x.dtype if last else act_dtype)
        h_fin.append(h_n)
        c_fin.append(c_n)
        layer_in = out

    output = layer_in.reshape(T_pad, B_pad, Hp)[:T, :B, :H].astype(x.dtype)
    h_n = jnp.stack(h_fin, 0)[:, :B, :H].astype(x.dtype)
    c_n = jnp.stack(c_fin, 0)[:, :B, :H].astype(x.dtype)
    return output, h_n, c_n


def _reference_lstm(x, h0, c0, params):
    """Pure-JAX f32 reference (PyTorch nn.LSTM semantics / weight layout)."""
    T, B, _ = x.shape
    L, _, H = h0.shape
    layer_in = x
    h_fin, c_fin = [], []
    for layer in range(L):
        w_ih, w_hh, b_ih, b_hh = params[layer]
        h = h0[layer]
        c = c0[layer]
        outs = []
        for t in range(T):
            gates = layer_in[t] @ w_ih.T + b_ih + h @ w_hh.T + b_hh
            i, f, g, o = jnp.split(gates, 4, axis=-1)
            i = jax.nn.sigmoid(i)
            f = jax.nn.sigmoid(f)
            g = jnp.tanh(g)
            o = jax.nn.sigmoid(o)
            c = f * c + i * g
            h = o * jnp.tanh(c)
            outs.append(h)
        layer_in = jnp.stack(outs, 0)
        h_fin.append(h)
        c_fin.append(c)
    return layer_in, jnp.stack(h_fin, 0), jnp.stack(c_fin, 0)


if __name__ == "__main__":
    xt_size, ht_size, num_layers = 32, 32, 2
    T, B = 8, 4

    key = jax.random.PRNGKey(0)
    k_p, k_x, k_h, k_c = jax.random.split(key, 4)

    params = init_uni_lstm_params(k_p, xt_size, ht_size, num_layers)
    prepared = prepare_uni_lstm_params(params)
    flat_params = [t for p in prepared for t in p]

    a_batch_of_seqs = jax.random.normal(k_x, (T, B, xt_size), jnp.float32)
    initial_outer_state = jax.random.normal(k_h, (num_layers, B, ht_size),
                                            jnp.float32)  # h0
    initial_inner_state = jax.random.normal(k_c, (num_layers, B, ht_size),
                                            jnp.float32)  # c0

    output, final_h, final_c = uni_lstm_forward(
        a_batch_of_seqs, initial_outer_state, initial_inner_state, *flat_params)
    jax.block_until_ready((output, final_h, final_c))

    ref_out, ref_h, ref_c = _reference_lstm(
        a_batch_of_seqs, initial_outer_state, initial_inner_state, params)
    # bf16 MXU operands -> relaxed tolerances vs. the f32 reference.
    assert jnp.allclose(output, ref_out, atol=5e-2, rtol=5e-2)
    assert jnp.allclose(final_h, ref_h, atol=5e-2, rtol=5e-2)
    assert jnp.allclose(final_c, ref_c, atol=5e-2, rtol=5e-2)

    print("KERNEL_OK")
</pallas_src>

<mosaic_0001>
module attributes {stable_mosaic.version = 11 : i64} {
  func.func @_lstm_layer_kernel(%arg0: i32, %arg1: memref<64x128xbf16, #tpu.memory_space<vmem>>, %arg2: memref<128x512xbf16, #tpu.memory_space<vmem>>, %arg3: memref<128x512xbf16, #tpu.memory_space<vmem>>, %arg4: memref<1x512xf32, #tpu.memory_space<vmem>>, %arg5: memref<8x128xf32, #tpu.memory_space<vmem>>, %arg6: memref<8x128xf32, #tpu.memory_space<vmem>>, %arg7: memref<64x128xbf16, #tpu.memory_space<vmem>>, %arg8: memref<8x128xf32, #tpu.memory_space<vmem>>, %arg9: memref<8x128xf32, #tpu.memory_space<vmem>>, %arg10: memref<8x128xf32, #tpu.memory_space<vmem>>, %arg11: memref<8x128xf32, #tpu.memory_space<vmem>>, %arg12: memref<64x512xf32, #tpu.memory_space<vmem>>) attributes {dimension_semantics = [#tpu.dimension_semantics<arbitrary>], iteration_bounds = array<i64: 1>, scalar_prefetch = 0 : i64, scratch_operands = 3 : i64, tpu.core_type = #tpu.core_type<tc>, window_params = [{transform_indices = @transform_0, window_bounds = array<i64: 64, 128>}, {pipeline_mode = #tpu.pipeline_mode<synchronous>, transform_indices = @transform_1, window_bounds = array<i64: 128, 512>}, {pipeline_mode = #tpu.pipeline_mode<synchronous>, transform_indices = @transform_2, window_bounds = array<i64: 128, 512>}, {pipeline_mode = #tpu.pipeline_mode<synchronous>, transform_indices = @transform_3, window_bounds = array<i64: 1, 512>}, {pipeline_mode = #tpu.pipeline_mode<synchronous>, transform_indices = @transform_4, window_bounds = array<i64: 8, 128>}, {pipeline_mode = #tpu.pipeline_mode<synchronous>, transform_indices = @transform_5, window_bounds = array<i64: 8, 128>}, {transform_indices = @transform_6, window_bounds = array<i64: 64, 128>}, {pipeline_mode = #tpu.pipeline_mode<synchronous>, transform_indices = @transform_7, window_bounds = array<i64: 8, 128>}, {pipeline_mode = #tpu.pipeline_mode<synchronous>, transform_indices = @transform_8, window_bounds = array<i64: 8, 128>}]} {
    %c0_i32 = arith.constant 0 : i32
    %0 = arith.cmpi eq, %arg0, %c0_i32 : i32
    %1 = arith.extui %0 : i1 to i32
    %c0_i32_0 = arith.constant 0 : i32
    %2 = arith.cmpi ne, %1, %c0_i32_0 : i32
    scf.if %2 {
      %c0_125 = arith.constant 0 : index
      %c0_126 = arith.constant 0 : index
      %346 = vector.load %arg5[%c0_125, %c0_126] : memref<8x128xf32, #tpu.memory_space<vmem>>, vector<8x128xf32>
      %c0_127 = arith.constant 0 : index
      %c0_128 = arith.constant 0 : index
      %347 = vector.load %arg10[%c0_127, %c0_128] : memref<8x128xf32, #tpu.memory_space<vmem>>, vector<8x128xf32>
      tpu.vector_store %arg10[%c0_127, %c0_128], %346 {strides = array<i32>} : memref<8x128xf32, #tpu.memory_space<vmem>>, vector<8x128xf32>,
      %c0_129 = arith.constant 0 : index
      %c0_130 = arith.constant 0 : index
      %348 = vector.load %arg6[%c0_129, %c0_130] : memref<8x128xf32, #tpu.memory_space<vmem>>, vector<8x128xf32>
      %c0_131 = arith.constant 0 : index
      %c0_132 = arith.constant 0 : index
      %349 = vector.load %arg11[%c0_131, %c0_132] : memref<8x128xf32, #tpu.memory_space<vmem>>, vector<8x128xf32>
      tpu.vector_store %arg11[%c0_131, %c0_132], %348 {strides = array<i32>} : memref<8x128xf32, #tpu.memory_space<vmem>>, vector<8x128xf32>,
    } else {
    }
    %c0 = arith.constant 0 : index
    %c0_1 = arith.constant 0 : index
    %3 = vector.load %arg1[%c0, %c0_1] : memref<64x128xbf16, #tpu.memory_space<vmem>>, vector<64x128xbf16>
    %c0_2 = arith.constant 0 : index
    %c0_3 = arith.constant 0 : index
    %4 = vector.load %arg2[%c0_2, %c0_3] : memref<128x512xbf16, #tpu.memory_space<vmem>>, vector<128x512xbf16>
    %cst = arith.constant dense<0.000000e+00> : vector<64x512xf32>
    %5 = tpu.matmul %3, %4, %cst {dimension_numbers = #tpu.dot_dimension_numbers<[1], [0], [0], [1], [0, 0, 1, 1], [], []>} : vector<64x128xbf16>, vector<128x512xbf16>, vector<64x512xf32> -> vector<64x512xf32>
    %c0_4 = arith.constant 0 : index
    %c0_5 = arith.constant 0 : index
    %6 = vector.load %arg4[%c0_4, %c0_5] : memref<1x512xf32, #tpu.memory_space<vmem>>, vector<1x512xf32>
    %7 = vector.broadcast %6 : vector<1x512xf32> to vector<64x512xf32>
    %8 = arith.addf %5, %7 : vector<64x512xf32>
    %c0_6 = arith.constant 0 : index
    %c0_7 = arith.constant 0 : index
    %9 = vector.load %arg12[%c0_6, %c0_7] : memref<64x512xf32, #tpu.memory_space<vmem>>, vector<64x512xf32>
    tpu.vector_store %arg12[%c0_6, %c0_7], %8 {strides = array<i32>} : memref<64x512xf32, #tpu.memory_space<vmem>>, vector<64x512xf32>,
    %c0_8 = arith.constant 0 : index
    %c0_9 = arith.constant 0 : index
    %10 = vector.load %arg3[%c0_8, %c0_9] : memref<128x512xbf16, #tpu.memory_space<vmem>>, vector<128x512xbf16>
    %c0_10 = arith.constant 0 : index
    %c0_11 = arith.constant 0 : index
    %11 = vector.load %arg10[%c0_10, %c0_11] : memref<8x128xf32, #tpu.memory_space<vmem>>, vector<8x128xf32>
    %c0_12 = arith.constant 0 : index
    %c0_13 = arith.constant 0 : index
    %12 = vector.load %arg11[%c0_12, %c0_13] : memref<8x128xf32, #tpu.memory_space<vmem>>, vector<8x128xf32>
    %c0_i32_14 = arith.constant 0 : i32
    %c8_i32 = arith.constant 8 : i32
    %13 = arith.muli %c0_i32_14, %c8_i32 : i32
    %14 = tpu.assume_multiple %13, 8 : i32
    %15 = arith.index_cast %14 : i32 to index
    %c0_15 = arith.constant 0 : index
    %16 = vector.load %arg12[%15, %c0_15] : memref<64x512xf32, #tpu.memory_space<vmem>>, vector<8x512xf32>
    %17 = arith.truncf %11 : vector<8x128xf32> to vector<8x128xbf16>
    %cst_16 = arith.constant dense<0.000000e+00> : vector<8x512xf32>
    %18 = tpu.matmul %17, %10, %cst_16 {dimension_numbers = #tpu.dot_dimension_numbers<[1], [0], [0], [1], [0, 0, 1, 1], [], []>} : vector<8x128xbf16>, vector<128x512xbf16>, vector<8x512xf32> -> vector<8x512xf32>
    %19 = arith.addf %16, %18 : vector<8x512xf32>
    %20 = vector.extract_strided_slice %19 {offsets = [0, 0], sizes = [8, 128], strides = [1, 1]} : vector<8x512xf32> to vector<8x128xf32>
    %cst_17 = arith.constant 5.000000e-01 : f32
    %21 = vector.broadcast %cst_17 : f32 to vector<8x128xf32>
    %22 = arith.mulf %21, %20 : vector<8x128xf32>
    %23 = math.tanh %22 : vector<8x128xf32>
    %cst_18 = arith.constant 5.000000e-01 : f32
    %24 = vector.broadcast %cst_18 : f32 to vector<8x128xf32>
    %25 = arith.mulf %24, %23 : vector<8x128xf32>
    %cst_19 = arith.constant 5.000000e-01 : f32
    %26 = vector.broadcast %cst_19 : f32 to vector<8x128xf32>
    %27 = arith.addf %25, %26 : vector<8x128xf32>
    %28 = vector.extract_strided_slice %19 {offsets = [0, 128], sizes = [8, 128], strides = [1, 1]} : vector<8x512xf32> to vector<8x128xf32>
    %cst_20 = arith.constant 5.000000e-01 : f32
    %29 = vector.broadcast %cst_20 : f32 to vector<8x128xf32>
    %30 = arith.mulf %29, %28 : vector<8x128xf32>
    %31 = math.tanh %30 : vector<8x128xf32>
    %cst_21 = arith.constant 5.000000e-01 : f32
    %32 = vector.broadcast %cst_21 : f32 to vector<8x128xf32>
    %33 = arith.mulf %32, %31 : vector<8x128xf32>
    %cst_22 = arith.constant 5.000000e-01 : f32
    %34 = vector.broadcast %cst_22 : f32 to vector<8x128xf32>
    %35 = arith.addf %33, %34 : vector<8x128xf32>
    %36 = vector.extract_strided_slice %19 {offsets = [0, 256], sizes = [8, 128], strides = [1, 1]} : vector<8x512xf32> to vector<8x128xf32>
    %37 = math.tanh %36 : vector<8x128xf32>
    %38 = vector.extract_strided_slice %19 {offsets = [0, 384], sizes = [8, 128], strides = [1, 1]} : vector<8x512xf32> to vector<8x128xf32>
    %cst_23 = arith.constant 5.000000e-01 : f32
    %39 = vector.broadcast %cst_23 : f32 to vector<8x128xf32>
    %40 = arith.mulf %39, %38 : vector<8x128xf32>
    %41 = math.tanh %40 : vector<8x128xf32>
    %cst_24 = arith.constant 5.000000e-01 : f32
    %42 = vector.broadcast %cst_24 : f32 to vector<8x128xf32>
    %43 = arith.mulf %42, %41 : vector<8x128xf32>
    %cst_25 = arith.constant 5.000000e-01 : f32
    %44 = vector.broadcast %cst_25 : f32 to vector<8x128xf32>
    %45 = arith.addf %43, %44 : vector<8x128xf32>
    %46 = arith.mulf %35, %12 : vector<8x128xf32>
    %47 = arith.mulf %27, %37 : vector<8x128xf32>
    %48 = arith.addf %46, %47 : vector<8x128xf32>
    %49 = math.tanh %48 : vector<8x128xf32>
    %50 = arith.mulf %45, %49 : vector<8x128xf32>
    %51 = arith.truncf %50 : vector<8x128xf32> to vector<8x128xbf16>
    %52 = arith.index_cast %14 : i32 to index
    %c0_26 = arith.constant 0 : index
    %53 = vector.load %arg7[%52, %c0_26] : memref<64x128xbf16, #tpu.memory_space<vmem>>, vector<8x128xbf16>
    tpu.vector_store %arg7[%52, %c0_26], %51 {strides = array<i32>} : memref<64x128xbf16, #tpu.memory_space<vmem>>, vector<8x128xbf16>,
    %c1_i32 = arith.constant 1 : i32
    %c8_i32_27 = arith.constant 8 : i32
    %54 = arith.muli %c1_i32, %c8_i32_27 : i32
    %55 = tpu.assume_multiple %54, 8 : i32
    %56 = arith.index_cast %55 : i32 to index
    %c0_28 = arith.constant 0 : index
    %57 = vector.load %arg12[%56, %c0_28] : memref<64x512xf32, #tpu.memory_space<vmem>>, vector<8x512xf32>
    %58 = arith.truncf %50 : vector<8x128xf32> to vector<8x128xbf16>
    %cst_29 = arith.constant dense<0.000000e+00> : vector<8x512xf32>
    %59 = tpu.matmul %58, %10, %cst_29 {dimension_numbers = #tpu.dot_dimension_numbers<[1], [0], [0], [1], [0, 0, 1, 1], [], []>} : vector<8x128xbf16>, vector<128x512xbf16>, vector<8x512xf32> -> vector<8x512xf32>
    %60 = arith.addf %57, %59 : vector<8x512xf32>
    %61 = vector.extract_strided_slice %60 {offsets = [0, 0], sizes = [8, 128], strides = [1, 1]} : vector<8x512xf32> to vector<8x128xf32>
    %cst_30 = arith.constant 5.000000e-01 : f32
    %62 = vector.broadcast %cst_30 : f32 to vector<8x128xf32>
    %63 = arith.mulf %62, %61 : vector<8x128xf32>
    %64 = math.tanh %63 : vector<8x128xf32>
    %cst_31 = arith.constant 5.000000e-01 : f32
    %65 = vector.broadcast %cst_31 : f32 to vector<8x128xf32>
    %66 = arith.mulf %65, %64 : vector<8x128xf32>
    %cst_32 = arith.constant 5.000000e-01 : f32
    %67 = vector.broadcast %cst_32 : f32 to vector<8x128xf32>
    %68 = arith.addf %66, %67 : vector<8x128xf32>
    %69 = vector.extract_strided_slice %60 {offsets = [0, 128], sizes = [8, 128], strides = [1, 1]} : vector<8x512xf32> to vector<8x128xf32>
    %cst_33 = arith.constant 5.000000e-01 : f32
    %70 = vector.broadcast %cst_33 : f32 to vector<8x128xf32>
    %71 = arith.mulf %70, %69 : vector<8x128xf32>
    %72 = math.tanh %71 : vector<8x128xf32>
    %cst_34 = arith.constant 5.000000e-01 : f32
    %73 = vector.broadcast %cst_34 : f32 to vector<8x128xf32>
    %74 = arith.mulf %73, %72 : vector<8x128xf32>
    %cst_35 = arith.constant 5.000000e-01 : f32
    %75 = vector.broadcast %cst_35 : f32 to vector<8x128xf32>
    %76 = arith.addf %74, %75 : vector<8x128xf32>
    %77 = vector.extract_strided_slice %60 {offsets = [0, 256], sizes = [8, 128], strides = [1, 1]} : vector<8x512xf32> to vector<8x128xf32>
    %78 = math.tanh %77 : vector<8x128xf32>
    %79 = vector.extract_strided_slice %60 {offsets = [0, 384], sizes = [8, 128], strides = [1, 1]} : vector<8x512xf32> to vector<8x128xf32>
    %cst_36 = arith.constant 5.000000e-01 : f32
    %80 = vector.broadcast %cst_36 : f32 to vector<8x128xf32>
    %81 = arith.mulf %80, %79 : vector<8x128xf32>
    %82 = math.tanh %81 : vector<8x128xf32>
    %cst_37 = arith.constant 5.000000e-01 : f32
    %83 = vector.broadcast %cst_37 : f32 to vector<8x128xf32>
    %84 = arith.mulf %83, %82 : vector<8x128xf32>
    %cst_38 = arith.constant 5.000000e-01 : f32
    %85 = vector.broadcast %cst_38 : f32 to vector<8x128xf32>
    %86 = arith.addf %84, %85 : vector<8x128xf32>
    %87 = arith.mulf %76, %48 : vector<8x128xf32>
    %88 = arith.mulf %68, %78 : vector<8x128xf32>
    %89 = arith.addf %87, %88 : vector<8x128xf32>
    %90 = math.tanh %89 : vector<8x128xf32>
    %91 = arith.mulf %86, %90 : vector<8x128xf32>
    %92 = arith.truncf %91 : vector<8x128xf32> to vector<8x128xbf16>
    %93 = arith.index_cast %55 : i32 to index
    %c0_39 = arith.constant 0 : index
    %94 = vector.load %arg7[%93, %c0_39] : memref<64x128xbf16, #tpu.memory_space<vmem>>, vector<8x128xbf16>
    tpu.vector_store %arg7[%93, %c0_39], %92 {strides = array<i32>} : memref<64x128xbf16, #tpu.memory_space<vmem>>, vector<8x128xbf16>,
    %c2_i32 = arith.constant 2 : i32
    %c8_i32_40 = arith.constant 8 : i32
    %95 = arith.muli %c2_i32, %c8_i32_40 : i32
    %96 = tpu.assume_multiple %95, 8 : i32
    %97 = arith.index_cast %96 : i32 to index
    %c0_41 = arith.constant 0 : index
    %98 = vector.load %arg12[%97, %c0_41] : memref<64x512xf32, #tpu.memory_space<vmem>>, vector<8x512xf32>
    %99 = arith.truncf %91 : vector<8x128xf32> to vector<8x128xbf16>
    %cst_42 = arith.constant dense<0.000000e+00> : vector<8x512xf32>
    %100 = tpu.matmul %99, %10, %cst_42 {dimension_numbers = #tpu.dot_dimension_numbers<[1], [0], [0], [1], [0, 0, 1, 1], [], []>} : vector<8x128xbf16>, vector<128x512xbf16>, vector<8x512xf32> -> vector<8x512xf32>
    %101 = arith.addf %98, %100 : vector<8x512xf32>
    %102 = vector.extract_strided_slice %101 {offsets = [0, 0], sizes = [8, 128], strides = [1, 1]} : vector<8x512xf32> to vector<8x128xf32>
    %cst_43 = arith.constant 5.000000e-01 : f32
    %103 = vector.broadcast %cst_43 : f32 to vector<8x128xf32>
    %104 = arith.mulf %103, %102 : vector<8x128xf32>
    %105 = math.tanh %104 : vector<8x128xf32>
    %cst_44 = arith.constant 5.000000e-01 : f32
    %106 = vector.broadcast %cst_44 : f32 to vector<8x128xf32>
    %107 = arith.mulf %106, %105 : vector<8x128xf32>
    %cst_45 = arith.constant 5.000000e-01 : f32
    %108 = vector.broadcast %cst_45 : f32 to vector<8x128xf32>
    %109 = arith.addf %107, %108 : vector<8x128xf32>
    %110 = vector.extract_strided_slice %101 {offsets = [0, 128], sizes = [8, 128], strides = [1, 1]} : vector<8x512xf32> to vector<8x128xf32>
    %cst_46 = arith.constant 5.000000e-01 : f32
    %111 = vector.broadcast %cst_46 : f32 to vector<8x128xf32>
    %112 = arith.mulf %111, %110 : vector<8x128xf32>
    %113 = math.tanh %112 : vector<8x128xf32>
    %cst_47 = arith.constant 5.000000e-01 : f32
    %114 = vector.broadcast %cst_47 : f32 to vector<8x128xf32>
    %115 = arith.mulf %114, %113 : vector<8x128xf32>
    %cst_48 = arith.constant 5.000000e-01 : f32
    %116 = vector.broadcast %cst_48 : f32 to vector<8x128xf32>
    %117 = arith.addf %115, %116 : vector<8x128xf32>
    %118 = vector.extract_strided_slice %101 {offsets = [0, 256], sizes = [8, 128], strides = [1, 1]} : vector<8x512xf32> to vector<8x128xf32>
    %119 = math.tanh %118 : vector<8x128xf32>
    %120 = vector.extract_strided_slice %101 {offsets = [0, 384], sizes = [8, 128], strides = [1, 1]} : vector<8x512xf32> to vector<8x128xf32>
    %cst_49 = arith.constant 5.000000e-01 : f32
    %121 = vector.broadcast %cst_49 : f32 to vector<8x128xf32>
    %122 = arith.mulf %121, %120 : vector<8x128xf32>
    %123 = math.tanh %122 : vector<8x128xf32>
    %cst_50 = arith.constant 5.000000e-01 : f32
    %124 = vector.broadcast %cst_50 : f32 to vector<8x128xf32>
    %125 = arith.mulf %124, %123 : vector<8x128xf32>
    %cst_51 = arith.constant 5.000000e-01 : f32
    %126 = vector.broadcast %cst_51 : f32 to vector<8x128xf32>
    %127 = arith.addf %125, %126 : vector<8x128xf32>
    %128 = arith.mulf %117, %89 : vector<8x128xf32>
    %129 = arith.mulf %109, %119 : vector<8x128xf32>
    %130 = arith.addf %128, %129 : vector<8x128xf32>
    %131 = math.tanh %130 : vector<8x128xf32>
    %132 = arith.mulf %127, %131 : vector<8x128xf32>
    %133 = arith.truncf %132 : vector<8x128xf32> to vector<8x128xbf16>
    %134 = arith.index_cast %96 : i32 to index
    %c0_52 = arith.constant 0 : index
    %135 = vector.load %arg7[%134, %c0_52] : memref<64x128xbf16, #tpu.memory_space<vmem>>, vector<8x128xbf16>
    tpu.vector_store %arg7[%134, %c0_52], %133 {strides = array<i32>} : memref<64x128xbf16, #tpu.memory_space<vmem>>, vector<8x128xbf16>,
    %c3_i32 = arith.constant 3 : i32
    %c8_i32_53 = arith.constant 8 : i32
    %136 = arith.muli %c3_i32, %c8_i32_53 : i32
    %137 = tpu.assume_multiple %136, 8 : i32
    %138 = arith.index_cast %137 : i32 to index
    %c0_54 = arith.constant 0 : index
    %139 = vector.load %arg12[%138, %c0_54] : memref<64x512xf32, #tpu.memory_space<vmem>>, vector<8x512xf32>
    %140 = arith.truncf %132 : vector<8x128xf32> to vector<8x128xbf16>
    %cst_55 = arith.constant dense<0.000000e+00> : vector<8x512xf32>
    %141 = tpu.matmul %140, %10, %cst_55 {dimension_numbers = #tpu.dot_dimension_numbers<[1], [0], [0], [1], [0, 0, 1, 1], [], []>} : vector<8x128xbf16>, vector<128x512xbf16>, vector<8x512xf32> -> vector<8x512xf32>
    %142 = arith.addf %139, %141 : vector<8x512xf32>
    %143 = vector.extract_strided_slice %142 {offsets = [0, 0], sizes = [8, 128], strides = [1, 1]} : vector<8x512xf32> to vector<8x128xf32>
    %cst_56 = arith.constant 5.000000e-01 : f32
    %144 = vector.broadcast %cst_56 : f32 to vector<8x128xf32>
    %145 = arith.mulf %144, %143 : vector<8x128xf32>
    %146 = math.tanh %145 : vector<8x128xf32>
    %cst_57 = arith.constant 5.000000e-01 : f32
    %147 = vector.broadcast %cst_57 : f32 to vector<8x128xf32>
    %148 = arith.mulf %147, %146 : vector<8x128xf32>
    %cst_58 = arith.constant 5.000000e-01 : f32
    %149 = vector.broadcast %cst_58 : f32 to vector<8x128xf32>
    %150 = arith.addf %148, %149 : vector<8x128xf32>
    %151 = vector.extract_strided_slice %142 {offsets = [0, 128], sizes = [8, 128], strides = [1, 1]} : vector<8x512xf32> to vector<8x128xf32>
    %cst_59 = arith.constant 5.000000e-01 : f32
    %152 = vector.broadcast %cst_59 : f32 to vector<8x128xf32>
    %153 = arith.mulf %152, %151 : vector<8x128xf32>
    %154 = math.tanh %153 : vector<8x128xf32>
    %cst_60 = arith.constant 5.000000e-01 : f32
    %155 = vector.broadcast %cst_60 : f32 to vector<8x128xf32>
    %156 = arith.mulf %155, %154 : vector<8x128xf32>
    %cst_61 = arith.constant 5.000000e-01 : f32
    %157 = vector.broadcast %cst_61 : f32 to vector<8x128xf32>
    %158 = arith.addf %156, %157 : vector<8x128xf32>
    %159 = vector.extract_strided_slice %142 {offsets = [0, 256], sizes = [8, 128], strides = [1, 1]} : vector<8x512xf32> to vector<8x128xf32>
    %160 = math.tanh %159 : vector<8x128xf32>
    %161 = vector.extract_strided_slice %142 {offsets = [0, 384], sizes = [8, 128], strides = [1, 1]} : vector<8x512xf32> to vector<8x128xf32>
    %cst_62 = arith.constant 5.000000e-01 : f32
    %162 = vector.broadcast %cst_62 : f32 to vector<8x128xf32>
    %163 = arith.mulf %162, %161 : vector<8x128xf32>
    %164 = math.tanh %163 : vector<8x128xf32>
    %cst_63 = arith.constant 5.000000e-01 : f32
    %165 = vector.broadcast %cst_63 : f32 to vector<8x128xf32>
    %166 = arith.mulf %165, %164 : vector<8x128xf32>
    %cst_64 = arith.constant 5.000000e-01 : f32
    %167 = vector.broadcast %cst_64 : f32 to vector<8x128xf32>
    %168 = arith.addf %166, %167 : vector<8x128xf32>
    %169 = arith.mulf %158, %130 : vector<8x128xf32>
    %170 = arith.mulf %150, %160 : vector<8x128xf32>
    %171 = arith.addf %169, %170 : vector<8x128xf32>
    %172 = math.tanh %171 : vector<8x128xf32>
    %173 = arith.mulf %168, %172 : vector<8x128xf32>
    %174 = arith.truncf %173 : vector<8x128xf32> to vector<8x128xbf16>
    %175 = arith.index_cast %137 : i32 to index
    %c0_65 = arith.constant 0 : index
    %176 = vector.load %arg7[%175, %c0_65] : memref<64x128xbf16, #tpu.memory_space<vmem>>, vector<8x128xbf16>
    tpu.vector_store %arg7[%175, %c0_65], %174 {strides = array<i32>} : memref<64x128xbf16, #tpu.memory_space<vmem>>, vector<8x128xbf16>,
    %c4_i32 = arith.constant 4 : i32
    %c8_i32_66 = arith.constant 8 : i32
    %177 = arith.muli %c4_i32, %c8_i32_66 : i32
    %178 = tpu.assume_multiple %177, 8 : i32
    %179 = arith.index_cast %178 : i32 to index
    %c0_67 = arith.constant 0 : index
    %180 = vector.load %arg12[%179, %c0_67] : memref<64x512xf32, #tpu.memory_space<vmem>>, vector<8x512xf32>
    %181 = arith.truncf %173 : vector<8x128xf32> to vector<8x128xbf16>
    %cst_68 = arith.constant dense<0.000000e+00> : vector<8x512xf32>
    %182 = tpu.matmul %181, %10, %cst_68 {dimension_numbers = #tpu.dot_dimension_numbers<[1], [0], [0], [1], [0, 0, 1, 1], [], []>} : vector<8x128xbf16>, vector<128x512xbf16>, vector<8x512xf32> -> vector<8x512xf32>
    %183 = arith.addf %180, %182 : vector<8x512xf32>
    %184 = vector.extract_strided_slice %183 {offsets = [0, 0], sizes = [8, 128], strides = [1, 1]} : vector<8x512xf32> to vector<8x128xf32>
    %cst_69 = arith.constant 5.000000e-01 : f32
    %185 = vector.broadcast %cst_69 : f32 to vector<8x128xf32>
    %186 = arith.mulf %185, %184 : vector<8x128xf32>
    %187 = math.tanh %186 : vector<8x128xf32>
    %cst_70 = arith.constant 5.000000e-01 : f32
    %188 = vector.broadcast %cst_70 : f32 to vector<8x128xf32>
    %189 = arith.mulf %188, %187 : vector<8x128xf32>
    %cst_71 = arith.constant 5.000000e-01 : f32
    %190 = vector.broadcast %cst_71 : f32 to vector<8x128xf32>
    %191 = arith.addf %189, %190 : vector<8x128xf32>
    %192 = vector.extract_strided_slice %183 {offsets = [0, 128], sizes = [8, 128], strides = [1, 1]} : vector<8x512xf32> to vector<8x128xf32>
    %cst_72 = arith.constant 5.000000e-01 : f32
    %193 = vector.broadcast %cst_72 : f32 to vector<8x128xf32>
    %194 = arith.mulf %193, %192 : vector<8x128xf32>
    %195 = math.tanh %194 : vector<8x128xf32>
    %cst_73 = arith.constant 5.000000e-01 : f32
    %196 = vector.broadcast %cst_73 : f32 to vector<8x128xf32>
    %197 = arith.mulf %196, %195 : vector<8x128xf32>
    %cst_74 = arith.constant 5.000000e-01 : f32
    %198 = vector.broadcast %cst_74 : f32 to vector<8x128xf32>
    %199 = arith.addf %197, %198 : vector<8x128xf32>
    %200 = vector.extract_strided_slice %183 {offsets = [0, 256], sizes = [8, 128], strides = [1, 1]} : vector<8x512xf32> to vector<8x128xf32>
    %201 = math.tanh %200 : vector<8x128xf32>
    %202 = vector.extract_strided_slice %183 {offsets = [0, 384], sizes = [8, 128], strides = [1, 1]} : vector<8x512xf32> to vector<8x128xf32>
    %cst_75 = arith.constant 5.000000e-01 : f32
    %203 = vector.broadcast %cst_75 : f32 to vector<8x128xf32>
    %204 = arith.mulf %203, %202 : vector<8x128xf32>
    %205 = math.tanh %204 : vector<8x128xf32>
    %cst_76 = arith.constant 5.000000e-01 : f32
    %206 = vector.broadcast %cst_76 : f32 to vector<8x128xf32>
    %207 = arith.mulf %206, %205 : vector<8x128xf32>
    %cst_77 = arith.constant 5.000000e-01 : f32
    %208 = vector.broadcast %cst_77 : f32 to vector<8x128xf32>
    %209 = arith.addf %207, %208 : vector<8x128xf32>
    %210 = arith.mulf %199, %171 : vector<8x128xf32>
    %211 = arith.mulf %191, %201 : vector<8x128xf32>
    %212 = arith.addf %210, %211 : vector<8x128xf32>
    %213 = math.tanh %212 : vector<8x128xf32>
    %214 = arith.mulf %209, %213 : vector<8x128xf32>
    %215 = arith.truncf %214 : vector<8x128xf32> to vector<8x128xbf16>
    %216 = arith.index_cast %178 : i32 to index
    %c0_78 = arith.constant 0 : index
    %217 = vector.load %arg7[%216, %c0_78] : memref<64x128xbf16, #tpu.memory_space<vmem>>, vector<8x128xbf16>
    tpu.vector_store %arg7[%216, %c0_78], %215 {strides = array<i32>} : memref<64x128xbf16, #tpu.memory_space<vmem>>, vector<8x128xbf16>,
    %c5_i32 = arith.constant 5 : i32
    %c8_i32_79 = arith.constant 8 : i32
    %218 = arith.muli %c5_i32, %c8_i32_79 : i32
    %219 = tpu.assume_multiple %218, 8 : i32
    %220 = arith.index_cast %219 : i32 to index
    %c0_80 = arith.constant 0 : index
    %221 = vector.load %arg12[%220, %c0_80] : memref<64x512xf32, #tpu.memory_space<vmem>>, vector<8x512xf32>
    %222 = arith.truncf %214 : vector<8x128xf32> to vector<8x128xbf16>
    %cst_81 = arith.constant dense<0.000000e+00> : vector<8x512xf32>
    %223 = tpu.matmul %222, %10, %cst_81 {dimension_numbers = #tpu.dot_dimension_numbers<[1], [0], [0], [1], [0, 0, 1, 1], [], []>} : vector<8x128xbf16>, vector<128x512xbf16>, vector<8x512xf32> -> vector<8x512xf32>
    %224 = arith.addf %221, %223 : vector<8x512xf32>
    %225 = vector.extract_strided_slice %224 {offsets = [0, 0], sizes = [8, 128], strides = [1, 1]} : vector<8x512xf32> to vector<8x128xf32>
    %cst_82 = arith.constant 5.000000e-01 : f32
    %226 = vector.broadcast %cst_82 : f32 to vector<8x128xf32>
    %227 = arith.mulf %226, %225 : vector<8x128xf32>
    %228 = math.tanh %227 : vector<8x128xf32>
    %cst_83 = arith.constant 5.000000e-01 : f32
    %229 = vector.broadcast %cst_83 : f32 to vector<8x128xf32>
    %230 = arith.mulf %229, %228 : vector<8x128xf32>
    %cst_84 = arith.constant 5.000000e-01 : f32
    %231 = vector.broadcast %cst_84 : f32 to vector<8x128xf32>
    %232 = arith.addf %230, %231 : vector<8x128xf32>
    %233 = vector.extract_strided_slice %224 {offsets = [0, 128], sizes = [8, 128], strides = [1, 1]} : vector<8x512xf32> to vector<8x128xf32>
    %cst_85 = arith.constant 5.000000e-01 : f32
    %234 = vector.broadcast %cst_85 : f32 to vector<8x128xf32>
    %235 = arith.mulf %234, %233 : vector<8x128xf32>
    %236 = math.tanh %235 : vector<8x128xf32>
    %cst_86 = arith.constant 5.000000e-01 : f32
    %237 = vector.broadcast %cst_86 : f32 to vector<8x128xf32>
    %238 = arith.mulf %237, %236 : vector<8x128xf32>
    %cst_87 = arith.constant 5.000000e-01 : f32
    %239 = vector.broadcast %cst_87 : f32 to vector<8x128xf32>
    %240 = arith.addf %238, %239 : vector<8x128xf32>
    %241 = vector.extract_strided_slice %224 {offsets = [0, 256], sizes = [8, 128], strides = [1, 1]} : vector<8x512xf32> to vector<8x128xf32>
    %242 = math.tanh %241 : vector<8x128xf32>
    %243 = vector.extract_strided_slice %224 {offsets = [0, 384], sizes = [8, 128], strides = [1, 1]} : vector<8x512xf32> to vector<8x128xf32>
    %cst_88 = arith.constant 5.000000e-01 : f32
    %244 = vector.broadcast %cst_88 : f32 to vector<8x128xf32>
    %245 = arith.mulf %244, %243 : vector<8x128xf32>
    %246 = math.tanh %245 : vector<8x128xf32>
    %cst_89 = arith.constant 5.000000e-01 : f32
    %247 = vector.broadcast %cst_89 : f32 to vector<8x128xf32>
    %248 = arith.mulf %247, %246 : vector<8x128xf32>
    %cst_90 = arith.constant 5.000000e-01 : f32
    %249 = vector.broadcast %cst_90 : f32 to vector<8x128xf32>
    %250 = arith.addf %248, %249 : vector<8x128xf32>
    %251 = arith.mulf %240, %212 : vector<8x128xf32>
    %252 = arith.mulf %232, %242 : vector<8x128xf32>
    %253 = arith.addf %251, %252 : vector<8x128xf32>
    %254 = math.tanh %253 : vector<8x128xf32>
    %255 = arith.mulf %250, %254 : vector<8x128xf32>
    %256 = arith.truncf %255 : vector<8x128xf32> to vector<8x128xbf16>
    %257 = arith.index_cast %219 : i32 to index
    %c0_91 = arith.constant 0 : index
    %258 = vector.load %arg7[%257, %c0_91] : memref<64x128xbf16, #tpu.memory_space<vmem>>, vector<8x128xbf16>
    tpu.vector_store %arg7[%257, %c0_91], %256 {strides = array<i32>} : memref<64x128xbf16, #tpu.memory_space<vmem>>, vector<8x128xbf16>,
    %c6_i32 = arith.constant 6 : i32
    %c8_i32_92 = arith.constant 8 : i32
    %259 = arith.muli %c6_i32, %c8_i32_92 : i32
    %260 = tpu.assume_multiple %259, 8 : i32
    %261 = arith.index_cast %260 : i32 to index
    %c0_93 = arith.constant 0 : index
    %262 = vector.load %arg12[%261, %c0_93] : memref<64x512xf32, #tpu.memory_space<vmem>>, vector<8x512xf32>
    %263 = arith.truncf %255 : vector<8x128xf32> to vector<8x128xbf16>
    %cst_94 = arith.constant dense<0.000000e+00> : vector<8x512xf32>
    %264 = tpu.matmul %263, %10, %cst_94 {dimension_numbers = #tpu.dot_dimension_numbers<[1], [0], [0], [1], [0, 0, 1, 1], [], []>} : vector<8x128xbf16>, vector<128x512xbf16>, vector<8x512xf32> -> vector<8x512xf32>
    %265 = arith.addf %262, %264 : vector<8x512xf32>
    %266 = vector.extract_strided_slice %265 {offsets = [0, 0], sizes = [8, 128], strides = [1, 1]} : vector<8x512xf32> to vector<8x128xf32>
    %cst_95 = arith.constant 5.000000e-01 : f32
    %267 = vector.broadcast %cst_95 : f32 to vector<8x128xf32>
    %268 = arith.mulf %267, %266 : vector<8x128xf32>
    %269 = math.tanh %268 : vector<8x128xf32>
    %cst_96 = arith.constant 5.000000e-01 : f32
    %270 = vector.broadcast %cst_96 : f32 to vector<8x128xf32>
    %271 = arith.mulf %270, %269 : vector<8x128xf32>
    %cst_97 = arith.constant 5.000000e-01 : f32
    %272 = vector.broadcast %cst_97 : f32 to vector<8x128xf32>
    %273 = arith.addf %271, %272 : vector<8x128xf32>
    %274 = vector.extract_strided_slice %265 {offsets = [0, 128], sizes = [8, 128], strides = [1, 1]} : vector<8x512xf32> to vector<8x128xf32>
    %cst_98 = arith.constant 5.000000e-01 : f32
    %275 = vector.broadcast %cst_98 : f32 to vector<8x128xf32>
    %276 = arith.mulf %275, %274 : vector<8x128xf32>
    %277 = math.tanh %276 : vector<8x128xf32>
    %cst_99 = arith.constant 5.000000e-01 : f32
    %278 = vector.broadcast %cst_99 : f32 to vector<8x128xf32>
    %279 = arith.mulf %278, %277 : vector<8x128xf32>
    %cst_100 = arith.constant 5.000000e-01 : f32
    %280 = vector.broadcast %cst_100 : f32 to vector<8x128xf32>
    %281 = arith.addf %279, %280 : vector<8x128xf32>
    %282 = vector.extract_strided_slice %265 {offsets = [0, 256], sizes = [8, 128], strides = [1, 1]} : vector<8x512xf32> to vector<8x128xf32>
    %283 = math.tanh %282 : vector<8x128xf32>
    %284 = vector.extract_strided_slice %265 {offsets = [0, 384], sizes = [8, 128], strides = [1, 1]} : vector<8x512xf32> to vector<8x128xf32>
    %cst_101 = arith.constant 5.000000e-01 : f32
    %285 = vector.broadcast %cst_101 : f32 to vector<8x128xf32>
    %286 = arith.mulf %285, %284 : vector<8x128xf32>
    %287 = math.tanh %286 : vector<8x128xf32>
    %cst_102 = arith.constant 5.000000e-01 : f32
    %288 = vector.broadcast %cst_102 : f32 to vector<8x128xf32>
    %289 = arith.mulf %288, %287 : vector<8x128xf32>
    %cst_103 = arith.constant 5.000000e-01 : f32
    %290 = vector.broadcast %cst_103 : f32 to vector<8x128xf32>
    %291 = arith.addf %289, %290 : vector<8x128xf32>
    %292 = arith.mulf %281, %253 : vector<8x128xf32>
    %293 = arith.mulf %273, %283 : vector<8x128xf32>
    %294 = arith.addf %292, %293 : vector<8x128xf32>
    %295 = math.tanh %294 : vector<8x128xf32>
    %296 = arith.mulf %291, %295 : vector<8x128xf32>
    %297 = arith.truncf %296 : vector<8x128xf32> to vector<8x128xbf16>
    %298 = arith.index_cast %260 : i32 to index
    %c0_104 = arith.constant 0 : index
    %299 = vector.load %arg7[%298, %c0_104] : memref<64x128xbf16, #tpu.memory_space<vmem>>, vector<8x128xbf16>
    tpu.vector_store %arg7[%298, %c0_104], %297 {strides = array<i32>} : memref<64x128xbf16, #tpu.memory_space<vmem>>, vector<8x128xbf16>,
    %c7_i32 = arith.constant 7 : i32
    %c8_i32_105 = arith.constant 8 : i32
    %300 = arith.muli %c7_i32, %c8_i32_105 : i32
    %301 = tpu.assume_multiple %300, 8 : i32
    %302 = arith.index_cast %301 : i32 to index
    %c0_106 = arith.constant 0 : index
    %303 = vector.load %arg12[%302, %c0_106] : memref<64x512xf32, #tpu.memory_space<vmem>>, vector<8x512xf32>
    %304 = arith.truncf %296 : vector<8x128xf32> to vector<8x128xbf16>
    %cst_107 = arith.constant dense<0.000000e+00> : vector<8x512xf32>
    %305 = tpu.matmul %304, %10, %cst_107 {dimension_numbers = #tpu.dot_dimension_numbers<[1], [0], [0], [1], [0, 0, 1, 1], [], []>} : vector<8x128xbf16>, vector<128x512xbf16>, vector<8x512xf32> -> vector<8x512xf32>
    %306 = arith.addf %303, %305 : vector<8x512xf32>
    %307 = vector.extract_strided_slice %306 {offsets = [0, 0], sizes = [8, 128], strides = [1, 1]} : vector<8x512xf32> to vector<8x128xf32>
    %cst_108 = arith.constant 5.000000e-01 : f32
    %308 = vector.broadcast %cst_108 : f32 to vector<8x128xf32>
    %309 = arith.mulf %308, %307 : vector<8x128xf32>
    %310 = math.tanh %309 : vector<8x128xf32>
    %cst_109 = arith.constant 5.000000e-01 : f32
    %311 = vector.broadcast %cst_109 : f32 to vector<8x128xf32>
    %312 = arith.mulf %311, %310 : vector<8x128xf32>
    %cst_110 = arith.constant 5.000000e-01 : f32
    %313 = vector.broadcast %cst_110 : f32 to vector<8x128xf32>
    %314 = arith.addf %312, %313 : vector<8x128xf32>
    %315 = vector.extract_strided_slice %306 {offsets = [0, 128], sizes = [8, 128], strides = [1, 1]} : vector<8x512xf32> to vector<8x128xf32>
    %cst_111 = arith.constant 5.000000e-01 : f32
    %316 = vector.broadcast %cst_111 : f32 to vector<8x128xf32>
    %317 = arith.mulf %316, %315 : vector<8x128xf32>
    %318 = math.tanh %317 : vector<8x128xf32>
    %cst_112 = arith.constant 5.000000e-01 : f32
    %319 = vector.broadcast %cst_112 : f32 to vector<8x128xf32>
    %320 = arith.mulf %319, %318 : vector<8x128xf32>
    %cst_113 = arith.constant 5.000000e-01 : f32
    %321 = vector.broadcast %cst_113 : f32 to vector<8x128xf32>
    %322 = arith.addf %320, %321 : vector<8x128xf32>
    %323 = vector.extract_strided_slice %306 {offsets = [0, 256], sizes = [8, 128], strides = [1, 1]} : vector<8x512xf32> to vector<8x128xf32>
    %324 = math.tanh %323 : vector<8x128xf32>
    %325 = vector.extract_strided_slice %306 {offsets = [0, 384], sizes = [8, 128], strides = [1, 1]} : vector<8x512xf32> to vector<8x128xf32>
    %cst_114 = arith.constant 5.000000e-01 : f32
    %326 = vector.broadcast %cst_114 : f32 to vector<8x128xf32>
    %327 = arith.mulf %326, %325 : vector<8x128xf32>
    %328 = math.tanh %327 : vector<8x128xf32>
    %cst_115 = arith.constant 5.000000e-01 : f32
    %329 = vector.broadcast %cst_115 : f32 to vector<8x128xf32>
    %330 = arith.mulf %329, %328 : vector<8x128xf32>
    %cst_116 = arith.constant 5.000000e-01 : f32
    %331 = vector.broadcast %cst_116 : f32 to vector<8x128xf32>
    %332 = arith.addf %330, %331 : vector<8x128xf32>
    %333 = arith.mulf %322, %294 : vector<8x128xf32>
    %334 = arith.mulf %314, %324 : vector<8x128xf32>
    %335 = arith.addf %333, %334 : vector<8x128xf32>
    %336 = math.tanh %335 : vector<8x128xf32>
    %337 = arith.mulf %332, %336 : vector<8x128xf32>
    %338 = arith.truncf %337 : vector<8x128xf32> to vector<8x128xbf16>
    %339 = arith.index_cast %301 : i32 to index
    %c0_117 = arith.constant 0 : index
    %340 = vector.load %arg7[%339, %c0_117] : memref<64x128xbf16, #tpu.memory_space<vmem>>, vector<8x128xbf16>
    tpu.vector_store %arg7[%339, %c0_117], %338 {strides = array<i32>} : memref<64x128xbf16, #tpu.memory_space<vmem>>, vector<8x128xbf16>,
    %c8_i32_118 = arith.constant 8 : i32
    %c0_119 = arith.constant 0 : index
    %c0_120 = arith.constant 0 : index
    %341 = vector.load %arg10[%c0_119, %c0_120] : memref<8x128xf32, #tpu.memory_space<vmem>>, vector<8x128xf32>
    tpu.vector_store %arg10[%c0_119, %c0_120], %337 {strides = array<i32>} : memref<8x128xf32, #tpu.memory_space<vmem>>, vector<8x128xf32>,
    %c0_121 = arith.constant 0 : index
    %c0_122 = arith.constant 0 : index
    %342 = vector.load %arg11[%c0_121, %c0_122] : memref<8x128xf32, #tpu.memory_space<vmem>>, vector<8x128xf32>
    tpu.vector_store %arg11[%c0_121, %c0_122], %335 {strides = array<i32>} : memref<8x128xf32, #tpu.memory_space<vmem>>, vector<8x128xf32>,
    %c0_i32_123 = arith.constant 0 : i32
    %343 = arith.cmpi eq, %arg0, %c0_i32_123 : i32
    %344 = arith.extui %343 : i1 to i32
    %c0_i32_124 = arith.constant 0 : i32
    %345 = arith.cmpi ne, %344, %c0_i32_124 : i32
    scf.if %345 {
      %c0_125 = arith.constant 0 : index
      %c0_126 = arith.constant 0 : index
      %346 = vector.load %arg8[%c0_125, %c0_126] : memref<8x128xf32, #tpu.memory_space<vmem>>, vector<8x128xf32>
      tpu.vector_store %arg8[%c0_125, %c0_126], %337 {strides = array<i32>} : memref<8x128xf32, #tpu.memory_space<vmem>>, vector<8x128xf32>,
      %c0_127 = arith.constant 0 : index
      %c0_128 = arith.constant 0 : index
      %347 = vector.load %arg9[%c0_127, %c0_128] : memref<8x128xf32, #tpu.memory_space<vmem>>, vector<8x128xf32>
      tpu.vector_store %arg9[%c0_127, %c0_128], %335 {strides = array<i32>} : memref<8x128xf32, #tpu.memory_space<vmem>>, vector<8x128xf32>,
    } else {
    }
    return
  }
  func.func @transform_0(%arg0: i32) -> (i32, i32) {
    %c0_i32 = arith.constant 0 : i32
    %c0_i32_0 = arith.constant 0 : i32
    return %arg0, %c0_i32 : i32, i32
  }
  func.func @transform_1(%arg0: i32) -> (i32, i32) {
    %c0_i32 = arith.constant 0 : i32
    %c0_i32_0 = arith.constant 0 : i32
    %c0_i32_1 = arith.constant 0 : i32
    return %c0_i32, %c0_i32_0 : i32, i32
  }
  func.func @transform_2(%arg0: i32) -> (i32, i32) {
    %c0_i32 = arith.constant 0 : i32
    %c0_i32_0 = arith.constant 0 : i32
    %c0_i32_1 = arith.constant 0 : i32
    return %c0_i32, %c0_i32_0 : i32, i32
  }
  func.func @transform_3(%arg0: i32) -> (i32, i32) {
    %c0_i32 = arith.constant 0 : i32
    %c0_i32_0 = arith.constant 0 : i32
    %c0_i32_1 = arith.constant 0 : i32
    return %c0_i32, %c0_i32_0 : i32, i32
  }
  func.func @transform_4(%arg0: i32) -> (i32, i32) {
    %c0_i32 = arith.constant 0 : i32
    %c0_i32_0 = arith.constant 0 : i32
    %c0_i32_1 = arith.constant 0 : i32
    return %c0_i32, %c0_i32_0 : i32, i32
  }
  func.func @transform_5(%arg0: i32) -> (i32, i32) {
    %c0_i32 = arith.constant 0 : i32
    %c0_i32_0 = arith.constant 0 : i32
    %c0_i32_1 = arith.constant 0 : i32
    return %c0_i32, %c0_i32_0 : i32, i32
  }
  func.func @transform_6(%arg0: i32) -> (i32, i32) {
    %c0_i32 = arith.constant 0 : i32
    %c0_i32_0 = arith.constant 0 : i32
    return %arg0, %c0_i32 : i32, i32
  }
  func.func @transform_7(%arg0: i32) -> (i32, i32) {
    %c0_i32 = arith.constant 0 : i32
    %c0_i32_0 = arith.constant 0 : i32
    %c0_i32_1 = arith.constant 0 : i32
    return %c0_i32, %c0_i32_0 : i32, i32
  }
  func.func @transform_8(%arg0: i32) -> (i32, i32) {
    %c0_i32 = arith.constant 0 : i32
    %c0_i32_0 = arith.constant 0 : i32
    %c0_i32_1 = arith.constant 0 : i32
    return %c0_i32, %c0_i32_0 : i32, i32
  }
}

module attributes {stable_mosaic.version = 11 : i64} {
  func.func @_lstm_layer_kernel(%arg0: i32, %arg1: memref<64x128xbf16, #tpu.memory_space<vmem>>, %arg2: memref<128x512xbf16, #tpu.memory_space<vmem>>, %arg3: memref<128x512xbf16, #tpu.memory_space<vmem>>, %arg4: memref<1x512xf32, #tpu.memory_space<vmem>>, %arg5: memref<8x128xf32, #tpu.memory_space<vmem>>, %arg6: memref<8x128xf32, #tpu.memory_space<vmem>>, %arg7: memref<64x128xf32, #tpu.memory_space<vmem>>, %arg8: memref<8x128xf32, #tpu.memory_space<vmem>>, %arg9: memref<8x128xf32, #tpu.memory_space<vmem>>, %arg10: memref<8x128xf32, #tpu.memory_space<vmem>>, %arg11: memref<8x128xf32, #tpu.memory_space<vmem>>, %arg12: memref<64x512xf32, #tpu.memory_space<vmem>>) attributes {dimension_semantics = [#tpu.dimension_semantics<arbitrary>], iteration_bounds = array<i64: 1>, scalar_prefetch = 0 : i64, scratch_operands = 3 : i64, tpu.core_type = #tpu.core_type<tc>, window_params = [{transform_indices = @transform_0, window_bounds = array<i64: 64, 128>}, {pipeline_mode = #tpu.pipeline_mode<synchronous>, transform_indices = @transform_1, window_bounds = array<i64: 128, 512>}, {pipeline_mode = #tpu.pipeline_mode<synchronous>, transform_indices = @transform_2, window_bounds = array<i64: 128, 512>}, {pipeline_mode = #tpu.pipeline_mode<synchronous>, transform_indices = @transform_3, window_bounds = array<i64: 1, 512>}, {pipeline_mode = #tpu.pipeline_mode<synchronous>, transform_indices = @transform_4, window_bounds = array<i64: 8, 128>}, {pipeline_mode = #tpu.pipeline_mode<synchronous>, transform_indices = @transform_5, window_bounds = array<i64: 8, 128>}, {transform_indices = @transform_6, window_bounds = array<i64: 64, 128>}, {pipeline_mode = #tpu.pipeline_mode<synchronous>, transform_indices = @transform_7, window_bounds = array<i64: 8, 128>}, {pipeline_mode = #tpu.pipeline_mode<synchronous>, transform_indices = @transform_8, window_bounds = array<i64: 8, 128>}]} {
    %c0_i32 = arith.constant 0 : i32
    %0 = arith.cmpi eq, %arg0, %c0_i32 : i32
    %1 = arith.extui %0 : i1 to i32
    %c0_i32_0 = arith.constant 0 : i32
    %2 = arith.cmpi ne, %1, %c0_i32_0 : i32
    scf.if %2 {
      %c0_125 = arith.constant 0 : index
      %c0_126 = arith.constant 0 : index
      %338 = vector.load %arg5[%c0_125, %c0_126] : memref<8x128xf32, #tpu.memory_space<vmem>>, vector<8x128xf32>
      %c0_127 = arith.constant 0 : index
      %c0_128 = arith.constant 0 : index
      %339 = vector.load %arg10[%c0_127, %c0_128] : memref<8x128xf32, #tpu.memory_space<vmem>>, vector<8x128xf32>
      tpu.vector_store %arg10[%c0_127, %c0_128], %338 {strides = array<i32>} : memref<8x128xf32, #tpu.memory_space<vmem>>, vector<8x128xf32>,
      %c0_129 = arith.constant 0 : index
      %c0_130 = arith.constant 0 : index
      %340 = vector.load %arg6[%c0_129, %c0_130] : memref<8x128xf32, #tpu.memory_space<vmem>>, vector<8x128xf32>
      %c0_131 = arith.constant 0 : index
      %c0_132 = arith.constant 0 : index
      %341 = vector.load %arg11[%c0_131, %c0_132] : memref<8x128xf32, #tpu.memory_space<vmem>>, vector<8x128xf32>
      tpu.vector_store %arg11[%c0_131, %c0_132], %340 {strides = array<i32>} : memref<8x128xf32, #tpu.memory_space<vmem>>, vector<8x128xf32>,
    } else {
    }
    %c0 = arith.constant 0 : index
    %c0_1 = arith.constant 0 : index
    %3 = vector.load %arg1[%c0, %c0_1] : memref<64x128xbf16, #tpu.memory_space<vmem>>, vector<64x128xbf16>
    %c0_2 = arith.constant 0 : index
    %c0_3 = arith.constant 0 : index
    %4 = vector.load %arg2[%c0_2, %c0_3] : memref<128x512xbf16, #tpu.memory_space<vmem>>, vector<128x512xbf16>
    %cst = arith.constant dense<0.000000e+00> : vector<64x512xf32>
    %5 = tpu.matmul %3, %4, %cst {dimension_numbers = #tpu.dot_dimension_numbers<[1], [0], [0], [1], [0, 0, 1, 1], [], []>} : vector<64x128xbf16>, vector<128x512xbf16>, vector<64x512xf32> -> vector<64x512xf32>
    %c0_4 = arith.constant 0 : index
    %c0_5 = arith.constant 0 : index
    %6 = vector.load %arg4[%c0_4, %c0_5] : memref<1x512xf32, #tpu.memory_space<vmem>>, vector<1x512xf32>
    %7 = vector.broadcast %6 : vector<1x512xf32> to vector<64x512xf32>
    %8 = arith.addf %5, %7 : vector<64x512xf32>
    %c0_6 = arith.constant 0 : index
    %c0_7 = arith.constant 0 : index
    %9 = vector.load %arg12[%c0_6, %c0_7] : memref<64x512xf32, #tpu.memory_space<vmem>>, vector<64x512xf32>
    tpu.vector_store %arg12[%c0_6, %c0_7], %8 {strides = array<i32>} : memref<64x512xf32, #tpu.memory_space<vmem>>, vector<64x512xf32>,
    %c0_8 = arith.constant 0 : index
    %c0_9 = arith.constant 0 : index
    %10 = vector.load %arg3[%c0_8, %c0_9] : memref<128x512xbf16, #tpu.memory_space<vmem>>, vector<128x512xbf16>
    %c0_10 = arith.constant 0 : index
    %c0_11 = arith.constant 0 : index
    %11 = vector.load %arg10[%c0_10, %c0_11] : memref<8x128xf32, #tpu.memory_space<vmem>>, vector<8x128xf32>
    %c0_12 = arith.constant 0 : index
    %c0_13 = arith.constant 0 : index
    %12 = vector.load %arg11[%c0_12, %c0_13] : memref<8x128xf32, #tpu.memory_space<vmem>>, vector<8x128xf32>
    %c0_i32_14 = arith.constant 0 : i32
    %c8_i32 = arith.constant 8 : i32
    %13 = arith.muli %c0_i32_14, %c8_i32 : i32
    %14 = tpu.assume_multiple %13, 8 : i32
    %15 = arith.index_cast %14 : i32 to index
    %c0_15 = arith.constant 0 : index
    %16 = vector.load %arg12[%15, %c0_15] : memref<64x512xf32, #tpu.memory_space<vmem>>, vector<8x512xf32>
    %17 = arith.truncf %11 : vector<8x128xf32> to vector<8x128xbf16>
    %cst_16 = arith.constant dense<0.000000e+00> : vector<8x512xf32>
    %18 = tpu.matmul %17, %10, %cst_16 {dimension_numbers = #tpu.dot_dimension_numbers<[1], [0], [0], [1], [0, 0, 1, 1], [], []>} : vector<8x128xbf16>, vector<128x512xbf16>, vector<8x512xf32> -> vector<8x512xf32>
    %19 = arith.addf %16, %18 : vector<8x512xf32>
    %20 = vector.extract_strided_slice %19 {offsets = [0, 0], sizes = [8, 128], strides = [1, 1]} : vector<8x512xf32> to vector<8x128xf32>
    %cst_17 = arith.constant 5.000000e-01 : f32
    %21 = vector.broadcast %cst_17 : f32 to vector<8x128xf32>
    %22 = arith.mulf %21, %20 : vector<8x128xf32>
    %23 = math.tanh %22 : vector<8x128xf32>
    %cst_18 = arith.constant 5.000000e-01 : f32
    %24 = vector.broadcast %cst_18 : f32 to vector<8x128xf32>
    %25 = arith.mulf %24, %23 : vector<8x128xf32>
    %cst_19 = arith.constant 5.000000e-01 : f32
    %26 = vector.broadcast %cst_19 : f32 to vector<8x128xf32>
    %27 = arith.addf %25, %26 : vector<8x128xf32>
    %28 = vector.extract_strided_slice %19 {offsets = [0, 128], sizes = [8, 128], strides = [1, 1]} : vector<8x512xf32> to vector<8x128xf32>
    %cst_20 = arith.constant 5.000000e-01 : f32
    %29 = vector.broadcast %cst_20 : f32 to vector<8x128xf32>
    %30 = arith.mulf %29, %28 : vector<8x128xf32>
    %31 = math.tanh %30 : vector<8x128xf32>
    %cst_21 = arith.constant 5.000000e-01 : f32
    %32 = vector.broadcast %cst_21 : f32 to vector<8x128xf32>
    %33 = arith.mulf %32, %31 : vector<8x128xf32>
    %cst_22 = arith.constant 5.000000e-01 : f32
    %34 = vector.broadcast %cst_22 : f32 to vector<8x128xf32>
    %35 = arith.addf %33, %34 : vector<8x128xf32>
    %36 = vector.extract_strided_slice %19 {offsets = [0, 256], sizes = [8, 128], strides = [1, 1]} : vector<8x512xf32> to vector<8x128xf32>
    %37 = math.tanh %36 : vector<8x128xf32>
    %38 = vector.extract_strided_slice %19 {offsets = [0, 384], sizes = [8, 128], strides = [1, 1]} : vector<8x512xf32> to vector<8x128xf32>
    %cst_23 = arith.constant 5.000000e-01 : f32
    %39 = vector.broadcast %cst_23 : f32 to vector<8x128xf32>
    %40 = arith.mulf %39, %38 : vector<8x128xf32>
    %41 = math.tanh %40 : vector<8x128xf32>
    %cst_24 = arith.constant 5.000000e-01 : f32
    %42 = vector.broadcast %cst_24 : f32 to vector<8x128xf32>
    %43 = arith.mulf %42, %41 : vector<8x128xf32>
    %cst_25 = arith.constant 5.000000e-01 : f32
    %44 = vector.broadcast %cst_25 : f32 to vector<8x128xf32>
    %45 = arith.addf %43, %44 : vector<8x128xf32>
    %46 = arith.mulf %35, %12 : vector<8x128xf32>
    %47 = arith.mulf %27, %37 : vector<8x128xf32>
    %48 = arith.addf %46, %47 : vector<8x128xf32>
    %49 = math.tanh %48 : vector<8x128xf32>
    %50 = arith.mulf %45, %49 : vector<8x128xf32>
    %51 = arith.index_cast %14 : i32 to index
    %c0_26 = arith.constant 0 : index
    %52 = vector.load %arg7[%51, %c0_26] : memref<64x128xf32, #tpu.memory_space<vmem>>, vector<8x128xf32>
    tpu.vector_store %arg7[%51, %c0_26], %50 {strides = array<i32>} : memref<64x128xf32, #tpu.memory_space<vmem>>, vector<8x128xf32>,
    %c1_i32 = arith.constant 1 : i32
    %c8_i32_27 = arith.constant 8 : i32
    %53 = arith.muli %c1_i32, %c8_i32_27 : i32
    %54 = tpu.assume_multiple %53, 8 : i32
    %55 = arith.index_cast %54 : i32 to index
    %c0_28 = arith.constant 0 : index
    %56 = vector.load %arg12[%55, %c0_28] : memref<64x512xf32, #tpu.memory_space<vmem>>, vector<8x512xf32>
    %57 = arith.truncf %50 : vector<8x128xf32> to vector<8x128xbf16>
    %cst_29 = arith.constant dense<0.000000e+00> : vector<8x512xf32>
    %58 = tpu.matmul %57, %10, %cst_29 {dimension_numbers = #tpu.dot_dimension_numbers<[1], [0], [0], [1], [0, 0, 1, 1], [], []>} : vector<8x128xbf16>, vector<128x512xbf16>, vector<8x512xf32> -> vector<8x512xf32>
    %59 = arith.addf %56, %58 : vector<8x512xf32>
    %60 = vector.extract_strided_slice %59 {offsets = [0, 0], sizes = [8, 128], strides = [1, 1]} : vector<8x512xf32> to vector<8x128xf32>
    %cst_30 = arith.constant 5.000000e-01 : f32
    %61 = vector.broadcast %cst_30 : f32 to vector<8x128xf32>
    %62 = arith.mulf %61, %60 : vector<8x128xf32>
    %63 = math.tanh %62 : vector<8x128xf32>
    %cst_31 = arith.constant 5.000000e-01 : f32
    %64 = vector.broadcast %cst_31 : f32 to vector<8x128xf32>
    %65 = arith.mulf %64, %63 : vector<8x128xf32>
    %cst_32 = arith.constant 5.000000e-01 : f32
    %66 = vector.broadcast %cst_32 : f32 to vector<8x128xf32>
    %67 = arith.addf %65, %66 : vector<8x128xf32>
    %68 = vector.extract_strided_slice %59 {offsets = [0, 128], sizes = [8, 128], strides = [1, 1]} : vector<8x512xf32> to vector<8x128xf32>
    %cst_33 = arith.constant 5.000000e-01 : f32
    %69 = vector.broadcast %cst_33 : f32 to vector<8x128xf32>
    %70 = arith.mulf %69, %68 : vector<8x128xf32>
    %71 = math.tanh %70 : vector<8x128xf32>
    %cst_34 = arith.constant 5.000000e-01 : f32
    %72 = vector.broadcast %cst_34 : f32 to vector<8x128xf32>
    %73 = arith.mulf %72, %71 : vector<8x128xf32>
    %cst_35 = arith.constant 5.000000e-01 : f32
    %74 = vector.broadcast %cst_35 : f32 to vector<8x128xf32>
    %75 = arith.addf %73, %74 : vector<8x128xf32>
    %76 = vector.extract_strided_slice %59 {offsets = [0, 256], sizes = [8, 128], strides = [1, 1]} : vector<8x512xf32> to vector<8x128xf32>
    %77 = math.tanh %76 : vector<8x128xf32>
    %78 = vector.extract_strided_slice %59 {offsets = [0, 384], sizes = [8, 128], strides = [1, 1]} : vector<8x512xf32> to vector<8x128xf32>
    %cst_36 = arith.constant 5.000000e-01 : f32
    %79 = vector.broadcast %cst_36 : f32 to vector<8x128xf32>
    %80 = arith.mulf %79, %78 : vector<8x128xf32>
    %81 = math.tanh %80 : vector<8x128xf32>
    %cst_37 = arith.constant 5.000000e-01 : f32
    %82 = vector.broadcast %cst_37 : f32 to vector<8x128xf32>
    %83 = arith.mulf %82, %81 : vector<8x128xf32>
    %cst_38 = arith.constant 5.000000e-01 : f32
    %84 = vector.broadcast %cst_38 : f32 to vector<8x128xf32>
    %85 = arith.addf %83, %84 : vector<8x128xf32>
    %86 = arith.mulf %75, %48 : vector<8x128xf32>
    %87 = arith.mulf %67, %77 : vector<8x128xf32>
    %88 = arith.addf %86, %87 : vector<8x128xf32>
    %89 = math.tanh %88 : vector<8x128xf32>
    %90 = arith.mulf %85, %89 : vector<8x128xf32>
    %91 = arith.index_cast %54 : i32 to index
    %c0_39 = arith.constant 0 : index
    %92 = vector.load %arg7[%91, %c0_39] : memref<64x128xf32, #tpu.memory_space<vmem>>, vector<8x128xf32>
    tpu.vector_store %arg7[%91, %c0_39], %90 {strides = array<i32>} : memref<64x128xf32, #tpu.memory_space<vmem>>, vector<8x128xf32>,
    %c2_i32 = arith.constant 2 : i32
    %c8_i32_40 = arith.constant 8 : i32
    %93 = arith.muli %c2_i32, %c8_i32_40 : i32
    %94 = tpu.assume_multiple %93, 8 : i32
    %95 = arith.index_cast %94 : i32 to index
    %c0_41 = arith.constant 0 : index
    %96 = vector.load %arg12[%95, %c0_41] : memref<64x512xf32, #tpu.memory_space<vmem>>, vector<8x512xf32>
    %97 = arith.truncf %90 : vector<8x128xf32> to vector<8x128xbf16>
    %cst_42 = arith.constant dense<0.000000e+00> : vector<8x512xf32>
    %98 = tpu.matmul %97, %10, %cst_42 {dimension_numbers = #tpu.dot_dimension_numbers<[1], [0], [0], [1], [0, 0, 1, 1], [], []>} : vector<8x128xbf16>, vector<128x512xbf16>, vector<8x512xf32> -> vector<8x512xf32>
    %99 = arith.addf %96, %98 : vector<8x512xf32>
    %100 = vector.extract_strided_slice %99 {offsets = [0, 0], sizes = [8, 128], strides = [1, 1]} : vector<8x512xf32> to vector<8x128xf32>
    %cst_43 = arith.constant 5.000000e-01 : f32
    %101 = vector.broadcast %cst_43 : f32 to vector<8x128xf32>
    %102 = arith.mulf %101, %100 : vector<8x128xf32>
    %103 = math.tanh %102 : vector<8x128xf32>
    %cst_44 = arith.constant 5.000000e-01 : f32
    %104 = vector.broadcast %cst_44 : f32 to vector<8x128xf32>
    %105 = arith.mulf %104, %103 : vector<8x128xf32>
    %cst_45 = arith.constant 5.000000e-01 : f32
    %106 = vector.broadcast %cst_45 : f32 to vector<8x128xf32>
    %107 = arith.addf %105, %106 : vector<8x128xf32>
    %108 = vector.extract_strided_slice %99 {offsets = [0, 128], sizes = [8, 128], strides = [1, 1]} : vector<8x512xf32> to vector<8x128xf32>
    %cst_46 = arith.constant 5.000000e-01 : f32
    %109 = vector.broadcast %cst_46 : f32 to vector<8x128xf32>
    %110 = arith.mulf %109, %108 : vector<8x128xf32>
    %111 = math.tanh %110 : vector<8x128xf32>
    %cst_47 = arith.constant 5.000000e-01 : f32
    %112 = vector.broadcast %cst_47 : f32 to vector<8x128xf32>
    %113 = arith.mulf %112, %111 : vector<8x128xf32>
    %cst_48 = arith.constant 5.000000e-01 : f32
    %114 = vector.broadcast %cst_48 : f32 to vector<8x128xf32>
    %115 = arith.addf %113, %114 : vector<8x128xf32>
    %116 = vector.extract_strided_slice %99 {offsets = [0, 256], sizes = [8, 128], strides = [1, 1]} : vector<8x512xf32> to vector<8x128xf32>
    %117 = math.tanh %116 : vector<8x128xf32>
    %118 = vector.extract_strided_slice %99 {offsets = [0, 384], sizes = [8, 128], strides = [1, 1]} : vector<8x512xf32> to vector<8x128xf32>
    %cst_49 = arith.constant 5.000000e-01 : f32
    %119 = vector.broadcast %cst_49 : f32 to vector<8x128xf32>
    %120 = arith.mulf %119, %118 : vector<8x128xf32>
    %121 = math.tanh %120 : vector<8x128xf32>
    %cst_50 = arith.constant 5.000000e-01 : f32
    %122 = vector.broadcast %cst_50 : f32 to vector<8x128xf32>
    %123 = arith.mulf %122, %121 : vector<8x128xf32>
    %cst_51 = arith.constant 5.000000e-01 : f32
    %124 = vector.broadcast %cst_51 : f32 to vector<8x128xf32>
    %125 = arith.addf %123, %124 : vector<8x128xf32>
    %126 = arith.mulf %115, %88 : vector<8x128xf32>
    %127 = arith.mulf %107, %117 : vector<8x128xf32>
    %128 = arith.addf %126, %127 : vector<8x128xf32>
    %129 = math.tanh %128 : vector<8x128xf32>
    %130 = arith.mulf %125, %129 : vector<8x128xf32>
    %131 = arith.index_cast %94 : i32 to index
    %c0_52 = arith.constant 0 : index
    %132 = vector.load %arg7[%131, %c0_52] : memref<64x128xf32, #tpu.memory_space<vmem>>, vector<8x128xf32>
    tpu.vector_store %arg7[%131, %c0_52], %130 {strides = array<i32>} : memref<64x128xf32, #tpu.memory_space<vmem>>, vector<8x128xf32>,
    %c3_i32 = arith.constant 3 : i32
    %c8_i32_53 = arith.constant 8 : i32
    %133 = arith.muli %c3_i32, %c8_i32_53 : i32
    %134 = tpu.assume_multiple %133, 8 : i32
    %135 = arith.index_cast %134 : i32 to index
    %c0_54 = arith.constant 0 : index
    %136 = vector.load %arg12[%135, %c0_54] : memref<64x512xf32, #tpu.memory_space<vmem>>, vector<8x512xf32>
    %137 = arith.truncf %130 : vector<8x128xf32> to vector<8x128xbf16>
    %cst_55 = arith.constant dense<0.000000e+00> : vector<8x512xf32>
    %138 = tpu.matmul %137, %10, %cst_55 {dimension_numbers = #tpu.dot_dimension_numbers<[1], [0], [0], [1], [0, 0, 1, 1], [], []>} : vector<8x128xbf16>, vector<128x512xbf16>, vector<8x512xf32> -> vector<8x512xf32>
    %139 = arith.addf %136, %138 : vector<8x512xf32>
    %140 = vector.extract_strided_slice %139 {offsets = [0, 0], sizes = [8, 128], strides = [1, 1]} : vector<8x512xf32> to vector<8x128xf32>
    %cst_56 = arith.constant 5.000000e-01 : f32
    %141 = vector.broadcast %cst_56 : f32 to vector<8x128xf32>
    %142 = arith.mulf %141, %140 : vector<8x128xf32>
    %143 = math.tanh %142 : vector<8x128xf32>
    %cst_57 = arith.constant 5.000000e-01 : f32
    %144 = vector.broadcast %cst_57 : f32 to vector<8x128xf32>
    %145 = arith.mulf %144, %143 : vector<8x128xf32>
    %cst_58 = arith.constant 5.000000e-01 : f32
    %146 = vector.broadcast %cst_58 : f32 to vector<8x128xf32>
    %147 = arith.addf %145, %146 : vector<8x128xf32>
    %148 = vector.extract_strided_slice %139 {offsets = [0, 128], sizes = [8, 128], strides = [1, 1]} : vector<8x512xf32> to vector<8x128xf32>
    %cst_59 = arith.constant 5.000000e-01 : f32
    %149 = vector.broadcast %cst_59 : f32 to vector<8x128xf32>
    %150 = arith.mulf %149, %148 : vector<8x128xf32>
    %151 = math.tanh %150 : vector<8x128xf32>
    %cst_60 = arith.constant 5.000000e-01 : f32
    %152 = vector.broadcast %cst_60 : f32 to vector<8x128xf32>
    %153 = arith.mulf %152, %151 : vector<8x128xf32>
    %cst_61 = arith.constant 5.000000e-01 : f32
    %154 = vector.broadcast %cst_61 : f32 to vector<8x128xf32>
    %155 = arith.addf %153, %154 : vector<8x128xf32>
    %156 = vector.extract_strided_slice %139 {offsets = [0, 256], sizes = [8, 128], strides = [1, 1]} : vector<8x512xf32> to vector<8x128xf32>
    %157 = math.tanh %156 : vector<8x128xf32>
    %158 = vector.extract_strided_slice %139 {offsets = [0, 384], sizes = [8, 128], strides = [1, 1]} : vector<8x512xf32> to vector<8x128xf32>
    %cst_62 = arith.constant 5.000000e-01 : f32
    %159 = vector.broadcast %cst_62 : f32 to vector<8x128xf32>
    %160 = arith.mulf %159, %158 : vector<8x128xf32>
    %161 = math.tanh %160 : vector<8x128xf32>
    %cst_63 = arith.constant 5.000000e-01 : f32
    %162 = vector.broadcast %cst_63 : f32 to vector<8x128xf32>
    %163 = arith.mulf %162, %161 : vector<8x128xf32>
    %cst_64 = arith.constant 5.000000e-01 : f32
    %164 = vector.broadcast %cst_64 : f32 to vector<8x128xf32>
    %165 = arith.addf %163, %164 : vector<8x128xf32>
    %166 = arith.mulf %155, %128 : vector<8x128xf32>
    %167 = arith.mulf %147, %157 : vector<8x128xf32>
    %168 = arith.addf %166, %167 : vector<8x128xf32>
    %169 = math.tanh %168 : vector<8x128xf32>
    %170 = arith.mulf %165, %169 : vector<8x128xf32>
    %171 = arith.index_cast %134 : i32 to index
    %c0_65 = arith.constant 0 : index
    %172 = vector.load %arg7[%171, %c0_65] : memref<64x128xf32, #tpu.memory_space<vmem>>, vector<8x128xf32>
    tpu.vector_store %arg7[%171, %c0_65], %170 {strides = array<i32>} : memref<64x128xf32, #tpu.memory_space<vmem>>, vector<8x128xf32>,
    %c4_i32 = arith.constant 4 : i32
    %c8_i32_66 = arith.constant 8 : i32
    %173 = arith.muli %c4_i32, %c8_i32_66 : i32
    %174 = tpu.assume_multiple %173, 8 : i32
    %175 = arith.index_cast %174 : i32 to index
    %c0_67 = arith.constant 0 : index
    %176 = vector.load %arg12[%175, %c0_67] : memref<64x512xf32, #tpu.memory_space<vmem>>, vector<8x512xf32>
    %177 = arith.truncf %170 : vector<8x128xf32> to vector<8x128xbf16>
    %cst_68 = arith.constant dense<0.000000e+00> : vector<8x512xf32>
    %178 = tpu.matmul %177, %10, %cst_68 {dimension_numbers = #tpu.dot_dimension_numbers<[1], [0], [0], [1], [0, 0, 1, 1], [], []>} : vector<8x128xbf16>, vector<128x512xbf16>, vector<8x512xf32> -> vector<8x512xf32>
    %179 = arith.addf %176, %178 : vector<8x512xf32>
    %180 = vector.extract_strided_slice %179 {offsets = [0, 0], sizes = [8, 128], strides = [1, 1]} : vector<8x512xf32> to vector<8x128xf32>
    %cst_69 = arith.constant 5.000000e-01 : f32
    %181 = vector.broadcast %cst_69 : f32 to vector<8x128xf32>
    %182 = arith.mulf %181, %180 : vector<8x128xf32>
    %183 = math.tanh %182 : vector<8x128xf32>
    %cst_70 = arith.constant 5.000000e-01 : f32
    %184 = vector.broadcast %cst_70 : f32 to vector<8x128xf32>
    %185 = arith.mulf %184, %183 : vector<8x128xf32>
    %cst_71 = arith.constant 5.000000e-01 : f32
    %186 = vector.broadcast %cst_71 : f32 to vector<8x128xf32>
    %187 = arith.addf %185, %186 : vector<8x128xf32>
    %188 = vector.extract_strided_slice %179 {offsets = [0, 128], sizes = [8, 128], strides = [1, 1]} : vector<8x512xf32> to vector<8x128xf32>
    %cst_72 = arith.constant 5.000000e-01 : f32
    %189 = vector.broadcast %cst_72 : f32 to vector<8x128xf32>
    %190 = arith.mulf %189, %188 : vector<8x128xf32>
    %191 = math.tanh %190 : vector<8x128xf32>
    %cst_73 = arith.constant 5.000000e-01 : f32
    %192 = vector.broadcast %cst_73 : f32 to vector<8x128xf32>
    %193 = arith.mulf %192, %191 : vector<8x128xf32>
    %cst_74 = arith.constant 5.000000e-01 : f32
    %194 = vector.broadcast %cst_74 : f32 to vector<8x128xf32>
    %195 = arith.addf %193, %194 : vector<8x128xf32>
    %196 = vector.extract_strided_slice %179 {offsets = [0, 256], sizes = [8, 128], strides = [1, 1]} : vector<8x512xf32> to vector<8x128xf32>
    %197 = math.tanh %196 : vector<8x128xf32>
    %198 = vector.extract_strided_slice %179 {offsets = [0, 384], sizes = [8, 128], strides = [1, 1]} : vector<8x512xf32> to vector<8x128xf32>
    %cst_75 = arith.constant 5.000000e-01 : f32
    %199 = vector.broadcast %cst_75 : f32 to vector<8x128xf32>
    %200 = arith.mulf %199, %198 : vector<8x128xf32>
    %201 = math.tanh %200 : vector<8x128xf32>
    %cst_76 = arith.constant 5.000000e-01 : f32
    %202 = vector.broadcast %cst_76 : f32 to vector<8x128xf32>
    %203 = arith.mulf %202, %201 : vector<8x128xf32>
    %cst_77 = arith.constant 5.000000e-01 : f32
    %204 = vector.broadcast %cst_77 : f32 to vector<8x128xf32>
    %205 = arith.addf %203, %204 : vector<8x128xf32>
    %206 = arith.mulf %195, %168 : vector<8x128xf32>
    %207 = arith.mulf %187, %197 : vector<8x128xf32>
    %208 = arith.addf %206, %207 : vector<8x128xf32>
    %209 = math.tanh %208 : vector<8x128xf32>
    %210 = arith.mulf %205, %209 : vector<8x128xf32>
    %211 = arith.index_cast %174 : i32 to index
    %c0_78 = arith.constant 0 : index
    %212 = vector.load %arg7[%211, %c0_78] : memref<64x128xf32, #tpu.memory_space<vmem>>, vector<8x128xf32>
    tpu.vector_store %arg7[%211, %c0_78], %210 {strides = array<i32>} : memref<64x128xf32, #tpu.memory_space<vmem>>, vector<8x128xf32>,
    %c5_i32 = arith.constant 5 : i32
    %c8_i32_79 = arith.constant 8 : i32
    %213 = arith.muli %c5_i32, %c8_i32_79 : i32
    %214 = tpu.assume_multiple %213, 8 : i32
    %215 = arith.index_cast %214 : i32 to index
    %c0_80 = arith.constant 0 : index
    %216 = vector.load %arg12[%215, %c0_80] : memref<64x512xf32, #tpu.memory_space<vmem>>, vector<8x512xf32>
    %217 = arith.truncf %210 : vector<8x128xf32> to vector<8x128xbf16>
    %cst_81 = arith.constant dense<0.000000e+00> : vector<8x512xf32>
    %218 = tpu.matmul %217, %10, %cst_81 {dimension_numbers = #tpu.dot_dimension_numbers<[1], [0], [0], [1], [0, 0, 1, 1], [], []>} : vector<8x128xbf16>, vector<128x512xbf16>, vector<8x512xf32> -> vector<8x512xf32>
    %219 = arith.addf %216, %218 : vector<8x512xf32>
    %220 = vector.extract_strided_slice %219 {offsets = [0, 0], sizes = [8, 128], strides = [1, 1]} : vector<8x512xf32> to vector<8x128xf32>
    %cst_82 = arith.constant 5.000000e-01 : f32
    %221 = vector.broadcast %cst_82 : f32 to vector<8x128xf32>
    %222 = arith.mulf %221, %220 : vector<8x128xf32>
    %223 = math.tanh %222 : vector<8x128xf32>
    %cst_83 = arith.constant 5.000000e-01 : f32
    %224 = vector.broadcast %cst_83 : f32 to vector<8x128xf32>
    %225 = arith.mulf %224, %223 : vector<8x128xf32>
    %cst_84 = arith.constant 5.000000e-01 : f32
    %226 = vector.broadcast %cst_84 : f32 to vector<8x128xf32>
    %227 = arith.addf %225, %226 : vector<8x128xf32>
    %228 = vector.extract_strided_slice %219 {offsets = [0, 128], sizes = [8, 128], strides = [1, 1]} : vector<8x512xf32> to vector<8x128xf32>
    %cst_85 = arith.constant 5.000000e-01 : f32
    %229 = vector.broadcast %cst_85 : f32 to vector<8x128xf32>
    %230 = arith.mulf %229, %228 : vector<8x128xf32>
    %231 = math.tanh %230 : vector<8x128xf32>
    %cst_86 = arith.constant 5.000000e-01 : f32
    %232 = vector.broadcast %cst_86 : f32 to vector<8x128xf32>
    %233 = arith.mulf %232, %231 : vector<8x128xf32>
    %cst_87 = arith.constant 5.000000e-01 : f32
    %234 = vector.broadcast %cst_87 : f32 to vector<8x128xf32>
    %235 = arith.addf %233, %234 : vector<8x128xf32>
    %236 = vector.extract_strided_slice %219 {offsets = [0, 256], sizes = [8, 128], strides = [1, 1]} : vector<8x512xf32> to vector<8x128xf32>
    %237 = math.tanh %236 : vector<8x128xf32>
    %238 = vector.extract_strided_slice %219 {offsets = [0, 384], sizes = [8, 128], strides = [1, 1]} : vector<8x512xf32> to vector<8x128xf32>
    %cst_88 = arith.constant 5.000000e-01 : f32
    %239 = vector.broadcast %cst_88 : f32 to vector<8x128xf32>
    %240 = arith.mulf %239, %238 : vector<8x128xf32>
    %241 = math.tanh %240 : vector<8x128xf32>
    %cst_89 = arith.constant 5.000000e-01 : f32
    %242 = vector.broadcast %cst_89 : f32 to vector<8x128xf32>
    %243 = arith.mulf %242, %241 : vector<8x128xf32>
    %cst_90 = arith.constant 5.000000e-01 : f32
    %244 = vector.broadcast %cst_90 : f32 to vector<8x128xf32>
    %245 = arith.addf %243, %244 : vector<8x128xf32>
    %246 = arith.mulf %235, %208 : vector<8x128xf32>
    %247 = arith.mulf %227, %237 : vector<8x128xf32>
    %248 = arith.addf %246, %247 : vector<8x128xf32>
    %249 = math.tanh %248 : vector<8x128xf32>
    %250 = arith.mulf %245, %249 : vector<8x128xf32>
    %251 = arith.index_cast %214 : i32 to index
    %c0_91 = arith.constant 0 : index
    %252 = vector.load %arg7[%251, %c0_91] : memref<64x128xf32, #tpu.memory_space<vmem>>, vector<8x128xf32>
    tpu.vector_store %arg7[%251, %c0_91], %250 {strides = array<i32>} : memref<64x128xf32, #tpu.memory_space<vmem>>, vector<8x128xf32>,
    %c6_i32 = arith.constant 6 : i32
    %c8_i32_92 = arith.constant 8 : i32
    %253 = arith.muli %c6_i32, %c8_i32_92 : i32
    %254 = tpu.assume_multiple %253, 8 : i32
    %255 = arith.index_cast %254 : i32 to index
    %c0_93 = arith.constant 0 : index
    %256 = vector.load %arg12[%255, %c0_93] : memref<64x512xf32, #tpu.memory_space<vmem>>, vector<8x512xf32>
    %257 = arith.truncf %250 : vector<8x128xf32> to vector<8x128xbf16>
    %cst_94 = arith.constant dense<0.000000e+00> : vector<8x512xf32>
    %258 = tpu.matmul %257, %10, %cst_94 {dimension_numbers = #tpu.dot_dimension_numbers<[1], [0], [0], [1], [0, 0, 1, 1], [], []>} : vector<8x128xbf16>, vector<128x512xbf16>, vector<8x512xf32> -> vector<8x512xf32>
    %259 = arith.addf %256, %258 : vector<8x512xf32>
    %260 = vector.extract_strided_slice %259 {offsets = [0, 0], sizes = [8, 128], strides = [1, 1]} : vector<8x512xf32> to vector<8x128xf32>
    %cst_95 = arith.constant 5.000000e-01 : f32
    %261 = vector.broadcast %cst_95 : f32 to vector<8x128xf32>
    %262 = arith.mulf %261, %260 : vector<8x128xf32>
    %263 = math.tanh %262 : vector<8x128xf32>
    %cst_96 = arith.constant 5.000000e-01 : f32
    %264 = vector.broadcast %cst_96 : f32 to vector<8x128xf32>
    %265 = arith.mulf %264, %263 : vector<8x128xf32>
    %cst_97 = arith.constant 5.000000e-01 : f32
    %266 = vector.broadcast %cst_97 : f32 to vector<8x128xf32>
    %267 = arith.addf %265, %266 : vector<8x128xf32>
    %268 = vector.extract_strided_slice %259 {offsets = [0, 128], sizes = [8, 128], strides = [1, 1]} : vector<8x512xf32> to vector<8x128xf32>
    %cst_98 = arith.constant 5.000000e-01 : f32
    %269 = vector.broadcast %cst_98 : f32 to vector<8x128xf32>
    %270 = arith.mulf %269, %268 : vector<8x128xf32>
    %271 = math.tanh %270 : vector<8x128xf32>
    %cst_99 = arith.constant 5.000000e-01 : f32
    %272 = vector.broadcast %cst_99 : f32 to vector<8x128xf32>
    %273 = arith.mulf %272, %271 : vector<8x128xf32>
    %cst_100 = arith.constant 5.000000e-01 : f32
    %274 = vector.broadcast %cst_100 : f32 to vector<8x128xf32>
    %275 = arith.addf %273, %274 : vector<8x128xf32>
    %276 = vector.extract_strided_slice %259 {offsets = [0, 256], sizes = [8, 128], strides = [1, 1]} : vector<8x512xf32> to vector<8x128xf32>
    %277 = math.tanh %276 : vector<8x128xf32>
    %278 = vector.extract_strided_slice %259 {offsets = [0, 384], sizes = [8, 128], strides = [1, 1]} : vector<8x512xf32> to vector<8x128xf32>
    %cst_101 = arith.constant 5.000000e-01 : f32
    %279 = vector.broadcast %cst_101 : f32 to vector<8x128xf32>
    %280 = arith.mulf %279, %278 : vector<8x128xf32>
    %281 = math.tanh %280 : vector<8x128xf32>
    %cst_102 = arith.constant 5.000000e-01 : f32
    %282 = vector.broadcast %cst_102 : f32 to vector<8x128xf32>
    %283 = arith.mulf %282, %281 : vector<8x128xf32>
    %cst_103 = arith.constant 5.000000e-01 : f32
    %284 = vector.broadcast %cst_103 : f32 to vector<8x128xf32>
    %285 = arith.addf %283, %284 : vector<8x128xf32>
    %286 = arith.mulf %275, %248 : vector<8x128xf32>
    %287 = arith.mulf %267, %277 : vector<8x128xf32>
    %288 = arith.addf %286, %287 : vector<8x128xf32>
    %289 = math.tanh %288 : vector<8x128xf32>
    %290 = arith.mulf %285, %289 : vector<8x128xf32>
    %291 = arith.index_cast %254 : i32 to index
    %c0_104 = arith.constant 0 : index
    %292 = vector.load %arg7[%291, %c0_104] : memref<64x128xf32, #tpu.memory_space<vmem>>, vector<8x128xf32>
    tpu.vector_store %arg7[%291, %c0_104], %290 {strides = array<i32>} : memref<64x128xf32, #tpu.memory_space<vmem>>, vector<8x128xf32>,
    %c7_i32 = arith.constant 7 : i32
    %c8_i32_105 = arith.constant 8 : i32
    %293 = arith.muli %c7_i32, %c8_i32_105 : i32
    %294 = tpu.assume_multiple %293, 8 : i32
    %295 = arith.index_cast %294 : i32 to index
    %c0_106 = arith.constant 0 : index
    %296 = vector.load %arg12[%295, %c0_106] : memref<64x512xf32, #tpu.memory_space<vmem>>, vector<8x512xf32>
    %297 = arith.truncf %290 : vector<8x128xf32> to vector<8x128xbf16>
    %cst_107 = arith.constant dense<0.000000e+00> : vector<8x512xf32>
    %298 = tpu.matmul %297, %10, %cst_107 {dimension_numbers = #tpu.dot_dimension_numbers<[1], [0], [0], [1], [0, 0, 1, 1], [], []>} : vector<8x128xbf16>, vector<128x512xbf16>, vector<8x512xf32> -> vector<8x512xf32>
    %299 = arith.addf %296, %298 : vector<8x512xf32>
    %300 = vector.extract_strided_slice %299 {offsets = [0, 0], sizes = [8, 128], strides = [1, 1]} : vector<8x512xf32> to vector<8x128xf32>
    %cst_108 = arith.constant 5.000000e-01 : f32
    %301 = vector.broadcast %cst_108 : f32 to vector<8x128xf32>
    %302 = arith.mulf %301, %300 : vector<8x128xf32>
    %303 = math.tanh %302 : vector<8x128xf32>
    %cst_109 = arith.constant 5.000000e-01 : f32
    %304 = vector.broadcast %cst_109 : f32 to vector<8x128xf32>
    %305 = arith.mulf %304, %303 : vector<8x128xf32>
    %cst_110 = arith.constant 5.000000e-01 : f32
    %306 = vector.broadcast %cst_110 : f32 to vector<8x128xf32>
    %307 = arith.addf %305, %306 : vector<8x128xf32>
    %308 = vector.extract_strided_slice %299 {offsets = [0, 128], sizes = [8, 128], strides = [1, 1]} : vector<8x512xf32> to vector<8x128xf32>
    %cst_111 = arith.constant 5.000000e-01 : f32
    %309 = vector.broadcast %cst_111 : f32 to vector<8x128xf32>
    %310 = arith.mulf %309, %308 : vector<8x128xf32>
    %311 = math.tanh %310 : vector<8x128xf32>
    %cst_112 = arith.constant 5.000000e-01 : f32
    %312 = vector.broadcast %cst_112 : f32 to vector<8x128xf32>
    %313 = arith.mulf %312, %311 : vector<8x128xf32>
    %cst_113 = arith.constant 5.000000e-01 : f32
    %314 = vector.broadcast %cst_113 : f32 to vector<8x128xf32>
    %315 = arith.addf %313, %314 : vector<8x128xf32>
    %316 = vector.extract_strided_slice %299 {offsets = [0, 256], sizes = [8, 128], strides = [1, 1]} : vector<8x512xf32> to vector<8x128xf32>
    %317 = math.tanh %316 : vector<8x128xf32>
    %318 = vector.extract_strided_slice %299 {offsets = [0, 384], sizes = [8, 128], strides = [1, 1]} : vector<8x512xf32> to vector<8x128xf32>
    %cst_114 = arith.constant 5.000000e-01 : f32
    %319 = vector.broadcast %cst_114 : f32 to vector<8x128xf32>
    %320 = arith.mulf %319, %318 : vector<8x128xf32>
    %321 = math.tanh %320 : vector<8x128xf32>
    %cst_115 = arith.constant 5.000000e-01 : f32
    %322 = vector.broadcast %cst_115 : f32 to vector<8x128xf32>
    %323 = arith.mulf %322, %321 : vector<8x128xf32>
    %cst_116 = arith.constant 5.000000e-01 : f32
    %324 = vector.broadcast %cst_116 : f32 to vector<8x128xf32>
    %325 = arith.addf %323, %324 : vector<8x128xf32>
    %326 = arith.mulf %315, %288 : vector<8x128xf32>
    %327 = arith.mulf %307, %317 : vector<8x128xf32>
    %328 = arith.addf %326, %327 : vector<8x128xf32>
    %329 = math.tanh %328 : vector<8x128xf32>
    %330 = arith.mulf %325, %329 : vector<8x128xf32>
    %331 = arith.index_cast %294 : i32 to index
    %c0_117 = arith.constant 0 : index
    %332 = vector.load %arg7[%331, %c0_117] : memref<64x128xf32, #tpu.memory_space<vmem>>, vector<8x128xf32>
    tpu.vector_store %arg7[%331, %c0_117], %330 {strides = array<i32>} : memref<64x128xf32, #tpu.memory_space<vmem>>, vector<8x128xf32>,
    %c8_i32_118 = arith.constant 8 : i32
    %c0_119 = arith.constant 0 : index
    %c0_120 = arith.constant 0 : index
    %333 = vector.load %arg10[%c0_119, %c0_120] : memref<8x128xf32, #tpu.memory_space<vmem>>, vector<8x128xf32>
    tpu.vector_store %arg10[%c0_119, %c0_120], %330 {strides = array<i32>} : memref<8x128xf32, #tpu.memory_space<vmem>>, vector<8x128xf32>,
    %c0_121 = arith.constant 0 : index
    %c0_122 = arith.constant 0 : index
    %334 = vector.load %arg11[%c0_121, %c0_122] : memref<8x128xf32, #tpu.memory_space<vmem>>, vector<8x128xf32>
    tpu.vector_store %arg11[%c0_121, %c0_122], %328 {strides = array<i32>} : memref<8x128xf32, #tpu.memory_space<vmem>>, vector<8x128xf32>,
    %c0_i32_123 = arith.constant 0 : i32
    %335 = arith.cmpi eq, %arg0, %c0_i32_123 : i32
    %336 = arith.extui %335 : i1 to i32
    %c0_i32_124 = arith.constant 0 : i32
    %337 = arith.cmpi ne, %336, %c0_i32_124 : i32
    scf.if %337 {
      %c0_125 = arith.constant 0 : index
      %c0_126 = arith.constant 0 : index
      %338 = vector.load %arg8[%c0_125, %c0_126] : memref<8x128xf32, #tpu.memory_space<vmem>>, vector<8x128xf32>
      tpu.vector_store %arg8[%c0_125, %c0_126], %330 {strides = array<i32>} : memref<8x128xf32, #tpu.memory_space<vmem>>, vector<8x128xf32>,
      %c0_127 = arith.constant 0 : index
      %c0_128 = arith.constant 0 : index
      %339 = vector.load %arg9[%c0_127, %c0_128] : memref<8x128xf32, #tpu.memory_space<vmem>>, vector<8x128xf32>
      tpu.vector_store %arg9[%c0_127, %c0_128], %328 {strides = array<i32>} : memref<8x128xf32, #tpu.memory_space<vmem>>, vector<8x128xf32>,
    } else {
    }
    return
  }
  func.func @transform_0(%arg0: i32) -> (i32, i32) {
    %c0_i32 = arith.constant 0 : i32
    %c0_i32_0 = arith.constant 0 : i32
    return %arg0, %c0_i32 : i32, i32
  }
  func.func @transform_1(%arg0: i32) -> (i32, i32) {
    %c0_i32 = arith.constant 0 : i32
    %c0_i32_0 = arith.constant 0 : i32
    %c0_i32_1 = arith.constant 0 : i32
    return %c0_i32, %c0_i32_0 : i32, i32
  }
  func.func @transform_2(%arg0: i32) -> (i32, i32) {
    %c0_i32 = arith.constant 0 : i32
    %c0_i32_0 = arith.constant 0 : i32
    %c0_i32_1 = arith.constant 0 : i32
    return %c0_i32, %c0_i32_0 : i32, i32
  }
  func.func @transform_3(%arg0: i32) -> (i32, i32) {
    %c0_i32 = arith.constant 0 : i32
    %c0_i32_0 = arith.constant 0 : i32
    %c0_i32_1 = arith.constant 0 : i32
    return %c0_i32, %c0_i32_0 : i32, i32
  }
  func.func @transform_4(%arg0: i32) -> (i32, i32) {
    %c0_i32 = arith.constant 0 : i32
    %c0_i32_0 = arith.constant 0 : i32
    %c0_i32_1 = arith.constant 0 : i32
    return %c0_i32, %c0_i32_0 : i32, i32
  }
  func.func @transform_5(%arg0: i32) -> (i32, i32) {
    %c0_i32 = arith.constant 0 : i32
    %c0_i32_0 = arith.constant 0 : i32
    %c0_i32_1 = arith.constant 0 : i32
    return %c0_i32, %c0_i32_0 : i32, i32
  }
  func.func @transform_6(%arg0: i32) -> (i32, i32) {
    %c0_i32 = arith.constant 0 : i32
    %c0_i32_0 = arith.constant 0 : i32
    return %arg0, %c0_i32 : i32, i32
  }
  func.func @transform_7(%arg0: i32) -> (i32, i32) {
    %c0_i32 = arith.constant 0 : i32
    %c0_i32_0 = arith.constant 0 : i32
    %c0_i32_1 = arith.constant 0 : i32
    return %c0_i32, %c0_i32_0 : i32, i32
  }
  func.func @transform_8(%arg0: i32) -> (i32, i32) {
    %c0_i32 = arith.constant 0 : i32
    %c0_i32_0 = arith.constant 0 : i32
    %c0_i32_1 = arith.constant 0 : i32
    return %c0_i32, %c0_i32_0 : i32, i32
  }
}

</mosaic_0001>

<llo_original>
// kernel: uni_lstm_forward.2
$region0: #{uni_lstm_forward.2}
  #allocation0 [shape = 'u32[]', space=smem, size = 0x4, offset = 0x4, fixed_abs, tag = 'smem constant byte address 0x4 - core index']
  #allocation1 [shape = 'u32[144,128]{1,0:T(1,128)}', space=vmem, size = 0x12000, scoped, tag = 'internal scratch']
  #allocation2 [shape = 'f32[8,128]{1,0:T(8,128)}', space=vmem, size = 0x1000, scoped, tag = 'scratch operand']
  #allocation3 [shape = 'f32[8,128]{1,0:T(8,128)}', space=vmem, size = 0x1000, scoped, tag = 'scratch operand']
  #allocation4 [shape = 'f32[64,512]{1,0:T(8,128)}', space=vmem, size = 0x20000, scoped, tag = 'scratch operand']
  %s0 = inlined_call_operand.vmem [shape: bf16[64,128], index: 0, kind: input, shape index: {}]
  %s1 = inlined_call_operand.hbm [shape: bf16[128,512], index: 1, kind: input, shape index: {}]
  %s2 = inlined_call_operand.hbm [shape: bf16[128,512], index: 2, kind: input, shape index: {}]
  %s3 = inlined_call_operand.vmem [shape: f32[1,512], index: 3, kind: input, shape index: {}]
  %s4 = inlined_call_operand.vmem [shape: f32[8,128], index: 4, kind: input, shape index: {}]
  %s5 = inlined_call_operand.vmem [shape: f32[8,128], index: 5, kind: input, shape index: {}]
  %s6 = inlined_call_operand.vmem [shape: bf16[64,128], index: 6, kind: output, shape index: {0}]
  %s7 = inlined_call_operand.vmem [shape: f32[8,128], index: 7, kind: output, shape index: {1}]
  %s8 = inlined_call_operand.vmem [shape: f32[8,128], index: 8, kind: output, shape index: {2}]
  %9 = xla_tuple %s6, %s7, %s8
  %s10 = sld [smem:[#allocation0]]
  $region66: #{uni_lstm_forward.2} parent=0
    _
  %s12 = ssub.s32 1, %s10
  %s13 = scalar_select 0, %s12, %s10
  $region1: #{uni_lstm_forward.2} parent=0
    #allocation5 [shape = 'u8[131072]{0}', space=vmem, size = 0x20000, scoped, tag = 'input window, operand 1, single buffered']
    #allocation6 [shape = 's32[1]{0}', space=sflag, size = 0x4, scoped, tag = 'scoped memory for uni_lstm_forward.2']
    #allocation7 [shape = 'u8[131072]{0}', space=vmem, size = 0x20000, scoped, tag = 'input window, operand 2, single buffered']
    #allocation8 [shape = 's32[1]{0}', space=sflag, size = 0x4, scoped, tag = 'scoped memory for uni_lstm_forward.2']
    %14 = vsyncpa [#allocation6], 0
    %15 = vsyncpa [#allocation8], 0
    // Predicated region
    $region2: #{uni_lstm_forward.2} parent=1 // pred_check
      _
    $region3: #{uni_lstm_forward.2} parent=1 // pred_check_branch
      %17 = sbr.rel (0) target = $region5
    $region4: #{uni_lstm_forward.2} parent=1 // pred_region
      _
    $region5: #{uni_lstm_forward.2} parent=1 // pred_fallthru
      _
    // Predicated region
    $region6: #{uni_lstm_forward.2} parent=1 // pred_check
      _
    $region7: #{uni_lstm_forward.2} parent=1 // pred_check_branch
      %19 = sbr.rel (0) target = $region9
    $region8: #{uni_lstm_forward.2} parent=1 // pred_region
      %s21 = ssub.s32 4096, 4096
      %22 = vsyncadd [#allocation6], %s21
      %s23 = sshll.u32 [#allocation5], 4
      %s24 = int_to_ptr.vmem [resolvable:$true] %s23
      %29 = dma.hbm_to_vmem [thread:$0]  %s1, 4096, %s24, [#allocation6], 256, 256, 16
    $region9: #{uni_lstm_forward.2} parent=1 // pred_fallthru
      _
    // Predicated region
    $region10: #{uni_lstm_forward.2} parent=1 // pred_check
      _
    $region11: #{uni_lstm_forward.2} parent=1 // pred_check_branch
      %31 = sbr.rel (0) target = $region13
    $region12: #{uni_lstm_forward.2} parent=1 // pred_region
      %s33 = ssub.s32 4096, 4096
      %34 = vsyncadd [#allocation8], %s33
      %s35 = sshll.u32 [#allocation7], 4
      %s36 = int_to_ptr.vmem [resolvable:$true] %s35
      %41 = dma.hbm_to_vmem [thread:$0]  %s2, 4096, %s36, [#allocation8], 256, 256, 16
    $region13: #{uni_lstm_forward.2} parent=1 // pred_fallthru
      _
    // Predicated region
    $region14: #{uni_lstm_forward.2} parent=1 // pred_check
      _
    $region15: #{uni_lstm_forward.2} parent=1 // pred_check_branch
      %43 = sbr.rel (0) target = $region17
    $region16: #{uni_lstm_forward.2} parent=1 // pred_region
      _
    $region17: #{uni_lstm_forward.2} parent=1 // pred_fallthru
      _
    // Predicated region
    $region18: #{uni_lstm_forward.2} parent=1 // pred_check
      _
    $region19: #{uni_lstm_forward.2} parent=1 // pred_check_branch
      %45 = sbr.rel (0) target = $region21
    $region20: #{uni_lstm_forward.2} parent=1 // pred_region
      _
    $region21: #{uni_lstm_forward.2} parent=1 // pred_fallthru
      _
    // Predicated region
    $region22: #{uni_lstm_forward.2} parent=1 // pred_check
      _
    $region23: #{uni_lstm_forward.2} parent=1 // pred_check_branch
      %47 = sbr.rel (0) target = $region25
    $region24: #{uni_lstm_forward.2} parent=1 // pred_region
      _
    $region25: #{uni_lstm_forward.2} parent=1 // pred_fallthru
      _
    // Predicated region
    $region26: #{uni_lstm_forward.2} parent=1 // pred_check
      _
    $region27: #{uni_lstm_forward.2} parent=1 // pred_check_branch
      %49 = sbr.rel (0) target = $region29
    $region28: #{uni_lstm_forward.2} parent=1 // pred_region
      %50 = dma.done [#allocation6], 4096
    $region29: #{uni_lstm_forward.2} parent=1 // pred_fallthru
      _
    // Predicated region
    $region30: #{uni_lstm_forward.2} parent=1 // pred_check
      _
    $region31: #{uni_lstm_forward.2} parent=1 // pred_check_branch
      %52 = sbr.rel (0) target = $region33
    $region32: #{uni_lstm_forward.2} parent=1 // pred_region
      %53 = dma.done [#allocation8], 4096
    $region33: #{uni_lstm_forward.2} parent=1 // pred_fallthru
      _
    %p55 = scmp.eq.s32.totalorder 0, 0
    // Predicated region
    $region34: #{uni_lstm_forward.2} parent=1 // pred_check
      %p56 = pneg %p55
    $region35: #{uni_lstm_forward.2} parent=1 // pred_check_branch
      %58 = sbr.rel (%p56) target = $region37
    $region36: #{uni_lstm_forward.2} parent=1 // pred_region
      %v59 = vld [vmem:[%s4] sm:$0xff]
      %60 = vst [vmem:[#allocation2] sm:$0xff] %v59
      %v61 = vld [vmem:[%s5] sm:$0xff]
      %62 = vst [vmem:[#allocation3] sm:$0xff] %v61
    $region37: #{uni_lstm_forward.2} parent=1 // pred_fallthru
      _
    %v63 = vld [vmem:[%s0] sm:$0xf]
    %v64 = vld [vmem:[%s0 + $0x4] sm:$0xf]
    %v65 = vld [vmem:[%s0 + $0x8] sm:$0xf]
    %v66 = vld [vmem:[%s0 + $0xc] sm:$0xf]
    %v67 = vld [vmem:[%s0 + $0x10] sm:$0xf]
    %v68 = vld [vmem:[%s0 + $0x14] sm:$0xf]
    %v69 = vld [vmem:[%s0 + $0x18] sm:$0xf]
    %v70 = vld [vmem:[%s0 + $0x1c] sm:$0xf]
    %v71 = vld [vmem:[#allocation5] sm:$0xff]
    %v72 = vld [vmem:[#allocation5 + $0x8] sm:$0xff]
    %v73 = vld [vmem:[#allocation5 + $0x10] sm:$0xff]
    %v74 = vld [vmem:[#allocation5 + $0x18] sm:$0xff]
    %v75 = vld [vmem:[#allocation5 + $0x20] sm:$0xff]
    %v76 = vld [vmem:[#allocation5 + $0x28] sm:$0xff]
    %v77 = vld [vmem:[#allocation5 + $0x30] sm:$0xff]
    %v78 = vld [vmem:[#allocation5 + $0x38] sm:$0xff]
    %v79 = vld [vmem:[#allocation5 + $0x40] sm:$0xff]
    %v80 = vld [vmem:[#allocation5 + $0x48] sm:$0xff]
    %v81 = vld [vmem:[#allocation5 + $0x50] sm:$0xff]
    %v82 = vld [vmem:[#allocation5 + $0x58] sm:$0xff]
    %v83 = vld [vmem:[#allocation5 + $0x60] sm:$0xff]
    %v84 = vld [vmem:[#allocation5 + $0x68] sm:$0xff]
    %v85 = vld [vmem:[#allocation5 + $0x70] sm:$0xff]
    %v86 = vld [vmem:[#allocation5 + $0x78] sm:$0xff]
    %v87 = vld [vmem:[#allocation5 + $0x80] sm:$0xff]
    %v88 = vld [vmem:[#allocation5 + $0x88] sm:$0xff]
    %v89 = vld [vmem:[#allocation5 + $0x90] sm:$0xff]
    %v90 = vld [vmem:[#allocation5 + $0x98] sm:$0xff]
    %v91 = vld [vmem:[#allocation5 + $0xa0] sm:$0xff]
    %v92 = vld [vmem:[#allocation5 + $0xa8] sm:$0xff]
    %v93 = vld [vmem:[#allocation5 + $0xb0] sm:$0xff]
    %v94 = vld [vmem:[#allocation5 + $0xb8] sm:$0xff]
    %v95 = vld [vmem:[#allocation5 + $0xc0] sm:$0xff]
    %v96 = vld [vmem:[#allocation5 + $0xc8] sm:$0xff]
    %v97 = vld [vmem:[#allocation5 + $0xd0] sm:$0xff]
    %v98 = vld [vmem:[#allocation5 + $0xd8] sm:$0xff]
    %v99 = vld [vmem:[#allocation5 + $0xe0] sm:$0xff]
    %v100 = vld [vmem:[#allocation5 + $0xe8] sm:$0xff]
    %v101 = vld [vmem:[#allocation5 + $0xf0] sm:$0xff]
    %v102 = vld [vmem:[#allocation5 + $0xf8] sm:$0xff]
    %v103 = vld [vmem:[%s3] sm:$0xf]
    %v105 = vlaneseq
    %v106 = vshrl.u32 %v105, 7
    %v107 = vsub.s32 0, %v106
    %v108 = vrot.slane %v103, %v107
    %v109 = vlaneseq
    %v110 = vshrl.u32 %v109, 7
    %v111 = vsub.s32 1, %v110
    %v112 = vrot.slane %v103, %v111
    %v113 = vlaneseq
    %v114 = vshrl.u32 %v113, 7
    %v115 = vsub.s32 2, %v114
    %v116 = vrot.slane %v103, %v115
    %v117 = vlaneseq
    %v118 = vshrl.u32 %v117, 7
    %v119 = vsub.s32 3, %v118
    %v120 = vrot.slane %v103, %v119
    %v133 = vunpack.c.l.b16 %v63
    %v134 = vunpack.c.l.b16 %v64
    %v135 = vunpack.c.l.b16 %v65
    %v136 = vunpack.c.l.b16 %v66
    %v137 = vunpack.c.l.b16 %v67
    %v138 = vunpack.c.l.b16 %v68
    %v139 = vunpack.c.l.b16 %v69
    %v140 = vunpack.c.l.b16 %v70
    %v141 = vpack.c.b16 %v134, %v133
    %v142 = vpack.c.b16 %v136, %v135
    %v143 = vpack.c.b16 %v138, %v137
    %v144 = vpack.c.b16 %v140, %v139
    %v181 = vunpack.c.l.b16 %v71
    %v182 = vunpack.c.h.b16 %v71
    %v183 = vunpack.c.l.b16 %v72
    %v184 = vunpack.c.h.b16 %v72
    %v185 = vunpack.c.l.b16 %v73
    %v186 = vunpack.c.h.b16 %v73
    %v187 = vunpack.c.l.b16 %v74
    %v188 = vunpack.c.h.b16 %v74
    %v189 = vunpack.c.l.b16 %v75
    %v190 = vunpack.c.h.b16 %v75
    %v191 = vunpack.c.l.b16 %v76
    %v192 = vunpack.c.h.b16 %v76
    %v193 = vunpack.c.l.b16 %v77
    %v194 = vunpack.c.h.b16 %v77
    %v195 = vunpack.c.l.b16 %v78
    %v196 = vunpack.c.h.b16 %v78
    %v197 = vunpack.c.l.b16 %v79
    %v198 = vunpack.c.h.b16 %v79
    %v199 = vunpack.c.l.b16 %v80
    %v200 = vunpack.c.h.b16 %v80
    %v201 = vunpack.c.l.b16 %v81
    %v202 = vunpack.c.h.b16 %v81
    %v203 = vunpack.c.l.b16 %v82
    %v204 = vunpack.c.h.b16 %v82
    %v205 = vunpack.c.l.b16 %v83
    %v206 = vunpack.c.h.b16 %v83
    %v207 = vunpack.c.l.b16 %v84
    %v208 = vunpack.c.h.b16 %v84
    %v209 = vunpack.c.l.b16 %v85
    %v210 = vunpack.c.h.b16 %v85
    %v211 = vunpack.c.l.b16 %v86
    %v212 = vunpack.c.h.b16 %v86
    %v213 = vunpack.c.l.b16 %v87
    %v214 = vunpack.c.h.b16 %v87
    %v215 = vunpack.c.l.b16 %v88
    %v216 = vunpack.c.h.b16 %v88
    %v217 = vunpack.c.l.b16 %v89
    %v218 = vunpack.c.h.b16 %v89
    %v219 = vunpack.c.l.b16 %v90
    %v220 = vunpack.c.h.b16 %v90
    %v221 = vunpack.c.l.b16 %v91
    %v222 = vunpack.c.h.b16 %v91
    %v223 = vunpack.c.l.b16 %v92
    %v224 = vunpack.c.h.b16 %v92
    %v225 = vunpack.c.l.b16 %v93
    %v226 = vunpack.c.h.b16 %v93
    %v227 = vunpack.c.l.b16 %v94
    %v228 = vunpack.c.h.b16 %v94
    %v229 = vunpack.c.l.b16 %v95
    %v230 = vunpack.c.h.b16 %v95
    %v231 = vunpack.c.l.b16 %v96
    %v232 = vunpack.c.h.b16 %v96
    %v233 = vunpack.c.l.b16 %v97
    %v234 = vunpack.c.h.b16 %v97
    %v235 = vunpack.c.l.b16 %v98
    %v236 = vunpack.c.h.b16 %v98
    %v237 = vunpack.c.l.b16 %v99
    %v238 = vunpack.c.h.b16 %v99
    %v239 = vunpack.c.l.b16 %v100
    %v240 = vunpack.c.h.b16 %v100
    %v241 = vunpack.c.l.b16 %v101
    %v242 = vunpack.c.h.b16 %v101
    %v243 = vunpack.c.l.b16 %v102
    %v244 = vunpack.c.h.b16 %v102
    %v245 = vpack.c.b16 %v185, %v181
    %v246 = vpack.c.b16 %v186, %v182
    %v247 = vpack.c.b16 %v187, %v183
    %v248 = vpack.c.b16 %v188, %v184
    %v249 = vpack.c.b16 %v193, %v189
    %v250 = vpack.c.b16 %v194, %v190
    %v251 = vpack.c.b16 %v195, %v191
    %v252 = vpack.c.b16 %v196, %v192
    %v253 = vpack.c.b16 %v201, %v197
    %v254 = vpack.c.b16 %v202, %v198
    %v255 = vpack.c.b16 %v203, %v199
    %v256 = vpack.c.b16 %v204, %v200
    %v257 = vpack.c.b16 %v209, %v205
    %v258 = vpack.c.b16 %v210, %v206
    %v259 = vpack.c.b16 %v211, %v207
    %v260 = vpack.c.b16 %v212, %v208
    %v261 = vpack.c.b16 %v217, %v213
    %v262 = vpack.c.b16 %v218, %v214
    %v263 = vpack.c.b16 %v219, %v215
    %v264 = vpack.c.b16 %v220, %v216
    %v265 = vpack.c.b16 %v225, %v221
    %v266 = vpack.c.b16 %v226, %v222
    %v267 = vpack.c.b16 %v227, %v223
    %v268 = vpack.c.b16 %v228, %v224
    %v269 = vpack.c.b16 %v233, %v229
    %v270 = vpack.c.b16 %v234, %v230
    %v271 = vpack.c.b16 %v235, %v231
    %v272 = vpack.c.b16 %v236, %v232
    %v273 = vpack.c.b16 %v241, %v237
    %v274 = vpack.c.b16 %v242, %v238
    %v275 = vpack.c.b16 %v243, %v239
    %v276 = vpack.c.b16 %v244, %v240
    %309 = vmatprep.subr.bf16.mxu0 %v274
    %310 = vmatpush1.bf16.msra.mxu0 %v273
    %311 = vmatprep.subr.bf16.mxu0 %v270
    %312 = vmatpush1.bf16.msra.mxu0 %v269
    %313 = vmatprep.subr.bf16.mxu0 %v266
    %314 = vmatpush1.bf16.msra.mxu0 %v265
    %315 = vmatprep.subr.bf16.mxu0 %v262
    %316 = vmatpush1.bf16.msra.mxu0 %v261
    %317 = vmatprep.subr.bf16.mxu0 %v258
    %318 = vmatpush1.bf16.msra.mxu0 %v257
    %319 = vmatprep.subr.bf16.mxu0 %v254
    %320 = vmatpush1.bf16.msra.mxu0 %v253
    %321 = vmatprep.subr.bf16.mxu0 %v250
    %322 = vmatpush1.bf16.msra.mxu0 %v249
    %323 = vmatprep.subr.bf16.mxu0 %v246
    %324 = vmatpush1.bf16.msra.mxu0 %v245
    %325 = vmatprep.subr.bf16.mxu0 0
    %326 = vmatpush2.bf16.msra.mxu0 0
    %327 = vmatprep.subr.bf16.mxu0 0
    %328 = vmatpush2.bf16.msra.mxu0 0
    %329 = vmatprep.subr.bf16.mxu0 0
    %330 = vmatpush2.bf16.msra.mxu0 0
    %331 = vmatprep.subr.bf16.mxu0 0
    %332 = vmatpush2.bf16.msra.mxu0 0
    %333 = vmatprep.subr.bf16.mxu0 0
    %334 = vmatpush2.bf16.msra.mxu0 0
    %335 = vmatprep.subr.bf16.mxu0 0
    %336 = vmatpush2.bf16.msra.mxu0 0
    %337 = vmatprep.subr.bf16.mxu0 0
    %338 = vmatpush2.bf16.msra.mxu0 0
    %339 = vmatprep.subr.bf16.mxu0 0
    %340 = vmatpush2.bf16.msra.mxu0 0
    %341 = vmatprep.mubr.bf16.mxu0 0
    %342 = vmatmul.mubr.bf16.gmra.mxu0 %v141
    %v343 = vpop.f32.mrf.mxu0
    %v344 = vadd.f32 %v108, %v343
    %v345 = vpop.f32.mrf.mxu0
    %v346 = vadd.f32 %v112, %v345
    %v347 = vpop.f32.mrf.mxu0
    %v348 = vadd.f32 %v108, %v347
    %v349 = vpop.f32.mrf.mxu0
    %v350 = vadd.f32 %v112, %v349
    %351 = vmatprep.mubr.bf16.mxu0 0
    %352 = vmatmul.mubr.bf16.gmra.mxu0 %v142
    %v353 = vpop.f32.mrf.mxu0
    %v354 = vadd.f32 %v108, %v353
    %v355 = vpop.f32.mrf.mxu0
    %v356 = vadd.f32 %v112, %v355
    %v357 = vpop.f32.mrf.mxu0
    %v358 = vadd.f32 %v108, %v357
    %v359 = vpop.f32.mrf.mxu0
    %v360 = vadd.f32 %v112, %v359
    %361 = vmatprep.mubr.bf16.mxu0 0
    %362 = vmatmul.mubr.bf16.gmra.mxu0 %v143
    %v363 = vpop.f32.mrf.mxu0
    %v364 = vadd.f32 %v108, %v363
    %v365 = vpop.f32.mrf.mxu0
    %v366 = vadd.f32 %v112, %v365
    %v367 = vpop.f32.mrf.mxu0
    %v368 = vadd.f32 %v108, %v367
    %v369 = vpop.f32.mrf.mxu0
    %v370 = vadd.f32 %v112, %v369
    %371 = vmatprep.mubr.bf16.mxu0 0
    %372 = vmatmul.mubr.bf16.gmra.mxu0 %v144
    %v373 = vpop.f32.mrf.mxu0
    %v374 = vadd.f32 %v108, %v373
    %v375 = vpop.f32.mrf.mxu0
    %v376 = vadd.f32 %v112, %v375
    %v377 = vpop.f32.mrf.mxu0
    %v378 = vadd.f32 %v108, %v377
    %v379 = vpop.f32.mrf.mxu0
    %v380 = vadd.f32 %v112, %v379
    %381 = vdwg.mxu0
    %382 = vmatprep.subr.bf16.mxu0 %v276
    %383 = vmatpush1.bf16.msra.mxu0 %v275
    %384 = vmatprep.subr.bf16.mxu0 %v272
    %385 = vmatpush1.bf16.msra.mxu0 %v271
    %386 = vmatprep.subr.bf16.mxu0 %v268
    %387 = vmatpush1.bf16.msra.mxu0 %v267
    %388 = vmatprep.subr.bf16.mxu0 %v264
    %389 = vmatpush1.bf16.msra.mxu0 %v263
    %390 = vmatprep.subr.bf16.mxu0 %v260
    %391 = vmatpush1.bf16.msra.mxu0 %v259
    %392 = vmatprep.subr.bf16.mxu0 %v256
    %393 = vmatpush1.bf16.msra.mxu0 %v255
    %394 = vmatprep.subr.bf16.mxu0 %v252
    %395 = vmatpush1.bf16.msra.mxu0 %v251
    %396 = vmatprep.subr.bf16.mxu0 %v248
    %397 = vmatpush1.bf16.msra.mxu0 %v247
    %398 = vmatprep.subr.bf16.mxu0 0
    %399 = vmatpush2.bf16.msra.mxu0 0
    %400 = vmatprep.subr.bf16.mxu0 0
    %401 = vmatpush2.bf16.msra.mxu0 0
    %402 = vmatprep.subr.bf16.mxu0 0
    %403 = vmatpush2.bf16.msra.mxu0 0
    %404 = vmatprep.subr.bf16.mxu0 0
    %405 = vmatpush2.bf16.msra.mxu0 0
    %406 = vmatprep.subr.bf16.mxu0 0
    %407 = vmatpush2.bf16.msra.mxu0 0
    %408 = vmatprep.subr.bf16.mxu0 0
    %409 = vmatpush2.bf16.msra.mxu0 0
    %410 = vmatprep.subr.bf16.mxu0 0
    %411 = vmatpush2.bf16.msra.mxu0 0
    %412 = vmatprep.subr.bf16.mxu0 0
    %413 = vmatpush2.bf16.msra.mxu0 0
    %414 = vmatprep.mubr.bf16.mxu0 0
    %415 = vmatmul.mubr.bf16.gmra.mxu0 %v141
    %v416 = vpop.f32.mrf.mxu0
    %v417 = vadd.f32 %v116, %v416
    %v418 = vpop.f32.mrf.mxu0
    %v419 = vadd.f32 %v120, %v418
    %v420 = vpop.f32.mrf.mxu0
    %v421 = vadd.f32 %v116, %v420
    %v422 = vpop.f32.mrf.mxu0
    %v423 = vadd.f32 %v120, %v422
    %424 = vmatprep.mubr.bf16.mxu0 0
    %425 = vmatmul.mubr.bf16.gmra.mxu0 %v142
    %v426 = vpop.f32.mrf.mxu0
    %v427 = vadd.f32 %v116, %v426
    %v428 = vpop.f32.mrf.mxu0
    %v429 = vadd.f32 %v120, %v428
    %v430 = vpop.f32.mrf.mxu0
    %v431 = vadd.f32 %v116, %v430
    %v432 = vpop.f32.mrf.mxu0
    %v433 = vadd.f32 %v120, %v432
    %434 = vmatprep.mubr.bf16.mxu0 0
    %435 = vmatmul.mubr.bf16.gmra.mxu0 %v143
    %v436 = vpop.f32.mrf.mxu0
    %v437 = vadd.f32 %v116, %v436
    %v438 = vpop.f32.mrf.mxu0
    %v439 = vadd.f32 %v120, %v438
    %v440 = vpop.f32.mrf.mxu0
    %v441 = vadd.f32 %v116, %v440
    %v442 = vpop.f32.mrf.mxu0
    %v443 = vadd.f32 %v120, %v442
    %444 = vmatprep.mubr.bf16.mxu0 0
    %445 = vmatmul.mubr.bf16.gmra.mxu0 %v144
    %v446 = vpop.f32.mrf.mxu0
    %v447 = vadd.f32 %v116, %v446
    %v448 = vpop.f32.mrf.mxu0
    %v449 = vadd.f32 %v120, %v448
    %v450 = vpop.f32.mrf.mxu0
    %v451 = vadd.f32 %v116, %v450
    %v452 = vpop.f32.mrf.mxu0
    %v453 = vadd.f32 %v120, %v452
    %454 = vdwg.mxu0
    %455 = vst [vmem:[#allocation4] sm:$0xff] %v344
    %456 = vst [vmem:[#allocation4 + $0x8] sm:$0xff] %v346
    %457 = vst [vmem:[#allocation4 + $0x10] sm:$0xff] %v417
    %458 = vst [vmem:[#allocation4 + $0x18] sm:$0xff] %v419
    %459 = vst [vmem:[#allocation4 + $0x20] sm:$0xff] %v348
    %460 = vst [vmem:[#allocation4 + $0x28] sm:$0xff] %v350
    %461 = vst [vmem:[#allocation4 + $0x30] sm:$0xff] %v421
    %462 = vst [vmem:[#allocation4 + $0x38] sm:$0xff] %v423
    %463 = vst [vmem:[#allocation4 + $0x40] sm:$0xff] %v354
    %464 = vst [vmem:[#allocation4 + $0x48] sm:$0xff] %v356
    %465 = vst [vmem:[#allocation4 + $0x50] sm:$0xff] %v427
    %466 = vst [vmem:[#allocation4 + $0x58] sm:$0xff] %v429
    %467 = vst [vmem:[#allocation4 + $0x60] sm:$0xff] %v358
    %468 = vst [vmem:[#allocation4 + $0x68] sm:$0xff] %v360
    %469 = vst [vmem:[#allocation4 + $0x70] sm:$0xff] %v431
    %470 = vst [vmem:[#allocation4 + $0x78] sm:$0xff] %v433
    %471 = vst [vmem:[#allocation4 + $0x80] sm:$0xff] %v364
    %472 = vst [vmem:[#allocation4 + $0x88] sm:$0xff] %v366
    %473 = vst [vmem:[#allocation4 + $0x90] sm:$0xff] %v437
    %474 = vst [vmem:[#allocation4 + $0x98] sm:$0xff] %v439
    %475 = vst [vmem:[#allocation4 + $0xa0] sm:$0xff] %v368
    %476 = vst [vmem:[#allocation4 + $0xa8] sm:$0xff] %v370
    %477 = vst [vmem:[#allocation4 + $0xb0] sm:$0xff] %v441
    %478 = vst [vmem:[#allocation4 + $0xb8] sm:$0xff] %v443
    %479 = vst [vmem:[#allocation4 + $0xc0] sm:$0xff] %v374
    %480 = vst [vmem:[#allocation4 + $0xc8] sm:$0xff] %v376
    %481 = vst [vmem:[#allocation4 + $0xd0] sm:$0xff] %v447
    %482 = vst [vmem:[#allocation4 + $0xd8] sm:$0xff] %v449
    %483 = vst [vmem:[#allocation4 + $0xe0] sm:$0xff] %v378
    %484 = vst [vmem:[#allocation4 + $0xe8] sm:$0xff] %v380
    %485 = vst [vmem:[#allocation4 + $0xf0] sm:$0xff] %v451
    %486 = vst [vmem:[#allocation4 + $0xf8] sm:$0xff] %v453
    %v487 = vld [vmem:[#allocation7] sm:$0xff]
    %v488 = vld [vmem:[#allocation7 + $0x8] sm:$0xff]
    %v489 = vld [vmem:[#allocation7 + $0x10] sm:$0xff]
    %v490 = vld [vmem:[#allocation7 + $0x18] sm:$0xff]
    %v491 = vld [vmem:[#allocation7 + $0x20] sm:$0xff]
    %v492 = vld [vmem:[#allocation7 + $0x28] sm:$0xff]
    %v493 = vld [vmem:[#allocation7 + $0x30] sm:$0xff]
    %v494 = vld [vmem:[#allocation7 + $0x38] sm:$0xff]
    %v495 = vld [vmem:[#allocation7 + $0x40] sm:$0xff]
    %v496 = vld [vmem:[#allocation7 + $0x48] sm:$0xff]
    %v497 = vld [vmem:[#allocation7 + $0x50] sm:$0xff]
    %v498 = vld [vmem:[#allocation7 + $0x58] sm:$0xff]
    %v499 = vld [vmem:[#allocation7 + $0x60] sm:$0xff]
    %v500 = vld [vmem:[#allocation7 + $0x68] sm:$0xff]
    %v501 = vld [vmem:[#allocation7 + $0x70] sm:$0xff]
    %v502 = vld [vmem:[#allocation7 + $0x78] sm:$0xff]
    %v503 = vld [vmem:[#allocation7 + $0x80] sm:$0xff]
    %v504 = vld [vmem:[#allocation7 + $0x88] sm:$0xff]
    %v505 = vld [vmem:[#allocation7 + $0x90] sm:$0xff]
    %v506 = vld [vmem:[#allocation7 + $0x98] sm:$0xff]
    %v507 = vld [vmem:[#allocation7 + $0xa0] sm:$0xff]
    %v508 = vld [vmem:[#allocation7 + $0xa8] sm:$0xff]
    %v509 = vld [vmem:[#allocation7 + $0xb0] sm:$0xff]
    %v510 = vld [vmem:[#allocation7 + $0xb8] sm:$0xff]
    %v511 = vld [vmem:[#allocation7 + $0xc0] sm:$0xff]
    %v512 = vld [vmem:[#allocation7 + $0xc8] sm:$0xff]
    %v513 = vld [vmem:[#allocation7 + $0xd0] sm:$0xff]
    %v514 = vld [vmem:[#allocation7 + $0xd8] sm:$0xff]
    %v515 = vld [vmem:[#allocation7 + $0xe0] sm:$0xff]
    %v516 = vld [vmem:[#allocation7 + $0xe8] sm:$0xff]
    %v517 = vld [vmem:[#allocation7 + $0xf0] sm:$0xff]
    %v518 = vld [vmem:[#allocation7 + $0xf8] sm:$0xff]
    %v519 = vld [vmem:[#allocation2] sm:$0xff]
    %v520 = vld [vmem:[#allocation3] sm:$0xff]
    %s521 = smul.u32 0, 4
    %s522 = smul.addr %s521, 8
    %s523 = scalar_lea.vmem [#allocation4], %s522
    %v524 = vld [vmem:[%s523] sm:$0xff]
    %v525 = vld [vmem:[%s523 + $0x8] sm:$0xff]
    %v526 = vld [vmem:[%s523 + $0x10] sm:$0xff]
    %v527 = vld [vmem:[%s523 + $0x18] sm:$0xff]
    %v528 = vpack.c.bf16 %v519, %v519
    %v561 = vunpack.c.l.b16 %v487
    %v562 = vunpack.c.h.b16 %v487
    %v563 = vunpack.c.l.b16 %v488
    %v564 = vunpack.c.h.b16 %v488
    %v565 = vunpack.c.l.b16 %v489
    %v566 = vunpack.c.h.b16 %v489
    %v567 = vunpack.c.l.b16 %v490
    %v568 = vunpack.c.h.b16 %v490
    %v569 = vunpack.c.l.b16 %v491
    %v570 = vunpack.c.h.b16 %v491
    %v571 = vunpack.c.l.b16 %v492
    %v572 = vunpack.c.h.b16 %v492
    %v573 = vunpack.c.l.b16 %v493
    %v574 = vunpack.c.h.b16 %v493
    %v575 = vunpack.c.l.b16 %v494
    %v576 = vunpack.c.h.b16 %v494
    %v577 = vunpack.c.l.b16 %v495
    %v578 = vunpack.c.h.b16 %v495
    %v579 = vunpack.c.l.b16 %v496
    %v580 = vunpack.c.h.b16 %v496
    %v581 = vunpack.c.l.b16 %v497
    %v582 = vunpack.c.h.b16 %v497
    %v583 = vunpack.c.l.b16 %v498
    %v584 = vunpack.c.h.b16 %v498
    %v585 = vunpack.c.l.b16 %v499
    %v586 = vunpack.c.h.b16 %v499
    %v587 = vunpack.c.l.b16 %v500
    %v588 = vunpack.c.h.b16 %v500
    %v589 = vunpack.c.l.b16 %v501
    %v590 = vunpack.c.h.b16 %v501
    %v591 = vunpack.c.l.b16 %v502
    %v592 = vunpack.c.h.b16 %v502
    %v593 = vunpack.c.l.b16 %v503
    %v594 = vunpack.c.h.b16 %v503
    %v595 = vunpack.c.l.b16 %v504
    %v596 = vunpack.c.h.b16 %v504
    %v597 = vunpack.c.l.b16 %v505
    %v598 = vunpack.c.h.b16 %v505
    %v599 = vunpack.c.l.b16 %v506
    %v600 = vunpack.c.h.b16 %v506
    %v601 = vunpack.c.l.b16 %v507
    %v602 = vunpack.c.h.b16 %v507
    %v603 = vunpack.c.l.b16 %v508
    %v604 = vunpack.c.h.b16 %v508
    %v605 = vunpack.c.l.b16 %v509
    %v606 = vunpack.c.h.b16 %v509
    %v607 = vunpack.c.l.b16 %v510
    %v608 = vunpack.c.h.b16 %v510
    %v609 = vunpack.c.l.b16 %v511
    %v610 = vunpack.c.h.b16 %v511
    %v611 = vunpack.c.l.b16 %v512
    %v612 = vunpack.c.h.b16 %v512
    %v613 = vunpack.c.l.b16 %v513
    %v614 = vunpack.c.h.b16 %v513
    %v615 = vunpack.c.l.b16 %v514
    %v616 = vunpack.c.h.b16 %v514
    %v617 = vunpack.c.l.b16 %v515
    %v618 = vunpack.c.h.b16 %v515
    %v619 = vunpack.c.l.b16 %v516
    %v620 = vunpack.c.h.b16 %v516
    %v621 = vunpack.c.l.b16 %v517
    %v622 = vunpack.c.h.b16 %v517
    %v623 = vunpack.c.l.b16 %v518
    %v624 = vunpack.c.h.b16 %v518
    %v625 = vpack.c.b16 %v565, %v561
    %v626 = vpack.c.b16 %v566, %v562
    %v627 = vpack.c.b16 %v567, %v563
    %v628 = vpack.c.b16 %v568, %v564
    %v629 = vpack.c.b16 %v573, %v569
    %v630 = vpack.c.b16 %v574, %v570
    %v631 = vpack.c.b16 %v575, %v571
    %v632 = vpack.c.b16 %v576, %v572
    %v633 = vpack.c.b16 %v581, %v577
    %v634 = vpack.c.b16 %v582, %v578
    %v635 = vpack.c.b16 %v583, %v579
    %v636 = vpack.c.b16 %v584, %v580
    %v637 = vpack.c.b16 %v589, %v585
    %v638 = vpack.c.b16 %v590, %v586
    %v639 = vpack.c.b16 %v591, %v587
    %v640 = vpack.c.b16 %v592, %v588
    %v641 = vpack.c.b16 %v597, %v593
    %v642 = vpack.c.b16 %v598, %v594
    %v643 = vpack.c.b16 %v599, %v595
    %v644 = vpack.c.b16 %v600, %v596
    %v645 = vpack.c.b16 %v605, %v601
    %v646 = vpack.c.b16 %v606, %v602
    %v647 = vpack.c.b16 %v607, %v603
    %v648 = vpack.c.b16 %v608, %v604
    %v649 = vpack.c.b16 %v613, %v609
    %v650 = vpack.c.b16 %v614, %v610
    %v651 = vpack.c.b16 %v615, %v611
    %v652 = vpack.c.b16 %v616, %v612
    %v653 = vpack.c.b16 %v621, %v617
    %v654 = vpack.c.b16 %v622, %v618
    %v655 = vpack.c.b16 %v623, %v619
    %v656 = vpack.c.b16 %v624, %v620
    %689 = vmatprep.subr.bf16.mxu0 %v654
    %690 = vmatpush1.bf16.msra.mxu0 %v653
    %691 = vmatprep.subr.bf16.mxu0 %v650
    %692 = vmatpush1.bf16.msra.mxu0 %v649
    %693 = vmatprep.subr.bf16.mxu0 %v646
    %694 = vmatpush1.bf16.msra.mxu0 %v645
    %695 = vmatprep.subr.bf16.mxu0 %v642
    %696 = vmatpush1.bf16.msra.mxu0 %v641
    %697 = vmatprep.subr.bf16.mxu0 %v638
    %698 = vmatpush1.bf16.msra.mxu0 %v637
    %699 = vmatprep.subr.bf16.mxu0 %v634
    %700 = vmatpush1.bf16.msra.mxu0 %v633
    %701 = vmatprep.subr.bf16.mxu0 %v630
    %702 = vmatpush1.bf16.msra.mxu0 %v629
    %703 = vmatprep.subr.bf16.mxu0 %v626
    %704 = vmatpush1.bf16.msra.mxu0 %v625
    %705 = vmatprep.subr.bf16.mxu0 0
    %706 = vmatpush2.bf16.msra.mxu0 0
    %707 = vmatprep.subr.bf16.mxu0 0
    %708 = vmatpush2.bf16.msra.mxu0 0
    %709 = vmatprep.subr.bf16.mxu0 0
    %710 = vmatpush2.bf16.msra.mxu0 0
    %711 = vmatprep.subr.bf16.mxu0 0
    %712 = vmatpush2.bf16.msra.mxu0 0
    %713 = vmatprep.subr.bf16.mxu0 0
    %714 = vmatpush2.bf16.msra.mxu0 0
    %715 = vmatprep.subr.bf16.mxu0 0
    %716 = vmatpush2.bf16.msra.mxu0 0
    %717 = vmatprep.subr.bf16.mxu0 0
    %718 = vmatpush2.bf16.msra.mxu0 0
    %719 = vmatprep.subr.bf16.mxu0 0
    %720 = vmatpush2.bf16.msra.mxu0 0
    %721 = vmatprep.mubr.bf16.mxu0 0
    %722 = vmatmul.mubr.bf16.gmra.mxu0 %v528
    %v723 = vpop.f32.mrf.mxu0
    %v724 = vadd.f32 0.0, %v723
    %v725 = vpop.f32.mrf.mxu0
    %v726 = vadd.f32 0.0, %v725
    %v727 = vpop.f32.mrf.mxu0
    %v728 = vpop.f32.mrf.mxu0
    %729 = vdwg.mxu0
    %730 = vmatprep.subr.bf16.mxu0 %v656
    %731 = vmatpush1.bf16.msra.mxu0 %v655
    %732 = vmatprep.subr.bf16.mxu0 %v652
    %733 = vmatpush1.bf16.msra.mxu0 %v651
    %734 = vmatprep.subr.bf16.mxu0 %v648
    %735 = vmatpush1.bf16.msra.mxu0 %v647
    %736 = vmatprep.subr.bf16.mxu0 %v644
    %737 = vmatpush1.bf16.msra.mxu0 %v643
    %738 = vmatprep.subr.bf16.mxu0 %v640
    %739 = vmatpush1.bf16.msra.mxu0 %v639
    %740 = vmatprep.subr.bf16.mxu0 %v636
    %741 = vmatpush1.bf16.msra.mxu0 %v635
    %742 = vmatprep.subr.bf16.mxu0 %v632
    %743 = vmatpush1.bf16.msra.mxu0 %v631
    %744 = vmatprep.subr.bf16.mxu0 %v628
    %745 = vmatpush1.bf16.msra.mxu0 %v627
    %746 = vmatprep.subr.bf16.mxu0 0
    %747 = vmatpush2.bf16.msra.mxu0 0
    %748 = vmatprep.subr.bf16.mxu0 0
    %749 = vmatpush2.bf16.msra.mxu0 0
    %750 = vmatprep.subr.bf16.mxu0 0
    %751 = vmatpush2.bf16.msra.mxu0 0
    %752 = vmatprep.subr.bf16.mxu0 0
    %753 = vmatpush2.bf16.msra.mxu0 0
    %754 = vmatprep.subr.bf16.mxu0 0
    %755 = vmatpush2.bf16.msra.mxu0 0
    %756 = vmatprep.subr.bf16.mxu0 0
    %757 = vmatpush2.bf16.msra.mxu0 0
    %758 = vmatprep.subr.bf16.mxu0 0
    %759 = vmatpush2.bf16.msra.mxu0 0
    %760 = vmatprep.subr.bf16.mxu0 0
    %761 = vmatpush2.bf16.msra.mxu0 0
    %762 = vmatprep.mubr.bf16.mxu0 0
    %763 = vmatmul.mubr.bf16.gmra.mxu0 %v528
    %v764 = vpop.f32.mrf.mxu0
    %v765 = vadd.f32 0.0, %v764
    %v766 = vpop.f32.mrf.mxu0
    %v767 = vadd.f32 0.0, %v766
    %v768 = vpop.f32.mrf.mxu0
    %v769 = vpop.f32.mrf.mxu0
    %770 = vdwg.mxu0
    %v771 = vadd.f32 %v524, %v724
    %v772 = vadd.f32 %v525, %v726
    %v773 = vadd.f32 %v526, %v765
    %v774 = vadd.f32 %v527, %v767
    %v775 = vmul.f32 %v771, 0.5
    %v776 = vtanh.pop %v775
    %v777 = vmul.f32 %v776, 0.5
    %v778 = vadd.f32 %v777, 0.5
    %v779 = vmul.f32 %v772, 0.5
    %v780 = vtanh.pop %v779
    %v781 = vmul.f32 %v780, 0.5
    %v782 = vadd.f32 %v781, 0.5
    %v783 = vtanh.pop %v773
    %v784 = vmul.f32 %v774, 0.5
    %v785 = vtanh.pop %v784
    %v786 = vmul.f32 %v785, 0.5
    %v787 = vadd.f32 %v786, 0.5
    %v788 = vmul.f32 %v782, %v520
    %v789 = vmul.f32 %v778, %v783
    %v790 = vadd.f32 %v788, %v789
    %v791 = vtanh.pop %v790
    %v792 = vmul.f32 %v787, %v791
    %v793 = vpack.c.bf16 %v792, %v792
    %794 = vst [vmem:[%s6] sm:$0xf] %v793
    %s795 = smul.u32 1, 4
    %s796 = smul.addr %s795, 8
    %s797 = scalar_lea.vmem [#allocation4], %s796
    %v798 = vld [vmem:[%s797] sm:$0xff]
    %v799 = vld [vmem:[%s797 + $0x8] sm:$0xff]
    %v800 = vld [vmem:[%s797 + $0x10] sm:$0xff]
    %v801 = vld [vmem:[%s797 + $0x18] sm:$0xff]
    %802 = vmatprep.subr.bf16.mxu0 %v654
    %803 = vmatpush1.bf16.msra.mxu0 %v653
    %804 = vmatprep.subr.bf16.mxu0 %v650
    %805 = vmatpush1.bf16.msra.mxu0 %v649
    %806 = vmatprep.subr.bf16.mxu0 %v646
    %807 = vmatpush1.bf16.msra.mxu0 %v645
    %808 = vmatprep.subr.bf16.mxu0 %v642
    %809 = vmatpush1.bf16.msra.mxu0 %v641
    %810 = vmatprep.subr.bf16.mxu0 %v638
    %811 = vmatpush1.bf16.msra.mxu0 %v637
    %812 = vmatprep.subr.bf16.mxu0 %v634
    %813 = vmatpush1.bf16.msra.mxu0 %v633
    %814 = vmatprep.subr.bf16.mxu0 %v630
    %815 = vmatpush1.bf16.msra.mxu0 %v629
    %816 = vmatprep.subr.bf16.mxu0 %v626
    %817 = vmatpush1.bf16.msra.mxu0 %v625
    %818 = vmatprep.subr.bf16.mxu0 0
    %819 = vmatpush2.bf16.msra.mxu0 0
    %820 = vmatprep.subr.bf16.mxu0 0
    %821 = vmatpush2.bf16.msra.mxu0 0
    %822 = vmatprep.subr.bf16.mxu0 0
    %823 = vmatpush2.bf16.msra.mxu0 0
    %824 = vmatprep.subr.bf16.mxu0 0
    %825 = vmatpush2.bf16.msra.mxu0 0
    %826 = vmatprep.subr.bf16.mxu0 0
    %827 = vmatpush2.bf16.msra.mxu0 0
    %828 = vmatprep.subr.bf16.mxu0 0
    %829 = vmatpush2.bf16.msra.mxu0 0
    %830 = vmatprep.subr.bf16.mxu0 0
    %831 = vmatpush2.bf16.msra.mxu0 0
    %832 = vmatprep.subr.bf16.mxu0 0
    %833 = vmatpush2.bf16.msra.mxu0 0
    %834 = vmatprep.mubr.bf16.mxu0 0
    %835 = vmatmul.mubr.bf16.gmra.mxu0 %v793
    %v836 = vpop.f32.mrf.mxu0
    %v837 = vadd.f32 0.0, %v836
    %v838 = vpop.f32.mrf.mxu0
    %v839 = vadd.f32 0.0, %v838
    %v840 = vpop.f32.mrf.mxu0
    %v841 = vpop.f32.mrf.mxu0
    %842 = vdwg.mxu0
    %843 = vmatprep.subr.bf16.mxu0 %v656
    %844 = vmatpush1.bf16.msra.mxu0 %v655
    %845 = vmatprep.subr.bf16.mxu0 %v652
    %846 = vmatpush1.bf16.msra.mxu0 %v651
    %847 = vmatprep.subr.bf16.mxu0 %v648
    %848 = vmatpush1.bf16.msra.mxu0 %v647
    %849 = vmatprep.subr.bf16.mxu0 %v644
    %850 = vmatpush1.bf16.msra.mxu0 %v643
    %851 = vmatprep.subr.bf16.mxu0 %v640
    %852 = vmatpush1.bf16.msra.mxu0 %v639
    %853 = vmatprep.subr.bf16.mxu0 %v636
    %854 = vmatpush1.bf16.msra.mxu0 %v635
    %855 = vmatprep.subr.bf16.mxu0 %v632
    %856 = vmatpush1.bf16.msra.mxu0 %v631
    %857 = vmatprep.subr.bf16.mxu0 %v628
    %858 = vmatpush1.bf16.msra.mxu0 %v627
    %859 = vmatprep.subr.bf16.mxu0 0
    %860 = vmatpush2.bf16.msra.mxu0 0
    %861 = vmatprep.subr.bf16.mxu0 0
    %862 = vmatpush2.bf16.msra.mxu0 0
    %863 = vmatprep.subr.bf16.mxu0 0
    %864 = vmatpush2.bf16.msra.mxu0 0
    %865 = vmatprep.subr.bf16.mxu0 0
    %866 = vmatpush2.bf16.msra.mxu0 0
    %867 = vmatprep.subr.bf16.mxu0 0
    %868 = vmatpush2.bf16.msra.mxu0 0
    %869 = vmatprep.subr.bf16.mxu0 0
    %870 = vmatpush2.bf16.msra.mxu0 0
    %871 = vmatprep.subr.bf16.mxu0 0
    %872 = vmatpush2.bf16.msra.mxu0 0
    %873 = vmatprep.subr.bf16.mxu0 0
    %874 = vmatpush2.bf16.msra.mxu0 0
    %875 = vmatprep.mubr.bf16.mxu0 0
    %876 = vmatmul.mubr.bf16.gmra.mxu0 %v793
    %v877 = vpop.f32.mrf.mxu0
    %v878 = vadd.f32 0.0, %v877
    %v879 = vpop.f32.mrf.mxu0
    %v880 = vadd.f32 0.0, %v879
    %v881 = vpop.f32.mrf.mxu0
    %v882 = vpop.f32.mrf.mxu0
    %883 = vdwg.mxu0
    %v884 = vadd.f32 %v798, %v837
    %v885 = vadd.f32 %v799, %v839
    %v886 = vadd.f32 %v800, %v878
    %v887 = vadd.f32 %v801, %v880
    %v888 = vmul.f32 %v884, 0.5
    %v889 = vtanh.pop %v888
    %v890 = vmul.f32 %v889, 0.5
    %v891 = vadd.f32 %v890, 0.5
    %v892 = vmul.f32 %v885, 0.5
    %v893 = vtanh.pop %v892
    %v894 = vmul.f32 %v893, 0.5
    %v895 = vadd.f32 %v894, 0.5
    %v896 = vtanh.pop %v886
    %v897 = vmul.f32 %v887, 0.5
    %v898 = vtanh.pop %v897
    %v899 = vmul.f32 %v898, 0.5
    %v900 = vadd.f32 %v899, 0.5
    %v901 = vmul.f32 %v895, %v790
    %v902 = vmul.f32 %v891, %v896
    %v903 = vadd.f32 %v901, %v902
    %v904 = vtanh.pop %v903
    %v905 = vmul.f32 %v900, %v904
    %v906 = vpack.c.bf16 %v905, %v905
    %s907 = scalar_lea.vmem %s6, 4
    %908 = vst [vmem:[%s907] sm:$0xf] %v906
    %s909 = smul.u32 2, 4
    %s910 = smul.addr %s909, 8
    %s911 = scalar_lea.vmem [#allocation4], %s910
    %v912 = vld [vmem:[%s911] sm:$0xff]
    %v913 = vld [vmem:[%s911 + $0x8] sm:$0xff]
    %v914 = vld [vmem:[%s911 + $0x10] sm:$0xff]
    %v915 = vld [vmem:[%s911 + $0x18] sm:$0xff]
    %916 = vmatprep.subr.bf16.mxu0 %v654
    %917 = vmatpush1.bf16.msra.mxu0 %v653
    %918 = vmatprep.subr.bf16.mxu0 %v650
    %919 = vmatpush1.bf16.msra.mxu0 %v649
    %920 = vmatprep.subr.bf16.mxu0 %v646
    %921 = vmatpush1.bf16.msra.mxu0 %v645
    %922 = vmatprep.subr.bf16.mxu0 %v642
    %923 = vmatpush1.bf16.msra.mxu0 %v641
    %924 = vmatprep.subr.bf16.mxu0 %v638
    %925 = vmatpush1.bf16.msra.mxu0 %v637
    %926 = vmatprep.subr.bf16.mxu0 %v634
    %927 = vmatpush1.bf16.msra.mxu0 %v633
    %928 = vmatprep.subr.bf16.mxu0 %v630
    %929 = vmatpush1.bf16.msra.mxu0 %v629
    %930 = vmatprep.subr.bf16.mxu0 %v626
    %931 = vmatpush1.bf16.msra.mxu0 %v625
    %932 = vmatprep.subr.bf16.mxu0 0
    %933 = vmatpush2.bf16.msra.mxu0 0
    %934 = vmatprep.subr.bf16.mxu0 0
    %935 = vmatpush2.bf16.msra.mxu0 0
    %936 = vmatprep.subr.bf16.mxu0 0
    %937 = vmatpush2.bf16.msra.mxu0 0
    %938 = vmatprep.subr.bf16.mxu0 0
    %939 = vmatpush2.bf16.msra.mxu0 0
    %940 = vmatprep.subr.bf16.mxu0 0
    %941 = vmatpush2.bf16.msra.mxu0 0
    %942 = vmatprep.subr.bf16.mxu0 0
    %943 = vmatpush2.bf16.msra.mxu0 0
    %944 = vmatprep.subr.bf16.mxu0 0
    %945 = vmatpush2.bf16.msra.mxu0 0
    %946 = vmatprep.subr.bf16.mxu0 0
    %947 = vmatpush2.bf16.msra.mxu0 0
    %948 = vmatprep.mubr.bf16.mxu0 0
    %949 = vmatmul.mubr.bf16.gmra.mxu0 %v906
    %v950 = vpop.f32.mrf.mxu0
    %v951 = vadd.f32 0.0, %v950
    %v952 = vpop.f32.mrf.mxu0
    %v953 = vadd.f32 0.0, %v952
    %v954 = vpop.f32.mrf.mxu0
    %v955 = vpop.f32.mrf.mxu0
    %956 = vdwg.mxu0
    %957 = vmatprep.subr.bf16.mxu0 %v656
    %958 = vmatpush1.bf16.msra.mxu0 %v655
    %959 = vmatprep.subr.bf16.mxu0 %v652
    %960 = vmatpush1.bf16.msra.mxu0 %v651
    %961 = vmatprep.subr.bf16.mxu0 %v648
    %962 = vmatpush1.bf16.msra.mxu0 %v647
    %963 = vmatprep.subr.bf16.mxu0 %v644
    %964 = vmatpush1.bf16.msra.mxu0 %v643
    %965 = vmatprep.subr.bf16.mxu0 %v640
    %966 = vmatpush1.bf16.msra.mxu0 %v639
    %967 = vmatprep.subr.bf16.mxu0 %v636
    %968 = vmatpush1.bf16.msra.mxu0 %v635
    %969 = vmatprep.subr.bf16.mxu0 %v632
    %970 = vmatpush1.bf16.msra.mxu0 %v631
    %971 = vmatprep.subr.bf16.mxu0 %v628
    %972 = vmatpush1.bf16.msra.mxu0 %v627
    %973 = vmatprep.subr.bf16.mxu0 0
    %974 = vmatpush2.bf16.msra.mxu0 0
    %975 = vmatprep.subr.bf16.mxu0 0
    %976 = vmatpush2.bf16.msra.mxu0 0
    %977 = vmatprep.subr.bf16.mxu0 0
    %978 = vmatpush2.bf16.msra.mxu0 0
    %979 = vmatprep.subr.bf16.mxu0 0
    %980 = vmatpush2.bf16.msra.mxu0 0
    %981 = vmatprep.subr.bf16.mxu0 0
    %982 = vmatpush2.bf16.msra.mxu0 0
    %983 = vmatprep.subr.bf16.mxu0 0
    %984 = vmatpush2.bf16.msra.mxu0 0
    %985 = vmatprep.subr.bf16.mxu0 0
    %986 = vmatpush2.bf16.msra.mxu0 0
    %987 = vmatprep.subr.bf16.mxu0 0
    %988 = vmatpush2.bf16.msra.mxu0 0
    %989 = vmatprep.mubr.bf16.mxu0 0
    %990 = vmatmul.mubr.bf16.gmra.mxu0 %v906
    %v991 = vpop.f32.mrf.mxu0
    %v992 = vadd.f32 0.0, %v991
    %v993 = vpop.f32.mrf.mxu0
    %v994 = vadd.f32 0.0, %v993
    %v995 = vpop.f32.mrf.mxu0
    %v996 = vpop.f32.mrf.mxu0
    %997 = vdwg.mxu0
    %v998 = vadd.f32 %v912, %v951
    %v999 = vadd.f32 %v913, %v953
    %v1000 = vadd.f32 %v914, %v992
    %v1001 = vadd.f32 %v915, %v994
    %v1002 = vmul.f32 %v998, 0.5
    %v1003 = vtanh.pop %v1002
    %v1004 = vmul.f32 %v1003, 0.5
    %v1005 = vadd.f32 %v1004, 0.5
    %v1006 = vmul.f32 %v999, 0.5
    %v1007 = vtanh.pop %v1006
    %v1008 = vmul.f32 %v1007, 0.5
    %v1009 = vadd.f32 %v1008, 0.5
    %v1010 = vtanh.pop %v1000
    %v1011 = vmul.f32 %v1001, 0.5
    %v1012 = vtanh.pop %v1011
    %v1013 = vmul.f32 %v1012, 0.5
    %v1014 = vadd.f32 %v1013, 0.5
    %v1015 = vmul.f32 %v1009, %v903
    %v1016 = vmul.f32 %v1005, %v1010
    %v1017 = vadd.f32 %v1015, %v1016
    %v1018 = vtanh.pop %v1017
    %v1019 = vmul.f32 %v1014, %v1018
    %v1020 = vpack.c.bf16 %v1019, %v1019
    %s1021 = scalar_lea.vmem %s6, 8
    %1022 = vst [vmem:[%s1021] sm:$0xf] %v1020
    %s1023 = smul.u32 3, 4
    %s1024 = smul.addr %s1023, 8
    %s1025 = scalar_lea.vmem [#allocation4], %s1024
    %v1026 = vld [vmem:[%s1025] sm:$0xff]
    %v1027 = vld [vmem:[%s1025 + $0x8] sm:$0xff]
    %v1028 = vld [vmem:[%s1025 + $0x10] sm:$0xff]
    %v1029 = vld [vmem:[%s1025 + $0x18] sm:$0xff]
    %1030 = vmatprep.subr.bf16.mxu0 %v654
    %1031 = vmatpush1.bf16.msra.mxu0 %v653
    %1032 = vmatprep.subr.bf16.mxu0 %v650
    %1033 = vmatpush1.bf16.msra.mxu0 %v649
    %1034 = vmatprep.subr.bf16.mxu0 %v646
    %1035 = vmatpush1.bf16.msra.mxu0 %v645
    %1036 = vmatprep.subr.bf16.mxu0 %v642
    %1037 = vmatpush1.bf16.msra.mxu0 %v641
    %1038 = vmatprep.subr.bf16.mxu0 %v638
    %1039 = vmatpush1.bf16.msra.mxu0 %v637
    %1040 = vmatprep.subr.bf16.mxu0 %v634
    %1041 = vmatpush1.bf16.msra.mxu0 %v633
    %1042 = vmatprep.subr.bf16.mxu0 %v630
    %1043 = vmatpush1.bf16.msra.mxu0 %v629
    %1044 = vmatprep.subr.bf16.mxu0 %v626
    %1045 = vmatpush1.bf16.msra.mxu0 %v625
    %1046 = vmatprep.subr.bf16.mxu0 0
    %1047 = vmatpush2.bf16.msra.mxu0 0
    %1048 = vmatprep.subr.bf16.mxu0 0
    %1049 = vmatpush2.bf16.msra.mxu0 0
    %1050 = vmatprep.subr.bf16.mxu0 0
    %1051 = vmatpush2.bf16.msra.mxu0 0
    %1052 = vmatprep.subr.bf16.mxu0 0
    %1053 = vmatpush2.bf16.msra.mxu0 0
    %1054 = vmatprep.subr.bf16.mxu0 0
    %1055 = vmatpush2.bf16.msra.mxu0 0
    %1056 = vmatprep.subr.bf16.mxu0 0
    %1057 = vmatpush2.bf16.msra.mxu0 0
    %1058 = vmatprep.subr.bf16.mxu0 0
    %1059 = vmatpush2.bf16.msra.mxu0 0
    %1060 = vmatprep.subr.bf16.mxu0 0
    %1061 = vmatpush2.bf16.msra.mxu0 0
    %1062 = vmatprep.mubr.bf16.mxu0 0
    %1063 = vmatmul.mubr.bf16.gmra.mxu0 %v1020
    %v1064 = vpop.f32.mrf.mxu0
    %v1065 = vadd.f32 0.0, %v1064
    %v1066 = vpop.f32.mrf.mxu0
    %v1067 = vadd.f32 0.0, %v1066
    %v1068 = vpop.f32.mrf.mxu0
    %v1069 = vpop.f32.mrf.mxu0
    %1070 = vdwg.mxu0
    %1071 = vmatprep.subr.bf16.mxu0 %v656
    %1072 = vmatpush1.bf16.msra.mxu0 %v655
    %1073 = vmatprep.subr.bf16.mxu0 %v652
    %1074 = vmatpush1.bf16.msra.mxu0 %v651
    %1075 = vmatprep.subr.bf16.mxu0 %v648
    %1076 = vmatpush1.bf16.msra.mxu0 %v647
    %1077 = vmatprep.subr.bf16.mxu0 %v644
    %1078 = vmatpush1.bf16.msra.mxu0 %v643
    %1079 = vmatprep.subr.bf16.mxu0 %v640
    %1080 = vmatpush1.bf16.msra.mxu0 %v639
    %1081 = vmatprep.subr.bf16.mxu0 %v636
    %1082 = vmatpush1.bf16.msra.mxu0 %v635
    %1083 = vmatprep.subr.bf16.mxu0 %v632
    %1084 = vmatpush1.bf16.msra.mxu0 %v631
    %1085 = vmatprep.subr.bf16.mxu0 %v628
    %1086 = vmatpush1.bf16.msra.mxu0 %v627
    %1087 = vmatprep.subr.bf16.mxu0 0
    %1088 = vmatpush2.bf16.msra.mxu0 0
    %1089 = vmatprep.subr.bf16.mxu0 0
    %1090 = vmatpush2.bf16.msra.mxu0 0
    %1091 = vmatprep.subr.bf16.mxu0 0
    %1092 = vmatpush2.bf16.msra.mxu0 0
    %1093 = vmatprep.subr.bf16.mxu0 0
    %1094 = vmatpush2.bf16.msra.mxu0 0
    %1095 = vmatprep.subr.bf16.mxu0 0
    %1096 = vmatpush2.bf16.msra.mxu0 0
    %1097 = vmatprep.subr.bf16.mxu0 0
    %1098 = vmatpush2.bf16.msra.mxu0 0
    %1099 = vmatprep.subr.bf16.mxu0 0
    %1100 = vmatpush2.bf16.msra.mxu0 0
    %1101 = vmatprep.subr.bf16.mxu0 0
    %1102 = vmatpush2.bf16.msra.mxu0 0
    %1103 = vmatprep.mubr.bf16.mxu0 0
    %1104 = vmatmul.mubr.bf16.gmra.mxu0 %v1020
    %v1105 = vpop.f32.mrf.mxu0
    %v1106 = vadd.f32 0.0, %v1105
    %v1107 = vpop.f32.mrf.mxu0
    %v1108 = vadd.f32 0.0, %v1107
    %v1109 = vpop.f32.mrf.mxu0
    %v1110 = vpop.f32.mrf.mxu0
    %1111 = vdwg.mxu0
    %v1112 = vadd.f32 %v1026, %v1065
    %v1113 = vadd.f32 %v1027, %v1067
    %v1114 = vadd.f32 %v1028, %v1106
    %v1115 = vadd.f32 %v1029, %v1108
    %v1116 = vmul.f32 %v1112, 0.5
    %v1117 = vtanh.pop %v1116
    %v1118 = vmul.f32 %v1117, 0.5
    %v1119 = vadd.f32 %v1118, 0.5
    %v1120 = vmul.f32 %v1113, 0.5
    %v1121 = vtanh.pop %v1120
    %v1122 = vmul.f32 %v1121, 0.5
    %v1123 = vadd.f32 %v1122, 0.5
    %v1124 = vtanh.pop %v1114
    %v1125 = vmul.f32 %v1115, 0.5
    %v1126 = vtanh.pop %v1125
    %v1127 = vmul.f32 %v1126, 0.5
    %v1128 = vadd.f32 %v1127, 0.5
    %v1129 = vmul.f32 %v1123, %v1017
    %v1130 = vmul.f32 %v1119, %v1124
    %v1131 = vadd.f32 %v1129, %v1130
    %v1132 = vtanh.pop %v1131
    %v1133 = vmul.f32 %v1128, %v1132
    %v1134 = vpack.c.bf16 %v1133, %v1133
    %s1135 = scalar_lea.vmem %s6, 12
    %1136 = vst [vmem:[%s1135] sm:$0xf] %v1134
    %s1137 = smul.u32 4, 4
    %s1138 = smul.addr %s1137, 8
    %s1139 = scalar_lea.vmem [#allocation4], %s1138
    %v1140 = vld [vmem:[%s1139] sm:$0xff]
    %v1141 = vld [vmem:[%s1139 + $0x8] sm:$0xff]
    %v1142 = vld [vmem:[%s1139 + $0x10] sm:$0xff]
    %v1143 = vld [vmem:[%s1139 + $0x18] sm:$0xff]
    %1144 = vmatprep.subr.bf16.mxu0 %v654
    %1145 = vmatpush1.bf16.msra.mxu0 %v653
    %1146 = vmatprep.subr.bf16.mxu0 %v650
    %1147 = vmatpush1.bf16.msra.mxu0 %v649
    %1148 = vmatprep.subr.bf16.mxu0 %v646
    %1149 = vmatpush1.bf16.msra.mxu0 %v645
    %1150 = vmatprep.subr.bf16.mxu0 %v642
    %1151 = vmatpush1.bf16.msra.mxu0 %v641
    %1152 = vmatprep.subr.bf16.mxu0 %v638
    %1153 = vmatpush1.bf16.msra.mxu0 %v637
    %1154 = vmatprep.subr.bf16.mxu0 %v634
    %1155 = vmatpush1.bf16.msra.mxu0 %v633
    %1156 = vmatprep.subr.bf16.mxu0 %v630
    %1157 = vmatpush1.bf16.msra.mxu0 %v629
    %1158 = vmatprep.subr.bf16.mxu0 %v626
    %1159 = vmatpush1.bf16.msra.mxu0 %v625
    %1160 = vmatprep.subr.bf16.mxu0 0
    %1161 = vmatpush2.bf16.msra.mxu0 0
    %1162 = vmatprep.subr.bf16.mxu0 0
    %1163 = vmatpush2.bf16.msra.mxu0 0
    %1164 = vmatprep.subr.bf16.mxu0 0
    %1165 = vmatpush2.bf16.msra.mxu0 0
    %1166 = vmatprep.subr.bf16.mxu0 0
    %1167 = vmatpush2.bf16.msra.mxu0 0
    %1168 = vmatprep.subr.bf16.mxu0 0
    %1169 = vmatpush2.bf16.msra.mxu0 0
    %1170 = vmatprep.subr.bf16.mxu0 0
    %1171 = vmatpush2.bf16.msra.mxu0 0
    %1172 = vmatprep.subr.bf16.mxu0 0
    %1173 = vmatpush2.bf16.msra.mxu0 0
    %1174 = vmatprep.subr.bf16.mxu0 0
    %1175 = vmatpush2.bf16.msra.mxu0 0
    %1176 = vmatprep.mubr.bf16.mxu0 0
    %1177 = vmatmul.mubr.bf16.gmra.mxu0 %v1134
    %v1178 = vpop.f32.mrf.mxu0
    %v1179 = vadd.f32 0.0, %v1178
    %v1180 = vpop.f32.mrf.mxu0
    %v1181 = vadd.f32 0.0, %v1180
    %v1182 = vpop.f32.mrf.mxu0
    %v1183 = vpop.f32.mrf.mxu0
    %1184 = vdwg.mxu0
    %1185 = vmatprep.subr.bf16.mxu0 %v656
    %1186 = vmatpush1.bf16.msra.mxu0 %v655
    %1187 = vmatprep.subr.bf16.mxu0 %v652
    %1188 = vmatpush1.bf16.msra.mxu0 %v651
    %1189 = vmatprep.subr.bf16.mxu0 %v648
    %1190 = vmatpush1.bf16.msra.mxu0 %v647
    %1191 = vmatprep.subr.bf16.mxu0 %v644
    %1192 = vmatpush1.bf16.msra.mxu0 %v643
    %1193 = vmatprep.subr.bf16.mxu0 %v640
    %1194 = vmatpush1.bf16.msra.mxu0 %v639
    %1195 = vmatprep.subr.bf16.mxu0 %v636
    %1196 = vmatpush1.bf16.msra.mxu0 %v635
    %1197 = vmatprep.subr.bf16.mxu0 %v632
    %1198 = vmatpush1.bf16.msra.mxu0 %v631
    %1199 = vmatprep.subr.bf16.mxu0 %v628
    %1200 = vmatpush1.bf16.msra.mxu0 %v627
    %1201 = vmatprep.subr.bf16.mxu0 0
    %1202 = vmatpush2.bf16.msra.mxu0 0
    %1203 = vmatprep.subr.bf16.mxu0 0
    %1204 = vmatpush2.bf16.msra.mxu0 0
    %1205 = vmatprep.subr.bf16.mxu0 0
    %1206 = vmatpush2.bf16.msra.mxu0 0
    %1207 = vmatprep.subr.bf16.mxu0 0
    %1208 = vmatpush2.bf16.msra.mxu0 0
    %1209 = vmatprep.subr.bf16.mxu0 0
    %1210 = vmatpush2.bf16.msra.mxu0 0
    %1211 = vmatprep.subr.bf16.mxu0 0
    %1212 = vmatpush2.bf16.msra.mxu0 0
    %1213 = vmatprep.subr.bf16.mxu0 0
    %1214 = vmatpush2.bf16.msra.mxu0 0
    %1215 = vmatprep.subr.bf16.mxu0 0
    %1216 = vmatpush2.bf16.msra.mxu0 0
    %1217 = vmatprep.mubr.bf16.mxu0 0
    %1218 = vmatmul.mubr.bf16.gmra.mxu0 %v1134
    %v1219 = vpop.f32.mrf.mxu0
    %v1220 = vadd.f32 0.0, %v1219
    %v1221 = vpop.f32.mrf.mxu0
    %v1222 = vadd.f32 0.0, %v1221
    %v1223 = vpop.f32.mrf.mxu0
    %v1224 = vpop.f32.mrf.mxu0
    %1225 = vdwg.mxu0
    %v1226 = vadd.f32 %v1140, %v1179
    %v1227 = vadd.f32 %v1141, %v1181
    %v1228 = vadd.f32 %v1142, %v1220
    %v1229 = vadd.f32 %v1143, %v1222
    %v1230 = vmul.f32 %v1226, 0.5
    %v1231 = vtanh.pop %v1230
    %v1232 = vmul.f32 %v1231, 0.5
    %v1233 = vadd.f32 %v1232, 0.5
    %v1234 = vmul.f32 %v1227, 0.5
    %v1235 = vtanh.pop %v1234
    %v1236 = vmul.f32 %v1235, 0.5
    %v1237 = vadd.f32 %v1236, 0.5
    %v1238 = vtanh.pop %v1228
    %v1239 = vmul.f32 %v1229, 0.5
    %v1240 = vtanh.pop %v1239
    %v1241 = vmul.f32 %v1240, 0.5
    %v1242 = vadd.f32 %v1241, 0.5
    %v1243 = vmul.f32 %v1237, %v1131
    %v1244 = vmul.f32 %v1233, %v1238
    %v1245 = vadd.f32 %v1243, %v1244
    %v1246 = vtanh.pop %v1245
    %v1247 = vmul.f32 %v1242, %v1246
    %v1248 = vpack.c.bf16 %v1247, %v1247
    %s1249 = scalar_lea.vmem %s6, 16
    %1250 = vst [vmem:[%s1249] sm:$0xf] %v1248
    %s1251 = smul.u32 5, 4
    %s1252 = smul.addr %s1251, 8
    %s1253 = scalar_lea.vmem [#allocation4], %s1252
    %v1254 = vld [vmem:[%s1253] sm:$0xff]
    %v1255 = vld [vmem:[%s1253 + $0x8] sm:$0xff]
    %v1256 = vld [vmem:[%s1253 + $0x10] sm:$0xff]
    %v1257 = vld [vmem:[%s1253 + $0x18] sm:$0xff]
    %1258 = vmatprep.subr.bf16.mxu0 %v654
    %1259 = vmatpush1.bf16.msra.mxu0 %v653
    %1260 = vmatprep.subr.bf16.mxu0 %v650
    %1261 = vmatpush1.bf16.msra.mxu0 %v649
    %1262 = vmatprep.subr.bf16.mxu0 %v646
    %1263 = vmatpush1.bf16.msra.mxu0 %v645
    %1264 = vmatprep.subr.bf16.mxu0 %v642
    %1265 = vmatpush1.bf16.msra.mxu0 %v641
    %1266 = vmatprep.subr.bf16.mxu0 %v638
    %1267 = vmatpush1.bf16.msra.mxu0 %v637
    %1268 = vmatprep.subr.bf16.mxu0 %v634
    %1269 = vmatpush1.bf16.msra.mxu0 %v633
    %1270 = vmatprep.subr.bf16.mxu0 %v630
    %1271 = vmatpush1.bf16.msra.mxu0 %v629
    %1272 = vmatprep.subr.bf16.mxu0 %v626
    %1273 = vmatpush1.bf16.msra.mxu0 %v625
    %1274 = vmatprep.subr.bf16.mxu0 0
    %1275 = vmatpush2.bf16.msra.mxu0 0
    %1276 = vmatprep.subr.bf16.mxu0 0
    %1277 = vmatpush2.bf16.msra.mxu0 0
    %1278 = vmatprep.subr.bf16.mxu0 0
    %1279 = vmatpush2.bf16.msra.mxu0 0
    %1280 = vmatprep.subr.bf16.mxu0 0
    %1281 = vmatpush2.bf16.msra.mxu0 0
    %1282 = vmatprep.subr.bf16.mxu0 0
    %1283 = vmatpush2.bf16.msra.mxu0 0
    %1284 = vmatprep.subr.bf16.mxu0 0
    %1285 = vmatpush2.bf16.msra.mxu0 0
    %1286 = vmatprep.subr.bf16.mxu0 0
    %1287 = vmatpush2.bf16.msra.mxu0 0
    %1288 = vmatprep.subr.bf16.mxu0 0
    %1289 = vmatpush2.bf16.msra.mxu0 0
    %1290 = vmatprep.mubr.bf16.mxu0 0
    %1291 = vmatmul.mubr.bf16.gmra.mxu0 %v1248
    %v1292 = vpop.f32.mrf.mxu0
    %v1293 = vadd.f32 0.0, %v1292
    %v1294 = vpop.f32.mrf.mxu0
    %v1295 = vadd.f32 0.0, %v1294
    %v1296 = vpop.f32.mrf.mxu0
    %v1297 = vpop.f32.mrf.mxu0
    %1298 = vdwg.mxu0
    %1299 = vmatprep.subr.bf16.mxu0 %v656
    %1300 = vmatpush1.bf16.msra.mxu0 %v655
    %1301 = vmatprep.subr.bf16.mxu0 %v652
    %1302 = vmatpush1.bf16.msra.mxu0 %v651
    %1303 = vmatprep.subr.bf16.mxu0 %v648
    %1304 = vmatpush1.bf16.msra.mxu0 %v647
    %1305 = vmatprep.subr.bf16.mxu0 %v644
    %1306 = vmatpush1.bf16.msra.mxu0 %v643
    %1307 = vmatprep.subr.bf16.mxu0 %v640
    %1308 = vmatpush1.bf16.msra.mxu0 %v639
    %1309 = vmatprep.subr.bf16.mxu0 %v636
    %1310 = vmatpush1.bf16.msra.mxu0 %v635
    %1311 = vmatprep.subr.bf16.mxu0 %v632
    %1312 = vmatpush1.bf16.msra.mxu0 %v631
    %1313 = vmatprep.subr.bf16.mxu0 %v628
    %1314 = vmatpush1.bf16.msra.mxu0 %v627
    %1315 = vmatprep.subr.bf16.mxu0 0
    %1316 = vmatpush2.bf16.msra.mxu0 0
    %1317 = vmatprep.subr.bf16.mxu0 0
    %1318 = vmatpush2.bf16.msra.mxu0 0
    %1319 = vmatprep.subr.bf16.mxu0 0
    %1320 = vmatpush2.bf16.msra.mxu0 0
    %1321 = vmatprep.subr.bf16.mxu0 0
    %1322 = vmatpush2.bf16.msra.mxu0 0
    %1323 = vmatprep.subr.bf16.mxu0 0
    %1324 = vmatpush2.bf16.msra.mxu0 0
    %1325 = vmatprep.subr.bf16.mxu0 0
    %1326 = vmatpush2.bf16.msra.mxu0 0
    %1327 = vmatprep.subr.bf16.mxu0 0
    %1328 = vmatpush2.bf16.msra.mxu0 0
    %1329 = vmatprep.subr.bf16.mxu0 0
    %1330 = vmatpush2.bf16.msra.mxu0 0
    %1331 = vmatprep.mubr.bf16.mxu0 0
    %1332 = vmatmul.mubr.bf16.gmra.mxu0 %v1248
    %v1333 = vpop.f32.mrf.mxu0
    %v1334 = vadd.f32 0.0, %v1333
    %v1335 = vpop.f32.mrf.mxu0
    %v1336 = vadd.f32 0.0, %v1335
    %v1337 = vpop.f32.mrf.mxu0
    %v1338 = vpop.f32.mrf.mxu0
    %1339 = vdwg.mxu0
    %v1340 = vadd.f32 %v1254, %v1293
    %v1341 = vadd.f32 %v1255, %v1295
    %v1342 = vadd.f32 %v1256, %v1334
    %v1343 = vadd.f32 %v1257, %v1336
    %v1344 = vmul.f32 %v1340, 0.5
    %v1345 = vtanh.pop %v1344
    %v1346 = vmul.f32 %v1345, 0.5
    %v1347 = vadd.f32 %v1346, 0.5
    %v1348 = vmul.f32 %v1341, 0.5
    %v1349 = vtanh.pop %v1348
    %v1350 = vmul.f32 %v1349, 0.5
    %v1351 = vadd.f32 %v1350, 0.5
    %v1352 = vtanh.pop %v1342
    %v1353 = vmul.f32 %v1343, 0.5
    %v1354 = vtanh.pop %v1353
    %v1355 = vmul.f32 %v1354, 0.5
    %v1356 = vadd.f32 %v1355, 0.5
    %v1357 = vmul.f32 %v1351, %v1245
    %v1358 = vmul.f32 %v1347, %v1352
    %v1359 = vadd.f32 %v1357, %v1358
    %v1360 = vtanh.pop %v1359
    %v1361 = vmul.f32 %v1356, %v1360
    %v1362 = vpack.c.bf16 %v1361, %v1361
    %s1363 = scalar_lea.vmem %s6, 20
    %1364 = vst [vmem:[%s1363] sm:$0xf] %v1362
    %s1365 = smul.u32 6, 4
    %s1366 = smul.addr %s1365, 8
    %s1367 = scalar_lea.vmem [#allocation4], %s1366
    %v1368 = vld [vmem:[%s1367] sm:$0xff]
    %v1369 = vld [vmem:[%s1367 + $0x8] sm:$0xff]
    %v1370 = vld [vmem:[%s1367 + $0x10] sm:$0xff]
    %v1371 = vld [vmem:[%s1367 + $0x18] sm:$0xff]
    %1372 = vmatprep.subr.bf16.mxu0 %v654
    %1373 = vmatpush1.bf16.msra.mxu0 %v653
    %1374 = vmatprep.subr.bf16.mxu0 %v650
    %1375 = vmatpush1.bf16.msra.mxu0 %v649
    %1376 = vmatprep.subr.bf16.mxu0 %v646
    %1377 = vmatpush1.bf16.msra.mxu0 %v645
    %1378 = vmatprep.subr.bf16.mxu0 %v642
    %1379 = vmatpush1.bf16.msra.mxu0 %v641
    %1380 = vmatprep.subr.bf16.mxu0 %v638
    %1381 = vmatpush1.bf16.msra.mxu0 %v637
    %1382 = vmatprep.subr.bf16.mxu0 %v634
    %1383 = vmatpush1.bf16.msra.mxu0 %v633
    %1384 = vmatprep.subr.bf16.mxu0 %v630
    %1385 = vmatpush1.bf16.msra.mxu0 %v629
    %1386 = vmatprep.subr.bf16.mxu0 %v626
    %1387 = vmatpush1.bf16.msra.mxu0 %v625
    %1388 = vmatprep.subr.bf16.mxu0 0
    %1389 = vmatpush2.bf16.msra.mxu0 0
    %1390 = vmatprep.subr.bf16.mxu0 0
    %1391 = vmatpush2.bf16.msra.mxu0 0
    %1392 = vmatprep.subr.bf16.mxu0 0
    %1393 = vmatpush2.bf16.msra.mxu0 0
    %1394 = vmatprep.subr.bf16.mxu0 0
    %1395 = vmatpush2.bf16.msra.mxu0 0
    %1396 = vmatprep.subr.bf16.mxu0 0
    %1397 = vmatpush2.bf16.msra.mxu0 0
    %1398 = vmatprep.subr.bf16.mxu0 0
    %1399 = vmatpush2.bf16.msra.mxu0 0
    %1400 = vmatprep.subr.bf16.mxu0 0
    %1401 = vmatpush2.bf16.msra.mxu0 0
    %1402 = vmatprep.subr.bf16.mxu0 0
    %1403 = vmatpush2.bf16.msra.mxu0 0
    %1404 = vmatprep.mubr.bf16.mxu0 0
    %1405 = vmatmul.mubr.bf16.gmra.mxu0 %v1362
    %v1406 = vpop.f32.mrf.mxu0
    %v1407 = vadd.f32 0.0, %v1406
    %v1408 = vpop.f32.mrf.mxu0
    %v1409 = vadd.f32 0.0, %v1408
    %v1410 = vpop.f32.mrf.mxu0
    %v1411 = vpop.f32.mrf.mxu0
    %1412 = vdwg.mxu0
    %1413 = vmatprep.subr.bf16.mxu0 %v656
    %1414 = vmatpush1.bf16.msra.mxu0 %v655
    %1415 = vmatprep.subr.bf16.mxu0 %v652
    %1416 = vmatpush1.bf16.msra.mxu0 %v651
    %1417 = vmatprep.subr.bf16.mxu0 %v648
    %1418 = vmatpush1.bf16.msra.mxu0 %v647
    %1419 = vmatprep.subr.bf16.mxu0 %v644
    %1420 = vmatpush1.bf16.msra.mxu0 %v643
    %1421 = vmatprep.subr.bf16.mxu0 %v640
    %1422 = vmatpush1.bf16.msra.mxu0 %v639
    %1423 = vmatprep.subr.bf16.mxu0 %v636
    %1424 = vmatpush1.bf16.msra.mxu0 %v635
    %1425 = vmatprep.subr.bf16.mxu0 %v632
    %1426 = vmatpush1.bf16.msra.mxu0 %v631
    %1427 = vmatprep.subr.bf16.mxu0 %v628
    %1428 = vmatpush1.bf16.msra.mxu0 %v627
    %1429 = vmatprep.subr.bf16.mxu0 0
    %1430 = vmatpush2.bf16.msra.mxu0 0
    %1431 = vmatprep.subr.bf16.mxu0 0
    %1432 = vmatpush2.bf16.msra.mxu0 0
    %1433 = vmatprep.subr.bf16.mxu0 0
    %1434 = vmatpush2.bf16.msra.mxu0 0
    %1435 = vmatprep.subr.bf16.mxu0 0
    %1436 = vmatpush2.bf16.msra.mxu0 0
    %1437 = vmatprep.subr.bf16.mxu0 0
    %1438 = vmatpush2.bf16.msra.mxu0 0
    %1439 = vmatprep.subr.bf16.mxu0 0
    %1440 = vmatpush2.bf16.msra.mxu0 0
    %1441 = vmatprep.subr.bf16.mxu0 0
    %1442 = vmatpush2.bf16.msra.mxu0 0
    %1443 = vmatprep.subr.bf16.mxu0 0
    %1444 = vmatpush2.bf16.msra.mxu0 0
    %1445 = vmatprep.mubr.bf16.mxu0 0
    %1446 = vmatmul.mubr.bf16.gmra.mxu0 %v1362
    %v1447 = vpop.f32.mrf.mxu0
    %v1448 = vadd.f32 0.0, %v1447
    %v1449 = vpop.f32.mrf.mxu0
    %v1450 = vadd.f32 0.0, %v1449
    %v1451 = vpop.f32.mrf.mxu0
    %v1452 = vpop.f32.mrf.mxu0
    %1453 = vdwg.mxu0
    %v1454 = vadd.f32 %v1368, %v1407
    %v1455 = vadd.f32 %v1369, %v1409
    %v1456 = vadd.f32 %v1370, %v1448
    %v1457 = vadd.f32 %v1371, %v1450
    %v1458 = vmul.f32 %v1454, 0.5
    %v1459 = vtanh.pop %v1458
    %v1460 = vmul.f32 %v1459, 0.5
    %v1461 = vadd.f32 %v1460, 0.5
    %v1462 = vmul.f32 %v1455, 0.5
    %v1463 = vtanh.pop %v1462
    %v1464 = vmul.f32 %v1463, 0.5
    %v1465 = vadd.f32 %v1464, 0.5
    %v1466 = vtanh.pop %v1456
    %v1467 = vmul.f32 %v1457, 0.5
    %v1468 = vtanh.pop %v1467
    %v1469 = vmul.f32 %v1468, 0.5
    %v1470 = vadd.f32 %v1469, 0.5
    %v1471 = vmul.f32 %v1465, %v1359
    %v1472 = vmul.f32 %v1461, %v1466
    %v1473 = vadd.f32 %v1471, %v1472
    %v1474 = vtanh.pop %v1473
    %v1475 = vmul.f32 %v1470, %v1474
    %v1476 = vpack.c.bf16 %v1475, %v1475
    %s1477 = scalar_lea.vmem %s6, 24
    %1478 = vst [vmem:[%s1477] sm:$0xf] %v1476
    %s1479 = smul.u32 7, 4
    %s1480 = smul.addr %s1479, 8
    %s1481 = scalar_lea.vmem [#allocation4], %s1480
    %v1482 = vld [vmem:[%s1481] sm:$0xff]
    %v1483 = vld [vmem:[%s1481 + $0x8] sm:$0xff]
    %v1484 = vld [vmem:[%s1481 + $0x10] sm:$0xff]
    %v1485 = vld [vmem:[%s1481 + $0x18] sm:$0xff]
    %1486 = vmatprep.subr.bf16.mxu0 %v654
    %1487 = vmatpush1.bf16.msra.mxu0 %v653
    %1488 = vmatprep.subr.bf16.mxu0 %v650
    %1489 = vmatpush1.bf16.msra.mxu0 %v649
    %1490 = vmatprep.subr.bf16.mxu0 %v646
    %1491 = vmatpush1.bf16.msra.mxu0 %v645
    %1492 = vmatprep.subr.bf16.mxu0 %v642
    %1493 = vmatpush1.bf16.msra.mxu0 %v641
    %1494 = vmatprep.subr.bf16.mxu0 %v638
    %1495 = vmatpush1.bf16.msra.mxu0 %v637
    %1496 = vmatprep.subr.bf16.mxu0 %v634
    %1497 = vmatpush1.bf16.msra.mxu0 %v633
    %1498 = vmatprep.subr.bf16.mxu0 %v630
    %1499 = vmatpush1.bf16.msra.mxu0 %v629
    %1500 = vmatprep.subr.bf16.mxu0 %v626
    %1501 = vmatpush1.bf16.msra.mxu0 %v625
    %1502 = vmatprep.subr.bf16.mxu0 0
    %1503 = vmatpush2.bf16.msra.mxu0 0
    %1504 = vmatprep.subr.bf16.mxu0 0
    %1505 = vmatpush2.bf16.msra.mxu0 0
    %1506 = vmatprep.subr.bf16.mxu0 0
    %1507 = vmatpush2.bf16.msra.mxu0 0
    %1508 = vmatprep.subr.bf16.mxu0 0
    %1509 = vmatpush2.bf16.msra.mxu0 0
    %1510 = vmatprep.subr.bf16.mxu0 0
    %1511 = vmatpush2.bf16.msra.mxu0 0
    %1512 = vmatprep.subr.bf16.mxu0 0
    %1513 = vmatpush2.bf16.msra.mxu0 0
    %1514 = vmatprep.subr.bf16.mxu0 0
    %1515 = vmatpush2.bf16.msra.mxu0 0
    %1516 = vmatprep.subr.bf16.mxu0 0
    %1517 = vmatpush2.bf16.msra.mxu0 0
    %1518 = vmatprep.mubr.bf16.mxu0 0
    %1519 = vmatmul.mubr.bf16.gmra.mxu0 %v1476
    %v1520 = vpop.f32.mrf.mxu0
    %v1521 = vadd.f32 0.0, %v1520
    %v1522 = vpop.f32.mrf.mxu0
    %v1523 = vadd.f32 0.0, %v1522
    %v1524 = vpop.f32.mrf.mxu0
    %v1525 = vpop.f32.mrf.mxu0
    %1526 = vdwg.mxu0
    %1527 = vmatprep.subr.bf16.mxu0 %v656
    %1528 = vmatpush1.bf16.msra.mxu0 %v655
    %1529 = vmatprep.subr.bf16.mxu0 %v652
    %1530 = vmatpush1.bf16.msra.mxu0 %v651
    %1531 = vmatprep.subr.bf16.mxu0 %v648
    %1532 = vmatpush1.bf16.msra.mxu0 %v647
    %1533 = vmatprep.subr.bf16.mxu0 %v644
    %1534 = vmatpush1.bf16.msra.mxu0 %v643
    %1535 = vmatprep.subr.bf16.mxu0 %v640
    %1536 = vmatpush1.bf16.msra.mxu0 %v639
    %1537 = vmatprep.subr.bf16.mxu0 %v636
    %1538 = vmatpush1.bf16.msra.mxu0 %v635
    %1539 = vmatprep.subr.bf16.mxu0 %v632
    %1540 = vmatpush1.bf16.msra.mxu0 %v631
    %1541 = vmatprep.subr.bf16.mxu0 %v628
    %1542 = vmatpush1.bf16.msra.mxu0 %v627
    %1543 = vmatprep.subr.bf16.mxu0 0
    %1544 = vmatpush2.bf16.msra.mxu0 0
    %1545 = vmatprep.subr.bf16.mxu0 0
    %1546 = vmatpush2.bf16.msra.mxu0 0
    %1547 = vmatprep.subr.bf16.mxu0 0
    %1548 = vmatpush2.bf16.msra.mxu0 0
    %1549 = vmatprep.subr.bf16.mxu0 0
    %1550 = vmatpush2.bf16.msra.mxu0 0
    %1551 = vmatprep.subr.bf16.mxu0 0
    %1552 = vmatpush2.bf16.msra.mxu0 0
    %1553 = vmatprep.subr.bf16.mxu0 0
    %1554 = vmatpush2.bf16.msra.mxu0 0
    %1555 = vmatprep.subr.bf16.mxu0 0
    %1556 = vmatpush2.bf16.msra.mxu0 0
    %1557 = vmatprep.subr.bf16.mxu0 0
    %1558 = vmatpush2.bf16.msra.mxu0 0
    %1559 = vmatprep.mubr.bf16.mxu0 0
    %1560 = vmatmul.mubr.bf16.gmra.mxu0 %v1476
    %v1561 = vpop.f32.mrf.mxu0
    %v1562 = vadd.f32 0.0, %v1561
    %v1563 = vpop.f32.mrf.mxu0
    %v1564 = vadd.f32 0.0, %v1563
    %v1565 = vpop.f32.mrf.mxu0
    %v1566 = vpop.f32.mrf.mxu0
    %1567 = vdwg.mxu0
    %v1568 = vadd.f32 %v1482, %v1521
    %v1569 = vadd.f32 %v1483, %v1523
    %v1570 = vadd.f32 %v1484, %v1562
    %v1571 = vadd.f32 %v1485, %v1564
    %v1572 = vmul.f32 %v1568, 0.5
    %v1573 = vtanh.pop %v1572
    %v1574 = vmul.f32 %v1573, 0.5
    %v1575 = vadd.f32 %v1574, 0.5
    %v1576 = vmul.f32 %v1569, 0.5
    %v1577 = vtanh.pop %v1576
    %v1578 = vmul.f32 %v1577, 0.5
    %v1579 = vadd.f32 %v1578, 0.5
    %v1580 = vtanh.pop %v1570
    %v1581 = vmul.f32 %v1571, 0.5
    %v1582 = vtanh.pop %v1581
    %v1583 = vmul.f32 %v1582, 0.5
    %v1584 = vadd.f32 %v1583, 0.5
    %v1585 = vmul.f32 %v1579, %v1473
    %v1586 = vmul.f32 %v1575, %v1580
    %v1587 = vadd.f32 %v1585, %v1586
    %v1588 = vtanh.pop %v1587
    %v1589 = vmul.f32 %v1584, %v1588
    %v1590 = vpack.c.bf16 %v1589, %v1589
    %s1591 = scalar_lea.vmem %s6, 28
    %1592 = vst [vmem:[%s1591] sm:$0xf] %v1590
    %1593 = vst [vmem:[#allocation2] sm:$0xff] %v1589
    %1594 = vst [vmem:[#allocation3] sm:$0xff] %v1587
    // Predicated region
    $region38: #{uni_lstm_forward.2} parent=1 // pred_check
      %p1595 = pneg %p55
    $region39: #{uni_lstm_forward.2} parent=1 // pred_check_branch
      %1597 = sbr.rel (%p1595) target = $region41
    $region40: #{uni_lstm_forward.2} parent=1 // pred_region
      %1598 = vst [vmem:[%s7] sm:$0xff] %v1589
      %1599 = vst [vmem:[%s8] sm:$0xff] %v1587
    $region41: #{uni_lstm_forward.2} parent=1 // pred_fallthru
      _
    // Predicated region
    $region42: #{uni_lstm_forward.2} parent=1 // pred_check
      _
    $region43: #{uni_lstm_forward.2} parent=1 // pred_check_branch
      %1601 = sbr.rel (0) target = $region45
    $region44: #{uni_lstm_forward.2} parent=1 // pred_region
      _
    $region45: #{uni_lstm_forward.2} parent=1 // pred_fallthru
      _
    // Predicated region
    $region46: #{uni_lstm_forward.2} parent=1 // pred_check
      _
    $region47: #{uni_lstm_forward.2} parent=1 // pred_check_branch
      %1603 = sbr.rel (0) target = $region49
    $region48: #{uni_lstm_forward.2} parent=1 // pred_region
      _
    $region49: #{uni_lstm_forward.2} parent=1 // pred_fallthru
      _
    // Predicated region
    $region50: #{uni_lstm_forward.2} parent=1 // pred_check
      _
    $region51: #{uni_lstm_forward.2} parent=1 // pred_check_branch
      %1605 = sbr.rel (0) target = $region53
    $region52: #{uni_lstm_forward.2} parent=1 // pred_region
      _
    $region53: #{uni_lstm_forward.2} parent=1 // pred_fallthru
      _
    // Predicated region
    $region54: #{uni_lstm_forward.2} parent=1 // pred_check
      _
    $region55: #{uni_lstm_forward.2} parent=1 // pred_check_branch
      %1607 = sbr.rel (0) target = $region57
    $region56: #{uni_lstm_forward.2} parent=1 // pred_region
      _
    $region57: #{uni_lstm_forward.2} parent=1 // pred_fallthru
      _
    // Predicated region
    $region58: #{uni_lstm_forward.2} parent=1 // pred_check
      _
    $region59: #{uni_lstm_forward.2} parent=1 // pred_check_branch
      %1609 = sbr.rel (0) target = $region61
    $region60: #{uni_lstm_forward.2} parent=1 // pred_region
      _
    $region61: #{uni_lstm_forward.2} parent=1 // pred_fallthru
      _
    // Predicated region
    $region62: #{uni_lstm_forward.2} parent=1 // pred_check
      _
    $region63: #{uni_lstm_forward.2} parent=1 // pred_check_branch
      %1611 = sbr.rel (0) target = $region65
    $region64: #{uni_lstm_forward.2} parent=1 // pred_region
      _
    $region65: #{uni_lstm_forward.2} parent=1 // pred_fallthru
      _
    %1612 = vsyncpa [#allocation6], 1
    %1613 = vsyncpa [#allocation8], 1

// kernel: uni_lstm_forward.3
$region0: #{uni_lstm_forward.3}
  #allocation0 [shape = 'u32[]', space=smem, size = 0x4, offset = 0x4, fixed_abs, tag = 'smem constant byte address 0x4 - core index']
  #allocation1 [shape = 'u32[144,128]{1,0:T(1,128)}', space=vmem, size = 0x12000, scoped, tag = 'internal scratch']
  #allocation2 [shape = 'f32[8,128]{1,0:T(8,128)}', space=vmem, size = 0x1000, scoped, tag = 'scratch operand']
  #allocation3 [shape = 'f32[8,128]{1,0:T(8,128)}', space=vmem, size = 0x1000, scoped, tag = 'scratch operand']
  #allocation4 [shape = 'f32[64,512]{1,0:T(8,128)}', space=vmem, size = 0x20000, scoped, tag = 'scratch operand']
  %s0 = inlined_call_operand.vmem [shape: bf16[64,128], index: 0, kind: input, shape index: {}]
  %s1 = inlined_call_operand.vmem [shape: bf16[128,512], index: 1, kind: input, shape index: {}]
  %s2 = inlined_call_operand.vmem [shape: bf16[128,512], index: 2, kind: input, shape index: {}]
  %s3 = inlined_call_operand.vmem [shape: f32[1,512], index: 3, kind: input, shape index: {}]
  %s4 = inlined_call_operand.vmem [shape: f32[8,128], index: 4, kind: input, shape index: {}]
  %s5 = inlined_call_operand.vmem [shape: f32[8,128], index: 5, kind: input, shape index: {}]
  %s6 = inlined_call_operand.vmem [shape: f32[64,128], index: 6, kind: output, shape index: {0}]
  %s7 = inlined_call_operand.vmem [shape: f32[8,128], index: 7, kind: output, shape index: {1}]
  %s8 = inlined_call_operand.vmem [shape: f32[8,128], index: 8, kind: output, shape index: {2}]
  %9 = xla_tuple %s6, %s7, %s8
  %s10 = sld [smem:[#allocation0]]
  $region58: #{uni_lstm_forward.3} parent=0
    _
  %s12 = ssub.s32 1, %s10
  %s13 = scalar_select 0, %s12, %s10
  // Predicated region
  $region2: #{uni_lstm_forward.3} parent=0 // pred_check
    _
  $region3: #{uni_lstm_forward.3} parent=0 // pred_check_branch
    %15 = sbr.rel (0) target = $region5
  $region4: #{uni_lstm_forward.3} parent=0 // pred_region
    _
  $region5: #{uni_lstm_forward.3} parent=0 // pred_fallthru
    _
  // Predicated region
  $region6: #{uni_lstm_forward.3} parent=0 // pred_check
    _
  $region7: #{uni_lstm_forward.3} parent=0 // pred_check_branch
    %17 = sbr.rel (0) target = $region9
  $region8: #{uni_lstm_forward.3} parent=0 // pred_region
    _
  $region9: #{uni_lstm_forward.3} parent=0 // pred_fallthru
    _
  // Predicated region
  $region10: #{uni_lstm_forward.3} parent=0 // pred_check
    _
  $region11: #{uni_lstm_forward.3} parent=0 // pred_check_branch
    %19 = sbr.rel (0) target = $region13
  $region12: #{uni_lstm_forward.3} parent=0 // pred_region
    _
  $region13: #{uni_lstm_forward.3} parent=0 // pred_fallthru
    _
  // Predicated region
  $region14: #{uni_lstm_forward.3} parent=0 // pred_check
    _
  $region15: #{uni_lstm_forward.3} parent=0 // pred_check_branch
    %21 = sbr.rel (0) target = $region17
  $region16: #{uni_lstm_forward.3} parent=0 // pred_region
    _
  $region17: #{uni_lstm_forward.3} parent=0 // pred_fallthru
    _
  // Predicated region
  $region18: #{uni_lstm_forward.3} parent=0 // pred_check
    _
  $region19: #{uni_lstm_forward.3} parent=0 // pred_check_branch
    %23 = sbr.rel (0) target = $region21
  $region20: #{uni_lstm_forward.3} parent=0 // pred_region
    _
  $region21: #{uni_lstm_forward.3} parent=0 // pred_fallthru
    _
  // Predicated region
  $region22: #{uni_lstm_forward.3} parent=0 // pred_check
    _
  $region23: #{uni_lstm_forward.3} parent=0 // pred_check_branch
    %25 = sbr.rel (0) target = $region25
  $region24: #{uni_lstm_forward.3} parent=0 // pred_region
    _
  $region25: #{uni_lstm_forward.3} parent=0 // pred_fallthru
    _
  %p27 = scmp.eq.s32.totalorder 0, 0
  // Predicated region
  $region26: #{uni_lstm_forward.3} parent=0 // pred_check
    %p28 = pneg %p27
  $region27: #{uni_lstm_forward.3} parent=0 // pred_check_branch
    %30 = sbr.rel (%p28) target = $region29
  $region28: #{uni_lstm_forward.3} parent=0 // pred_region
    %v31 = vld [vmem:[%s4] sm:$0xff]
    %32 = vst [vmem:[#allocation2] sm:$0xff] %v31
    %v33 = vld [vmem:[%s5] sm:$0xff]
    %34 = vst [vmem:[#allocation3] sm:$0xff] %v33
  $region29: #{uni_lstm_forward.3} parent=0 // pred_fallthru
    _
  %v35 = vld [vmem:[%s0] sm:$0xf]
  %v36 = vld [vmem:[%s0 + $0x4] sm:$0xf]
  %v37 = vld [vmem:[%s0 + $0x8] sm:$0xf]
  %v38 = vld [vmem:[%s0 + $0xc] sm:$0xf]
  %v39 = vld [vmem:[%s0 + $0x10] sm:$0xf]
  %v40 = vld [vmem:[%s0 + $0x14] sm:$0xf]
  %v41 = vld [vmem:[%s0 + $0x18] sm:$0xf]
  %v42 = vld [vmem:[%s0 + $0x1c] sm:$0xf]
  %v43 = vld [vmem:[%s1] sm:$0xff]
  %v44 = vld [vmem:[%s1 + $0x8] sm:$0xff]
  %v45 = vld [vmem:[%s1 + $0x10] sm:$0xff]
  %v46 = vld [vmem:[%s1 + $0x18] sm:$0xff]
  %v47 = vld [vmem:[%s1 + $0x20] sm:$0xff]
  %v48 = vld [vmem:[%s1 + $0x28] sm:$0xff]
  %v49 = vld [vmem:[%s1 + $0x30] sm:$0xff]
  %v50 = vld [vmem:[%s1 + $0x38] sm:$0xff]
  %v51 = vld [vmem:[%s1 + $0x40] sm:$0xff]
  %v52 = vld [vmem:[%s1 + $0x48] sm:$0xff]
  %v53 = vld [vmem:[%s1 + $0x50] sm:$0xff]
  %v54 = vld [vmem:[%s1 + $0x58] sm:$0xff]
  %v55 = vld [vmem:[%s1 + $0x60] sm:$0xff]
  %v56 = vld [vmem:[%s1 + $0x68] sm:$0xff]
  %v57 = vld [vmem:[%s1 + $0x70] sm:$0xff]
  %v58 = vld [vmem:[%s1 + $0x78] sm:$0xff]
  %v59 = vld [vmem:[%s1 + $0x80] sm:$0xff]
  %v60 = vld [vmem:[%s1 + $0x88] sm:$0xff]
  %v61 = vld [vmem:[%s1 + $0x90] sm:$0xff]
  %v62 = vld [vmem:[%s1 + $0x98] sm:$0xff]
  %v63 = vld [vmem:[%s1 + $0xa0] sm:$0xff]
  %v64 = vld [vmem:[%s1 + $0xa8] sm:$0xff]
  %v65 = vld [vmem:[%s1 + $0xb0] sm:$0xff]
  %v66 = vld [vmem:[%s1 + $0xb8] sm:$0xff]
  %v67 = vld [vmem:[%s1 + $0xc0] sm:$0xff]
  %v68 = vld [vmem:[%s1 + $0xc8] sm:$0xff]
  %v69 = vld [vmem:[%s1 + $0xd0] sm:$0xff]
  %v70 = vld [vmem:[%s1 + $0xd8] sm:$0xff]
  %v71 = vld [vmem:[%s1 + $0xe0] sm:$0xff]
  %v72 = vld [vmem:[%s1 + $0xe8] sm:$0xff]
  %v73 = vld [vmem:[%s1 + $0xf0] sm:$0xff]
  %v74 = vld [vmem:[%s1 + $0xf8] sm:$0xff]
  %v75 = vld [vmem:[%s3] sm:$0xf]
  %v77 = vlaneseq
  %v78 = vshrl.u32 %v77, 7
  %v79 = vsub.s32 0, %v78
  %v80 = vrot.slane %v75, %v79
  %v81 = vlaneseq
  %v82 = vshrl.u32 %v81, 7
  %v83 = vsub.s32 1, %v82
  %v84 = vrot.slane %v75, %v83
  %v85 = vlaneseq
  %v86 = vshrl.u32 %v85, 7
  %v87 = vsub.s32 2, %v86
  %v88 = vrot.slane %v75, %v87
  %v89 = vlaneseq
  %v90 = vshrl.u32 %v89, 7
  %v91 = vsub.s32 3, %v90
  %v92 = vrot.slane %v75, %v91
  %v105 = vunpack.c.l.b16 %v35
  %v106 = vunpack.c.l.b16 %v36
  %v107 = vunpack.c.l.b16 %v37
  %v108 = vunpack.c.l.b16 %v38
  %v109 = vunpack.c.l.b16 %v39
  %v110 = vunpack.c.l.b16 %v40
  %v111 = vunpack.c.l.b16 %v41
  %v112 = vunpack.c.l.b16 %v42
  %v113 = vpack.c.b16 %v106, %v105
  %v114 = vpack.c.b16 %v108, %v107
  %v115 = vpack.c.b16 %v110, %v109
  %v116 = vpack.c.b16 %v112, %v111
  %v153 = vunpack.c.l.b16 %v43
  %v154 = vunpack.c.h.b16 %v43
  %v155 = vunpack.c.l.b16 %v44
  %v156 = vunpack.c.h.b16 %v44
  %v157 = vunpack.c.l.b16 %v45
  %v158 = vunpack.c.h.b16 %v45
  %v159 = vunpack.c.l.b16 %v46
  %v160 = vunpack.c.h.b16 %v46
  %v161 = vunpack.c.l.b16 %v47
  %v162 = vunpack.c.h.b16 %v47
  %v163 = vunpack.c.l.b16 %v48
  %v164 = vunpack.c.h.b16 %v48
  %v165 = vunpack.c.l.b16 %v49
  %v166 = vunpack.c.h.b16 %v49
  %v167 = vunpack.c.l.b16 %v50
  %v168 = vunpack.c.h.b16 %v50
  %v169 = vunpack.c.l.b16 %v51
  %v170 = vunpack.c.h.b16 %v51
  %v171 = vunpack.c.l.b16 %v52
  %v172 = vunpack.c.h.b16 %v52
  %v173 = vunpack.c.l.b16 %v53
  %v174 = vunpack.c.h.b16 %v53
  %v175 = vunpack.c.l.b16 %v54
  %v176 = vunpack.c.h.b16 %v54
  %v177 = vunpack.c.l.b16 %v55
  %v178 = vunpack.c.h.b16 %v55
  %v179 = vunpack.c.l.b16 %v56
  %v180 = vunpack.c.h.b16 %v56
  %v181 = vunpack.c.l.b16 %v57
  %v182 = vunpack.c.h.b16 %v57
  %v183 = vunpack.c.l.b16 %v58
  %v184 = vunpack.c.h.b16 %v58
  %v185 = vunpack.c.l.b16 %v59
  %v186 = vunpack.c.h.b16 %v59
  %v187 = vunpack.c.l.b16 %v60
  %v188 = vunpack.c.h.b16 %v60
  %v189 = vunpack.c.l.b16 %v61
  %v190 = vunpack.c.h.b16 %v61
  %v191 = vunpack.c.l.b16 %v62
  %v192 = vunpack.c.h.b16 %v62
  %v193 = vunpack.c.l.b16 %v63
  %v194 = vunpack.c.h.b16 %v63
  %v195 = vunpack.c.l.b16 %v64
  %v196 = vunpack.c.h.b16 %v64
  %v197 = vunpack.c.l.b16 %v65
  %v198 = vunpack.c.h.b16 %v65
  %v199 = vunpack.c.l.b16 %v66
  %v200 = vunpack.c.h.b16 %v66
  %v201 = vunpack.c.l.b16 %v67
  %v202 = vunpack.c.h.b16 %v67
  %v203 = vunpack.c.l.b16 %v68
  %v204 = vunpack.c.h.b16 %v68
  %v205 = vunpack.c.l.b16 %v69
  %v206 = vunpack.c.h.b16 %v69
  %v207 = vunpack.c.l.b16 %v70
  %v208 = vunpack.c.h.b16 %v70
  %v209 = vunpack.c.l.b16 %v71
  %v210 = vunpack.c.h.b16 %v71
  %v211 = vunpack.c.l.b16 %v72
  %v212 = vunpack.c.h.b16 %v72
  %v213 = vunpack.c.l.b16 %v73
  %v214 = vunpack.c.h.b16 %v73
  %v215 = vunpack.c.l.b16 %v74
  %v216 = vunpack.c.h.b16 %v74
  %v217 = vpack.c.b16 %v157, %v153
  %v218 = vpack.c.b16 %v158, %v154
  %v219 = vpack.c.b16 %v159, %v155
  %v220 = vpack.c.b16 %v160, %v156
  %v221 = vpack.c.b16 %v165, %v161
  %v222 = vpack.c.b16 %v166, %v162
  %v223 = vpack.c.b16 %v167, %v163
  %v224 = vpack.c.b16 %v168, %v164
  %v225 = vpack.c.b16 %v173, %v169
  %v226 = vpack.c.b16 %v174, %v170
  %v227 = vpack.c.b16 %v175, %v171
  %v228 = vpack.c.b16 %v176, %v172
  %v229 = vpack.c.b16 %v181, %v177
  %v230 = vpack.c.b16 %v182, %v178
  %v231 = vpack.c.b16 %v183, %v179
  %v232 = vpack.c.b16 %v184, %v180
  %v233 = vpack.c.b16 %v189, %v185
  %v234 = vpack.c.b16 %v190, %v186
  %v235 = vpack.c.b16 %v191, %v187
  %v236 = vpack.c.b16 %v192, %v188
  %v237 = vpack.c.b16 %v197, %v193
  %v238 = vpack.c.b16 %v198, %v194
  %v239 = vpack.c.b16 %v199, %v195
  %v240 = vpack.c.b16 %v200, %v196
  %v241 = vpack.c.b16 %v205, %v201
  %v242 = vpack.c.b16 %v206, %v202
  %v243 = vpack.c.b16 %v207, %v203
  %v244 = vpack.c.b16 %v208, %v204
  %v245 = vpack.c.b16 %v213, %v209
  %v246 = vpack.c.b16 %v214, %v210
  %v247 = vpack.c.b16 %v215, %v211
  %v248 = vpack.c.b16 %v216, %v212
  %281 = vmatprep.subr.bf16.mxu0 %v246
  %282 = vmatpush1.bf16.msra.mxu0 %v245
  %283 = vmatprep.subr.bf16.mxu0 %v242
  %284 = vmatpush1.bf16.msra.mxu0 %v241
  %285 = vmatprep.subr.bf16.mxu0 %v238
  %286 = vmatpush1.bf16.msra.mxu0 %v237
  %287 = vmatprep.subr.bf16.mxu0 %v234
  %288 = vmatpush1.bf16.msra.mxu0 %v233
  %289 = vmatprep.subr.bf16.mxu0 %v230
  %290 = vmatpush1.bf16.msra.mxu0 %v229
  %291 = vmatprep.subr.bf16.mxu0 %v226
  %292 = vmatpush1.bf16.msra.mxu0 %v225
  %293 = vmatprep.subr.bf16.mxu0 %v222
  %294 = vmatpush1.bf16.msra.mxu0 %v221
  %295 = vmatprep.subr.bf16.mxu0 %v218
  %296 = vmatpush1.bf16.msra.mxu0 %v217
  %297 = vmatprep.subr.bf16.mxu0 0
  %298 = vmatpush2.bf16.msra.mxu0 0
  %299 = vmatprep.subr.bf16.mxu0 0
  %300 = vmatpush2.bf16.msra.mxu0 0
  %301 = vmatprep.subr.bf16.mxu0 0
  %302 = vmatpush2.bf16.msra.mxu0 0
  %303 = vmatprep.subr.bf16.mxu0 0
  %304 = vmatpush2.bf16.msra.mxu0 0
  %305 = vmatprep.subr.bf16.mxu0 0
  %306 = vmatpush2.bf16.msra.mxu0 0
  %307 = vmatprep.subr.bf16.mxu0 0
  %308 = vmatpush2.bf16.msra.mxu0 0
  %309 = vmatprep.subr.bf16.mxu0 0
  %310 = vmatpush2.bf16.msra.mxu0 0
  %311 = vmatprep.subr.bf16.mxu0 0
  %312 = vmatpush2.bf16.msra.mxu0 0
  %313 = vmatprep.mubr.bf16.mxu0 0
  %314 = vmatmul.mubr.bf16.gmra.mxu0 %v113
  %v315 = vpop.f32.mrf.mxu0
  %v316 = vadd.f32 %v80, %v315
  %v317 = vpop.f32.mrf.mxu0
  %v318 = vadd.f32 %v84, %v317
  %v319 = vpop.f32.mrf.mxu0
  %v320 = vadd.f32 %v80, %v319
  %v321 = vpop.f32.mrf.mxu0
  %v322 = vadd.f32 %v84, %v321
  %323 = vmatprep.mubr.bf16.mxu0 0
  %324 = vmatmul.mubr.bf16.gmra.mxu0 %v114
  %v325 = vpop.f32.mrf.mxu0
  %v326 = vadd.f32 %v80, %v325
  %v327 = vpop.f32.mrf.mxu0
  %v328 = vadd.f32 %v84, %v327
  %v329 = vpop.f32.mrf.mxu0
  %v330 = vadd.f32 %v80, %v329
  %v331 = vpop.f32.mrf.mxu0
  %v332 = vadd.f32 %v84, %v331
  %333 = vmatprep.mubr.bf16.mxu0 0
  %334 = vmatmul.mubr.bf16.gmra.mxu0 %v115
  %v335 = vpop.f32.mrf.mxu0
  %v336 = vadd.f32 %v80, %v335
  %v337 = vpop.f32.mrf.mxu0
  %v338 = vadd.f32 %v84, %v337
  %v339 = vpop.f32.mrf.mxu0
  %v340 = vadd.f32 %v80, %v339
  %v341 = vpop.f32.mrf.mxu0
  %v342 = vadd.f32 %v84, %v341
  %343 = vmatprep.mubr.bf16.mxu0 0
  %344 = vmatmul.mubr.bf16.gmra.mxu0 %v116
  %v345 = vpop.f32.mrf.mxu0
  %v346 = vadd.f32 %v80, %v345
  %v347 = vpop.f32.mrf.mxu0
  %v348 = vadd.f32 %v84, %v347
  %v349 = vpop.f32.mrf.mxu0
  %v350 = vadd.f32 %v80, %v349
  %v351 = vpop.f32.mrf.mxu0
  %v352 = vadd.f32 %v84, %v351
  %353 = vdwg.mxu0
  %354 = vmatprep.subr.bf16.mxu0 %v248
  %355 = vmatpush1.bf16.msra.mxu0 %v247
  %356 = vmatprep.subr.bf16.mxu0 %v244
  %357 = vmatpush1.bf16.msra.mxu0 %v243
  %358 = vmatprep.subr.bf16.mxu0 %v240
  %359 = vmatpush1.bf16.msra.mxu0 %v239
  %360 = vmatprep.subr.bf16.mxu0 %v236
  %361 = vmatpush1.bf16.msra.mxu0 %v235
  %362 = vmatprep.subr.bf16.mxu0 %v232
  %363 = vmatpush1.bf16.msra.mxu0 %v231
  %364 = vmatprep.subr.bf16.mxu0 %v228
  %365 = vmatpush1.bf16.msra.mxu0 %v227
  %366 = vmatprep.subr.bf16.mxu0 %v224
  %367 = vmatpush1.bf16.msra.mxu0 %v223
  %368 = vmatprep.subr.bf16.mxu0 %v220
  %369 = vmatpush1.bf16.msra.mxu0 %v219
  %370 = vmatprep.subr.bf16.mxu0 0
  %371 = vmatpush2.bf16.msra.mxu0 0
  %372 = vmatprep.subr.bf16.mxu0 0
  %373 = vmatpush2.bf16.msra.mxu0 0
  %374 = vmatprep.subr.bf16.mxu0 0
  %375 = vmatpush2.bf16.msra.mxu0 0
  %376 = vmatprep.subr.bf16.mxu0 0
  %377 = vmatpush2.bf16.msra.mxu0 0
  %378 = vmatprep.subr.bf16.mxu0 0
  %379 = vmatpush2.bf16.msra.mxu0 0
  %380 = vmatprep.subr.bf16.mxu0 0
  %381 = vmatpush2.bf16.msra.mxu0 0
  %382 = vmatprep.subr.bf16.mxu0 0
  %383 = vmatpush2.bf16.msra.mxu0 0
  %384 = vmatprep.subr.bf16.mxu0 0
  %385 = vmatpush2.bf16.msra.mxu0 0
  %386 = vmatprep.mubr.bf16.mxu0 0
  %387 = vmatmul.mubr.bf16.gmra.mxu0 %v113
  %v388 = vpop.f32.mrf.mxu0
  %v389 = vadd.f32 %v88, %v388
  %v390 = vpop.f32.mrf.mxu0
  %v391 = vadd.f32 %v92, %v390
  %v392 = vpop.f32.mrf.mxu0
  %v393 = vadd.f32 %v88, %v392
  %v394 = vpop.f32.mrf.mxu0
  %v395 = vadd.f32 %v92, %v394
  %396 = vmatprep.mubr.bf16.mxu0 0
  %397 = vmatmul.mubr.bf16.gmra.mxu0 %v114
  %v398 = vpop.f32.mrf.mxu0
  %v399 = vadd.f32 %v88, %v398
  %v400 = vpop.f32.mrf.mxu0
  %v401 = vadd.f32 %v92, %v400
  %v402 = vpop.f32.mrf.mxu0
  %v403 = vadd.f32 %v88, %v402
  %v404 = vpop.f32.mrf.mxu0
  %v405 = vadd.f32 %v92, %v404
  %406 = vmatprep.mubr.bf16.mxu0 0
  %407 = vmatmul.mubr.bf16.gmra.mxu0 %v115
  %v408 = vpop.f32.mrf.mxu0
  %v409 = vadd.f32 %v88, %v408
  %v410 = vpop.f32.mrf.mxu0
  %v411 = vadd.f32 %v92, %v410
  %v412 = vpop.f32.mrf.mxu0
  %v413 = vadd.f32 %v88, %v412
  %v414 = vpop.f32.mrf.mxu0
  %v415 = vadd.f32 %v92, %v414
  %416 = vmatprep.mubr.bf16.mxu0 0
  %417 = vmatmul.mubr.bf16.gmra.mxu0 %v116
  %v418 = vpop.f32.mrf.mxu0
  %v419 = vadd.f32 %v88, %v418
  %v420 = vpop.f32.mrf.mxu0
  %v421 = vadd.f32 %v92, %v420
  %v422 = vpop.f32.mrf.mxu0
  %v423 = vadd.f32 %v88, %v422
  %v424 = vpop.f32.mrf.mxu0
  %v425 = vadd.f32 %v92, %v424
  %426 = vdwg.mxu0
  %427 = vst [vmem:[#allocation4] sm:$0xff] %v316
  %428 = vst [vmem:[#allocation4 + $0x8] sm:$0xff] %v318
  %429 = vst [vmem:[#allocation4 + $0x10] sm:$0xff] %v389
  %430 = vst [vmem:[#allocation4 + $0x18] sm:$0xff] %v391
  %431 = vst [vmem:[#allocation4 + $0x20] sm:$0xff] %v320
  %432 = vst [vmem:[#allocation4 + $0x28] sm:$0xff] %v322
  %433 = vst [vmem:[#allocation4 + $0x30] sm:$0xff] %v393
  %434 = vst [vmem:[#allocation4 + $0x38] sm:$0xff] %v395
  %435 = vst [vmem:[#allocation4 + $0x40] sm:$0xff] %v326
  %436 = vst [vmem:[#allocation4 + $0x48] sm:$0xff] %v328
  %437 = vst [vmem:[#allocation4 + $0x50] sm:$0xff] %v399
  %438 = vst [vmem:[#allocation4 + $0x58] sm:$0xff] %v401
  %439 = vst [vmem:[#allocation4 + $0x60] sm:$0xff] %v330
  %440 = vst [vmem:[#allocation4 + $0x68] sm:$0xff] %v332
  %441 = vst [vmem:[#allocation4 + $0x70] sm:$0xff] %v403
  %442 = vst [vmem:[#allocation4 + $0x78] sm:$0xff] %v405
  %443 = vst [vmem:[#allocation4 + $0x80] sm:$0xff] %v336
  %444 = vst [vmem:[#allocation4 + $0x88] sm:$0xff] %v338
  %445 = vst [vmem:[#allocation4 + $0x90] sm:$0xff] %v409
  %446 = vst [vmem:[#allocation4 + $0x98] sm:$0xff] %v411
  %447 = vst [vmem:[#allocation4 + $0xa0] sm:$0xff] %v340
  %448 = vst [vmem:[#allocation4 + $0xa8] sm:$0xff] %v342
  %449 = vst [vmem:[#allocation4 + $0xb0] sm:$0xff] %v413
  %450 = vst [vmem:[#allocation4 + $0xb8] sm:$0xff] %v415
  %451 = vst [vmem:[#allocation4 + $0xc0] sm:$0xff] %v346
  %452 = vst [vmem:[#allocation4 + $0xc8] sm:$0xff] %v348
  %453 = vst [vmem:[#allocation4 + $0xd0] sm:$0xff] %v419
  %454 = vst [vmem:[#allocation4 + $0xd8] sm:$0xff] %v421
  %455 = vst [vmem:[#allocation4 + $0xe0] sm:$0xff] %v350
  %456 = vst [vmem:[#allocation4 + $0xe8] sm:$0xff] %v352
  %457 = vst [vmem:[#allocation4 + $0xf0] sm:$0xff] %v423
  %458 = vst [vmem:[#allocation4 + $0xf8] sm:$0xff] %v425
  %v459 = vld [vmem:[%s2] sm:$0xff]
  %v460 = vld [vmem:[%s2 + $0x8] sm:$0xff]
  %v461 = vld [vmem:[%s2 + $0x10] sm:$0xff]
  %v462 = vld [vmem:[%s2 + $0x18] sm:$0xff]
  %v463 = vld [vmem:[%s2 + $0x20] sm:$0xff]
  %v464 = vld [vmem:[%s2 + $0x28] sm:$0xff]
  %v465 = vld [vmem:[%s2 + $0x30] sm:$0xff]
  %v466 = vld [vmem:[%s2 + $0x38] sm:$0xff]
  %v467 = vld [vmem:[%s2 + $0x40] sm:$0xff]
  %v468 = vld [vmem:[%s2 + $0x48] sm:$0xff]
  %v469 = vld [vmem:[%s2 + $0x50] sm:$0xff]
  %v470 = vld [vmem:[%s2 + $0x58] sm:$0xff]
  %v471 = vld [vmem:[%s2 + $0x60] sm:$0xff]
  %v472 = vld [vmem:[%s2 + $0x68] sm:$0xff]
  %v473 = vld [vmem:[%s2 + $0x70] sm:$0xff]
  %v474 = vld [vmem:[%s2 + $0x78] sm:$0xff]
  %v475 = vld [vmem:[%s2 + $0x80] sm:$0xff]
  %v476 = vld [vmem:[%s2 + $0x88] sm:$0xff]
  %v477 = vld [vmem:[%s2 + $0x90] sm:$0xff]
  %v478 = vld [vmem:[%s2 + $0x98] sm:$0xff]
  %v479 = vld [vmem:[%s2 + $0xa0] sm:$0xff]
  %v480 = vld [vmem:[%s2 + $0xa8] sm:$0xff]
  %v481 = vld [vmem:[%s2 + $0xb0] sm:$0xff]
  %v482 = vld [vmem:[%s2 + $0xb8] sm:$0xff]
  %v483 = vld [vmem:[%s2 + $0xc0] sm:$0xff]
  %v484 = vld [vmem:[%s2 + $0xc8] sm:$0xff]
  %v485 = vld [vmem:[%s2 + $0xd0] sm:$0xff]
  %v486 = vld [vmem:[%s2 + $0xd8] sm:$0xff]
  %v487 = vld [vmem:[%s2 + $0xe0] sm:$0xff]
  %v488 = vld [vmem:[%s2 + $0xe8] sm:$0xff]
  %v489 = vld [vmem:[%s2 + $0xf0] sm:$0xff]
  %v490 = vld [vmem:[%s2 + $0xf8] sm:$0xff]
  %v491 = vld [vmem:[#allocation2] sm:$0xff]
  %v492 = vld [vmem:[#allocation3] sm:$0xff]
  %s493 = smul.u32 0, 4
  %s494 = smul.addr %s493, 8
  %s495 = scalar_lea.vmem [#allocation4], %s494
  %v496 = vld [vmem:[%s495] sm:$0xff]
  %v497 = vld [vmem:[%s495 + $0x8] sm:$0xff]
  %v498 = vld [vmem:[%s495 + $0x10] sm:$0xff]
  %v499 = vld [vmem:[%s495 + $0x18] sm:$0xff]
  %v500 = vpack.c.bf16 %v491, %v491
  %v533 = vunpack.c.l.b16 %v459
  %v534 = vunpack.c.h.b16 %v459
  %v535 = vunpack.c.l.b16 %v460
  %v536 = vunpack.c.h.b16 %v460
  %v537 = vunpack.c.l.b16 %v461
  %v538 = vunpack.c.h.b16 %v461
  %v539 = vunpack.c.l.b16 %v462
  %v540 = vunpack.c.h.b16 %v462
  %v541 = vunpack.c.l.b16 %v463
  %v542 = vunpack.c.h.b16 %v463
  %v543 = vunpack.c.l.b16 %v464
  %v544 = vunpack.c.h.b16 %v464
  %v545 = vunpack.c.l.b16 %v465
  %v546 = vunpack.c.h.b16 %v465
  %v547 = vunpack.c.l.b16 %v466
  %v548 = vunpack.c.h.b16 %v466
  %v549 = vunpack.c.l.b16 %v467
  %v550 = vunpack.c.h.b16 %v467
  %v551 = vunpack.c.l.b16 %v468
  %v552 = vunpack.c.h.b16 %v468
  %v553 = vunpack.c.l.b16 %v469
  %v554 = vunpack.c.h.b16 %v469
  %v555 = vunpack.c.l.b16 %v470
  %v556 = vunpack.c.h.b16 %v470
  %v557 = vunpack.c.l.b16 %v471
  %v558 = vunpack.c.h.b16 %v471
  %v559 = vunpack.c.l.b16 %v472
  %v560 = vunpack.c.h.b16 %v472
  %v561 = vunpack.c.l.b16 %v473
  %v562 = vunpack.c.h.b16 %v473
  %v563 = vunpack.c.l.b16 %v474
  %v564 = vunpack.c.h.b16 %v474
  %v565 = vunpack.c.l.b16 %v475
  %v566 = vunpack.c.h.b16 %v475
  %v567 = vunpack.c.l.b16 %v476
  %v568 = vunpack.c.h.b16 %v476
  %v569 = vunpack.c.l.b16 %v477
  %v570 = vunpack.c.h.b16 %v477
  %v571 = vunpack.c.l.b16 %v478
  %v572 = vunpack.c.h.b16 %v478
  %v573 = vunpack.c.l.b16 %v479
  %v574 = vunpack.c.h.b16 %v479
  %v575 = vunpack.c.l.b16 %v480
  %v576 = vunpack.c.h.b16 %v480
  %v577 = vunpack.c.l.b16 %v481
  %v578 = vunpack.c.h.b16 %v481
  %v579 = vunpack.c.l.b16 %v482
  %v580 = vunpack.c.h.b16 %v482
  %v581 = vunpack.c.l.b16 %v483
  %v582 = vunpack.c.h.b16 %v483
  %v583 = vunpack.c.l.b16 %v484
  %v584 = vunpack.c.h.b16 %v484
  %v585 = vunpack.c.l.b16 %v485
  %v586 = vunpack.c.h.b16 %v485
  %v587 = vunpack.c.l.b16 %v486
  %v588 = vunpack.c.h.b16 %v486
  %v589 = vunpack.c.l.b16 %v487
  %v590 = vunpack.c.h.b16 %v487
  %v591 = vunpack.c.l.b16 %v488
  %v592 = vunpack.c.h.b16 %v488
  %v593 = vunpack.c.l.b16 %v489
  %v594 = vunpack.c.h.b16 %v489
  %v595 = vunpack.c.l.b16 %v490
  %v596 = vunpack.c.h.b16 %v490
  %v597 = vpack.c.b16 %v537, %v533
  %v598 = vpack.c.b16 %v538, %v534
  %v599 = vpack.c.b16 %v539, %v535
  %v600 = vpack.c.b16 %v540, %v536
  %v601 = vpack.c.b16 %v545, %v541
  %v602 = vpack.c.b16 %v546, %v542
  %v603 = vpack.c.b16 %v547, %v543
  %v604 = vpack.c.b16 %v548, %v544
  %v605 = vpack.c.b16 %v553, %v549
  %v606 = vpack.c.b16 %v554, %v550
  %v607 = vpack.c.b16 %v555, %v551
  %v608 = vpack.c.b16 %v556, %v552
  %v609 = vpack.c.b16 %v561, %v557
  %v610 = vpack.c.b16 %v562, %v558
  %v611 = vpack.c.b16 %v563, %v559
  %v612 = vpack.c.b16 %v564, %v560
  %v613 = vpack.c.b16 %v569, %v565
  %v614 = vpack.c.b16 %v570, %v566
  %v615 = vpack.c.b16 %v571, %v567
  %v616 = vpack.c.b16 %v572, %v568
  %v617 = vpack.c.b16 %v577, %v573
  %v618 = vpack.c.b16 %v578, %v574
  %v619 = vpack.c.b16 %v579, %v575
  %v620 = vpack.c.b16 %v580, %v576
  %v621 = vpack.c.b16 %v585, %v581
  %v622 = vpack.c.b16 %v586, %v582
  %v623 = vpack.c.b16 %v587, %v583
  %v624 = vpack.c.b16 %v588, %v584
  %v625 = vpack.c.b16 %v593, %v589
  %v626 = vpack.c.b16 %v594, %v590
  %v627 = vpack.c.b16 %v595, %v591
  %v628 = vpack.c.b16 %v596, %v592
  %661 = vmatprep.subr.bf16.mxu0 %v626
  %662 = vmatpush1.bf16.msra.mxu0 %v625
  %663 = vmatprep.subr.bf16.mxu0 %v622
  %664 = vmatpush1.bf16.msra.mxu0 %v621
  %665 = vmatprep.subr.bf16.mxu0 %v618
  %666 = vmatpush1.bf16.msra.mxu0 %v617
  %667 = vmatprep.subr.bf16.mxu0 %v614
  %668 = vmatpush1.bf16.msra.mxu0 %v613
  %669 = vmatprep.subr.bf16.mxu0 %v610
  %670 = vmatpush1.bf16.msra.mxu0 %v609
  %671 = vmatprep.subr.bf16.mxu0 %v606
  %672 = vmatpush1.bf16.msra.mxu0 %v605
  %673 = vmatprep.subr.bf16.mxu0 %v602
  %674 = vmatpush1.bf16.msra.mxu0 %v601
  %675 = vmatprep.subr.bf16.mxu0 %v598
  %676 = vmatpush1.bf16.msra.mxu0 %v597
  %677 = vmatprep.subr.bf16.mxu0 0
  %678 = vmatpush2.bf16.msra.mxu0 0
  %679 = vmatprep.subr.bf16.mxu0 0
  %680 = vmatpush2.bf16.msra.mxu0 0
  %681 = vmatprep.subr.bf16.mxu0 0
  %682 = vmatpush2.bf16.msra.mxu0 0
  %683 = vmatprep.subr.bf16.mxu0 0
  %684 = vmatpush2.bf16.msra.mxu0 0
  %685 = vmatprep.subr.bf16.mxu0 0
  %686 = vmatpush2.bf16.msra.mxu0 0
  %687 = vmatprep.subr.bf16.mxu0 0
  %688 = vmatpush2.bf16.msra.mxu0 0
  %689 = vmatprep.subr.bf16.mxu0 0
  %690 = vmatpush2.bf16.msra.mxu0 0
  %691 = vmatprep.subr.bf16.mxu0 0
  %692 = vmatpush2.bf16.msra.mxu0 0
  %693 = vmatprep.mubr.bf16.mxu0 0
  %694 = vmatmul.mubr.bf16.gmra.mxu0 %v500
  %v695 = vpop.f32.mrf.mxu0
  %v696 = vadd.f32 0.0, %v695
  %v697 = vpop.f32.mrf.mxu0
  %v698 = vadd.f32 0.0, %v697
  %v699 = vpop.f32.mrf.mxu0
  %v700 = vpop.f32.mrf.mxu0
  %701 = vdwg.mxu0
  %702 = vmatprep.subr.bf16.mxu0 %v628
  %703 = vmatpush1.bf16.msra.mxu0 %v627
  %704 = vmatprep.subr.bf16.mxu0 %v624
  %705 = vmatpush1.bf16.msra.mxu0 %v623
  %706 = vmatprep.subr.bf16.mxu0 %v620
  %707 = vmatpush1.bf16.msra.mxu0 %v619
  %708 = vmatprep.subr.bf16.mxu0 %v616
  %709 = vmatpush1.bf16.msra.mxu0 %v615
  %710 = vmatprep.subr.bf16.mxu0 %v612
  %711 = vmatpush1.bf16.msra.mxu0 %v611
  %712 = vmatprep.subr.bf16.mxu0 %v608
  %713 = vmatpush1.bf16.msra.mxu0 %v607
  %714 = vmatprep.subr.bf16.mxu0 %v604
  %715 = vmatpush1.bf16.msra.mxu0 %v603
  %716 = vmatprep.subr.bf16.mxu0 %v600
  %717 = vmatpush1.bf16.msra.mxu0 %v599
  %718 = vmatprep.subr.bf16.mxu0 0
  %719 = vmatpush2.bf16.msra.mxu0 0
  %720 = vmatprep.subr.bf16.mxu0 0
  %721 = vmatpush2.bf16.msra.mxu0 0
  %722 = vmatprep.subr.bf16.mxu0 0
  %723 = vmatpush2.bf16.msra.mxu0 0
  %724 = vmatprep.subr.bf16.mxu0 0
  %725 = vmatpush2.bf16.msra.mxu0 0
  %726 = vmatprep.subr.bf16.mxu0 0
  %727 = vmatpush2.bf16.msra.mxu0 0
  %728 = vmatprep.subr.bf16.mxu0 0
  %729 = vmatpush2.bf16.msra.mxu0 0
  %730 = vmatprep.subr.bf16.mxu0 0
  %731 = vmatpush2.bf16.msra.mxu0 0
  %732 = vmatprep.subr.bf16.mxu0 0
  %733 = vmatpush2.bf16.msra.mxu0 0
  %734 = vmatprep.mubr.bf16.mxu0 0
  %735 = vmatmul.mubr.bf16.gmra.mxu0 %v500
  %v736 = vpop.f32.mrf.mxu0
  %v737 = vadd.f32 0.0, %v736
  %v738 = vpop.f32.mrf.mxu0
  %v739 = vadd.f32 0.0, %v738
  %v740 = vpop.f32.mrf.mxu0
  %v741 = vpop.f32.mrf.mxu0
  %742 = vdwg.mxu0
  %v743 = vadd.f32 %v496, %v696
  %v744 = vadd.f32 %v497, %v698
  %v745 = vadd.f32 %v498, %v737
  %v746 = vadd.f32 %v499, %v739
  %v747 = vmul.f32 %v743, 0.5
  %v748 = vtanh.pop %v747
  %v749 = vmul.f32 %v748, 0.5
  %v750 = vadd.f32 %v749, 0.5
  %v751 = vmul.f32 %v744, 0.5
  %v752 = vtanh.pop %v751
  %v753 = vmul.f32 %v752, 0.5
  %v754 = vadd.f32 %v753, 0.5
  %v755 = vtanh.pop %v745
  %v756 = vmul.f32 %v746, 0.5
  %v757 = vtanh.pop %v756
  %v758 = vmul.f32 %v757, 0.5
  %v759 = vadd.f32 %v758, 0.5
  %v760 = vmul.f32 %v754, %v492
  %v761 = vmul.f32 %v750, %v755
  %v762 = vadd.f32 %v760, %v761
  %v763 = vtanh.pop %v762
  %v764 = vmul.f32 %v759, %v763
  %765 = vst [vmem:[%s6] sm:$0xff] %v764
  %s766 = smul.u32 1, 4
  %s767 = smul.addr %s766, 8
  %s768 = scalar_lea.vmem [#allocation4], %s767
  %v769 = vld [vmem:[%s768] sm:$0xff]
  %v770 = vld [vmem:[%s768 + $0x8] sm:$0xff]
  %v771 = vld [vmem:[%s768 + $0x10] sm:$0xff]
  %v772 = vld [vmem:[%s768 + $0x18] sm:$0xff]
  %v773 = vpack.c.bf16 %v764, %v764
  %774 = vmatprep.subr.bf16.mxu0 %v626
  %775 = vmatpush1.bf16.msra.mxu0 %v625
  %776 = vmatprep.subr.bf16.mxu0 %v622
  %777 = vmatpush1.bf16.msra.mxu0 %v621
  %778 = vmatprep.subr.bf16.mxu0 %v618
  %779 = vmatpush1.bf16.msra.mxu0 %v617
  %780 = vmatprep.subr.bf16.mxu0 %v614
  %781 = vmatpush1.bf16.msra.mxu0 %v613
  %782 = vmatprep.subr.bf16.mxu0 %v610
  %783 = vmatpush1.bf16.msra.mxu0 %v609
  %784 = vmatprep.subr.bf16.mxu0 %v606
  %785 = vmatpush1.bf16.msra.mxu0 %v605
  %786 = vmatprep.subr.bf16.mxu0 %v602
  %787 = vmatpush1.bf16.msra.mxu0 %v601
  %788 = vmatprep.subr.bf16.mxu0 %v598
  %789 = vmatpush1.bf16.msra.mxu0 %v597
  %790 = vmatprep.subr.bf16.mxu0 0
  %791 = vmatpush2.bf16.msra.mxu0 0
  %792 = vmatprep.subr.bf16.mxu0 0
  %793 = vmatpush2.bf16.msra.mxu0 0
  %794 = vmatprep.subr.bf16.mxu0 0
  %795 = vmatpush2.bf16.msra.mxu0 0
  %796 = vmatprep.subr.bf16.mxu0 0
  %797 = vmatpush2.bf16.msra.mxu0 0
  %798 = vmatprep.subr.bf16.mxu0 0
  %799 = vmatpush2.bf16.msra.mxu0 0
  %800 = vmatprep.subr.bf16.mxu0 0
  %801 = vmatpush2.bf16.msra.mxu0 0
  %802 = vmatprep.subr.bf16.mxu0 0
  %803 = vmatpush2.bf16.msra.mxu0 0
  %804 = vmatprep.subr.bf16.mxu0 0
  %805 = vmatpush2.bf16.msra.mxu0 0
  %806 = vmatprep.mubr.bf16.mxu0 0
  %807 = vmatmul.mubr.bf16.gmra.mxu0 %v773
  %v808 = vpop.f32.mrf.mxu0
  %v809 = vadd.f32 0.0, %v808
  %v810 = vpop.f32.mrf.mxu0
  %v811 = vadd.f32 0.0, %v810
  %v812 = vpop.f32.mrf.mxu0
  %v813 = vpop.f32.mrf.mxu0
  %814 = vdwg.mxu0
  %815 = vmatprep.subr.bf16.mxu0 %v628
  %816 = vmatpush1.bf16.msra.mxu0 %v627
  %817 = vmatprep.subr.bf16.mxu0 %v624
  %818 = vmatpush1.bf16.msra.mxu0 %v623
  %819 = vmatprep.subr.bf16.mxu0 %v620
  %820 = vmatpush1.bf16.msra.mxu0 %v619
  %821 = vmatprep.subr.bf16.mxu0 %v616
  %822 = vmatpush1.bf16.msra.mxu0 %v615
  %823 = vmatprep.subr.bf16.mxu0 %v612
  %824 = vmatpush1.bf16.msra.mxu0 %v611
  %825 = vmatprep.subr.bf16.mxu0 %v608
  %826 = vmatpush1.bf16.msra.mxu0 %v607
  %827 = vmatprep.subr.bf16.mxu0 %v604
  %828 = vmatpush1.bf16.msra.mxu0 %v603
  %829 = vmatprep.subr.bf16.mxu0 %v600
  %830 = vmatpush1.bf16.msra.mxu0 %v599
  %831 = vmatprep.subr.bf16.mxu0 0
  %832 = vmatpush2.bf16.msra.mxu0 0
  %833 = vmatprep.subr.bf16.mxu0 0
  %834 = vmatpush2.bf16.msra.mxu0 0
  %835 = vmatprep.subr.bf16.mxu0 0
  %836 = vmatpush2.bf16.msra.mxu0 0
  %837 = vmatprep.subr.bf16.mxu0 0
  %838 = vmatpush2.bf16.msra.mxu0 0
  %839 = vmatprep.subr.bf16.mxu0 0
  %840 = vmatpush2.bf16.msra.mxu0 0
  %841 = vmatprep.subr.bf16.mxu0 0
  %842 = vmatpush2.bf16.msra.mxu0 0
  %843 = vmatprep.subr.bf16.mxu0 0
  %844 = vmatpush2.bf16.msra.mxu0 0
  %845 = vmatprep.subr.bf16.mxu0 0
  %846 = vmatpush2.bf16.msra.mxu0 0
  %847 = vmatprep.mubr.bf16.mxu0 0
  %848 = vmatmul.mubr.bf16.gmra.mxu0 %v773
  %v849 = vpop.f32.mrf.mxu0
  %v850 = vadd.f32 0.0, %v849
  %v851 = vpop.f32.mrf.mxu0
  %v852 = vadd.f32 0.0, %v851
  %v853 = vpop.f32.mrf.mxu0
  %v854 = vpop.f32.mrf.mxu0
  %855 = vdwg.mxu0
  %v856 = vadd.f32 %v769, %v809
  %v857 = vadd.f32 %v770, %v811
  %v858 = vadd.f32 %v771, %v850
  %v859 = vadd.f32 %v772, %v852
  %v860 = vmul.f32 %v856, 0.5
  %v861 = vtanh.pop %v860
  %v862 = vmul.f32 %v861, 0.5
  %v863 = vadd.f32 %v862, 0.5
  %v864 = vmul.f32 %v857, 0.5
  %v865 = vtanh.pop %v864
  %v866 = vmul.f32 %v865, 0.5
  %v867 = vadd.f32 %v866, 0.5
  %v868 = vtanh.pop %v858
  %v869 = vmul.f32 %v859, 0.5
  %v870 = vtanh.pop %v869
  %v871 = vmul.f32 %v870, 0.5
  %v872 = vadd.f32 %v871, 0.5
  %v873 = vmul.f32 %v867, %v762
  %v874 = vmul.f32 %v863, %v868
  %v875 = vadd.f32 %v873, %v874
  %v876 = vtanh.pop %v875
  %v877 = vmul.f32 %v872, %v876
  %s878 = scalar_lea.vmem %s6, 8
  %879 = vst [vmem:[%s878] sm:$0xff] %v877
  %s880 = smul.u32 2, 4
  %s881 = smul.addr %s880, 8
  %s882 = scalar_lea.vmem [#allocation4], %s881
  %v883 = vld [vmem:[%s882] sm:$0xff]
  %v884 = vld [vmem:[%s882 + $0x8] sm:$0xff]
  %v885 = vld [vmem:[%s882 + $0x10] sm:$0xff]
  %v886 = vld [vmem:[%s882 + $0x18] sm:$0xff]
  %v887 = vpack.c.bf16 %v877, %v877
  %888 = vmatprep.subr.bf16.mxu0 %v626
  %889 = vmatpush1.bf16.msra.mxu0 %v625
  %890 = vmatprep.subr.bf16.mxu0 %v622
  %891 = vmatpush1.bf16.msra.mxu0 %v621
  %892 = vmatprep.subr.bf16.mxu0 %v618
  %893 = vmatpush1.bf16.msra.mxu0 %v617
  %894 = vmatprep.subr.bf16.mxu0 %v614
  %895 = vmatpush1.bf16.msra.mxu0 %v613
  %896 = vmatprep.subr.bf16.mxu0 %v610
  %897 = vmatpush1.bf16.msra.mxu0 %v609
  %898 = vmatprep.subr.bf16.mxu0 %v606
  %899 = vmatpush1.bf16.msra.mxu0 %v605
  %900 = vmatprep.subr.bf16.mxu0 %v602
  %901 = vmatpush1.bf16.msra.mxu0 %v601
  %902 = vmatprep.subr.bf16.mxu0 %v598
  %903 = vmatpush1.bf16.msra.mxu0 %v597
  %904 = vmatprep.subr.bf16.mxu0 0
  %905 = vmatpush2.bf16.msra.mxu0 0
  %906 = vmatprep.subr.bf16.mxu0 0
  %907 = vmatpush2.bf16.msra.mxu0 0
  %908 = vmatprep.subr.bf16.mxu0 0
  %909 = vmatpush2.bf16.msra.mxu0 0
  %910 = vmatprep.subr.bf16.mxu0 0
  %911 = vmatpush2.bf16.msra.mxu0 0
  %912 = vmatprep.subr.bf16.mxu0 0
  %913 = vmatpush2.bf16.msra.mxu0 0
  %914 = vmatprep.subr.bf16.mxu0 0
  %915 = vmatpush2.bf16.msra.mxu0 0
  %916 = vmatprep.subr.bf16.mxu0 0
  %917 = vmatpush2.bf16.msra.mxu0 0
  %918 = vmatprep.subr.bf16.mxu0 0
  %919 = vmatpush2.bf16.msra.mxu0 0
  %920 = vmatprep.mubr.bf16.mxu0 0
  %921 = vmatmul.mubr.bf16.gmra.mxu0 %v887
  %v922 = vpop.f32.mrf.mxu0
  %v923 = vadd.f32 0.0, %v922
  %v924 = vpop.f32.mrf.mxu0
  %v925 = vadd.f32 0.0, %v924
  %v926 = vpop.f32.mrf.mxu0
  %v927 = vpop.f32.mrf.mxu0
  %928 = vdwg.mxu0
  %929 = vmatprep.subr.bf16.mxu0 %v628
  %930 = vmatpush1.bf16.msra.mxu0 %v627
  %931 = vmatprep.subr.bf16.mxu0 %v624
  %932 = vmatpush1.bf16.msra.mxu0 %v623
  %933 = vmatprep.subr.bf16.mxu0 %v620
  %934 = vmatpush1.bf16.msra.mxu0 %v619
  %935 = vmatprep.subr.bf16.mxu0 %v616
  %936 = vmatpush1.bf16.msra.mxu0 %v615
  %937 = vmatprep.subr.bf16.mxu0 %v612
  %938 = vmatpush1.bf16.msra.mxu0 %v611
  %939 = vmatprep.subr.bf16.mxu0 %v608
  %940 = vmatpush1.bf16.msra.mxu0 %v607
  %941 = vmatprep.subr.bf16.mxu0 %v604
  %942 = vmatpush1.bf16.msra.mxu0 %v603
  %943 = vmatprep.subr.bf16.mxu0 %v600
  %944 = vmatpush1.bf16.msra.mxu0 %v599
  %945 = vmatprep.subr.bf16.mxu0 0
  %946 = vmatpush2.bf16.msra.mxu0 0
  %947 = vmatprep.subr.bf16.mxu0 0
  %948 = vmatpush2.bf16.msra.mxu0 0
  %949 = vmatprep.subr.bf16.mxu0 0
  %950 = vmatpush2.bf16.msra.mxu0 0
  %951 = vmatprep.subr.bf16.mxu0 0
  %952 = vmatpush2.bf16.msra.mxu0 0
  %953 = vmatprep.subr.bf16.mxu0 0
  %954 = vmatpush2.bf16.msra.mxu0 0
  %955 = vmatprep.subr.bf16.mxu0 0
  %956 = vmatpush2.bf16.msra.mxu0 0
  %957 = vmatprep.subr.bf16.mxu0 0
  %958 = vmatpush2.bf16.msra.mxu0 0
  %959 = vmatprep.subr.bf16.mxu0 0
  %960 = vmatpush2.bf16.msra.mxu0 0
  %961 = vmatprep.mubr.bf16.mxu0 0
  %962 = vmatmul.mubr.bf16.gmra.mxu0 %v887
  %v963 = vpop.f32.mrf.mxu0
  %v964 = vadd.f32 0.0, %v963
  %v965 = vpop.f32.mrf.mxu0
  %v966 = vadd.f32 0.0, %v965
  %v967 = vpop.f32.mrf.mxu0
  %v968 = vpop.f32.mrf.mxu0
  %969 = vdwg.mxu0
  %v970 = vadd.f32 %v883, %v923
  %v971 = vadd.f32 %v884, %v925
  %v972 = vadd.f32 %v885, %v964
  %v973 = vadd.f32 %v886, %v966
  %v974 = vmul.f32 %v970, 0.5
  %v975 = vtanh.pop %v974
  %v976 = vmul.f32 %v975, 0.5
  %v977 = vadd.f32 %v976, 0.5
  %v978 = vmul.f32 %v971, 0.5
  %v979 = vtanh.pop %v978
  %v980 = vmul.f32 %v979, 0.5
  %v981 = vadd.f32 %v980, 0.5
  %v982 = vtanh.pop %v972
  %v983 = vmul.f32 %v973, 0.5
  %v984 = vtanh.pop %v983
  %v985 = vmul.f32 %v984, 0.5
  %v986 = vadd.f32 %v985, 0.5
  %v987 = vmul.f32 %v981, %v875
  %v988 = vmul.f32 %v977, %v982
  %v989 = vadd.f32 %v987, %v988
  %v990 = vtanh.pop %v989
  %v991 = vmul.f32 %v986, %v990
  %s992 = scalar_lea.vmem %s6, 16
  %993 = vst [vmem:[%s992] sm:$0xff] %v991
  %s994 = smul.u32 3, 4
  %s995 = smul.addr %s994, 8
  %s996 = scalar_lea.vmem [#allocation4], %s995
  %v997 = vld [vmem:[%s996] sm:$0xff]
  %v998 = vld [vmem:[%s996 + $0x8] sm:$0xff]
  %v999 = vld [vmem:[%s996 + $0x10] sm:$0xff]
  %v1000 = vld [vmem:[%s996 + $0x18] sm:$0xff]
  %v1001 = vpack.c.bf16 %v991, %v991
  %1002 = vmatprep.subr.bf16.mxu0 %v626
  %1003 = vmatpush1.bf16.msra.mxu0 %v625
  %1004 = vmatprep.subr.bf16.mxu0 %v622
  %1005 = vmatpush1.bf16.msra.mxu0 %v621
  %1006 = vmatprep.subr.bf16.mxu0 %v618
  %1007 = vmatpush1.bf16.msra.mxu0 %v617
  %1008 = vmatprep.subr.bf16.mxu0 %v614
  %1009 = vmatpush1.bf16.msra.mxu0 %v613
  %1010 = vmatprep.subr.bf16.mxu0 %v610
  %1011 = vmatpush1.bf16.msra.mxu0 %v609
  %1012 = vmatprep.subr.bf16.mxu0 %v606
  %1013 = vmatpush1.bf16.msra.mxu0 %v605
  %1014 = vmatprep.subr.bf16.mxu0 %v602
  %1015 = vmatpush1.bf16.msra.mxu0 %v601
  %1016 = vmatprep.subr.bf16.mxu0 %v598
  %1017 = vmatpush1.bf16.msra.mxu0 %v597
  %1018 = vmatprep.subr.bf16.mxu0 0
  %1019 = vmatpush2.bf16.msra.mxu0 0
  %1020 = vmatprep.subr.bf16.mxu0 0
  %1021 = vmatpush2.bf16.msra.mxu0 0
  %1022 = vmatprep.subr.bf16.mxu0 0
  %1023 = vmatpush2.bf16.msra.mxu0 0
  %1024 = vmatprep.subr.bf16.mxu0 0
  %1025 = vmatpush2.bf16.msra.mxu0 0
  %1026 = vmatprep.subr.bf16.mxu0 0
  %1027 = vmatpush2.bf16.msra.mxu0 0
  %1028 = vmatprep.subr.bf16.mxu0 0
  %1029 = vmatpush2.bf16.msra.mxu0 0
  %1030 = vmatprep.subr.bf16.mxu0 0
  %1031 = vmatpush2.bf16.msra.mxu0 0
  %1032 = vmatprep.subr.bf16.mxu0 0
  %1033 = vmatpush2.bf16.msra.mxu0 0
  %1034 = vmatprep.mubr.bf16.mxu0 0
  %1035 = vmatmul.mubr.bf16.gmra.mxu0 %v1001
  %v1036 = vpop.f32.mrf.mxu0
  %v1037 = vadd.f32 0.0, %v1036
  %v1038 = vpop.f32.mrf.mxu0
  %v1039 = vadd.f32 0.0, %v1038
  %v1040 = vpop.f32.mrf.mxu0
  %v1041 = vpop.f32.mrf.mxu0
  %1042 = vdwg.mxu0
  %1043 = vmatprep.subr.bf16.mxu0 %v628
  %1044 = vmatpush1.bf16.msra.mxu0 %v627
  %1045 = vmatprep.subr.bf16.mxu0 %v624
  %1046 = vmatpush1.bf16.msra.mxu0 %v623
  %1047 = vmatprep.subr.bf16.mxu0 %v620
  %1048 = vmatpush1.bf16.msra.mxu0 %v619
  %1049 = vmatprep.subr.bf16.mxu0 %v616
  %1050 = vmatpush1.bf16.msra.mxu0 %v615
  %1051 = vmatprep.subr.bf16.mxu0 %v612
  %1052 = vmatpush1.bf16.msra.mxu0 %v611
  %1053 = vmatprep.subr.bf16.mxu0 %v608
  %1054 = vmatpush1.bf16.msra.mxu0 %v607
  %1055 = vmatprep.subr.bf16.mxu0 %v604
  %1056 = vmatpush1.bf16.msra.mxu0 %v603
  %1057 = vmatprep.subr.bf16.mxu0 %v600
  %1058 = vmatpush1.bf16.msra.mxu0 %v599
  %1059 = vmatprep.subr.bf16.mxu0 0
  %1060 = vmatpush2.bf16.msra.mxu0 0
  %1061 = vmatprep.subr.bf16.mxu0 0
  %1062 = vmatpush2.bf16.msra.mxu0 0
  %1063 = vmatprep.subr.bf16.mxu0 0
  %1064 = vmatpush2.bf16.msra.mxu0 0
  %1065 = vmatprep.subr.bf16.mxu0 0
  %1066 = vmatpush2.bf16.msra.mxu0 0
  %1067 = vmatprep.subr.bf16.mxu0 0
  %1068 = vmatpush2.bf16.msra.mxu0 0
  %1069 = vmatprep.subr.bf16.mxu0 0
  %1070 = vmatpush2.bf16.msra.mxu0 0
  %1071 = vmatprep.subr.bf16.mxu0 0
  %1072 = vmatpush2.bf16.msra.mxu0 0
  %1073 = vmatprep.subr.bf16.mxu0 0
  %1074 = vmatpush2.bf16.msra.mxu0 0
  %1075 = vmatprep.mubr.bf16.mxu0 0
  %1076 = vmatmul.mubr.bf16.gmra.mxu0 %v1001
  %v1077 = vpop.f32.mrf.mxu0
  %v1078 = vadd.f32 0.0, %v1077
  %v1079 = vpop.f32.mrf.mxu0
  %v1080 = vadd.f32 0.0, %v1079
  %v1081 = vpop.f32.mrf.mxu0
  %v1082 = vpop.f32.mrf.mxu0
  %1083 = vdwg.mxu0
  %v1084 = vadd.f32 %v997, %v1037
  %v1085 = vadd.f32 %v998, %v1039
  %v1086 = vadd.f32 %v999, %v1078
  %v1087 = vadd.f32 %v1000, %v1080
  %v1088 = vmul.f32 %v1084, 0.5
  %v1089 = vtanh.pop %v1088
  %v1090 = vmul.f32 %v1089, 0.5
  %v1091 = vadd.f32 %v1090, 0.5
  %v1092 = vmul.f32 %v1085, 0.5
  %v1093 = vtanh.pop %v1092
  %v1094 = vmul.f32 %v1093, 0.5
  %v1095 = vadd.f32 %v1094, 0.5
  %v1096 = vtanh.pop %v1086
  %v1097 = vmul.f32 %v1087, 0.5
  %v1098 = vtanh.pop %v1097
  %v1099 = vmul.f32 %v1098, 0.5
  %v1100 = vadd.f32 %v1099, 0.5
  %v1101 = vmul.f32 %v1095, %v989
  %v1102 = vmul.f32 %v1091, %v1096
  %v1103 = vadd.f32 %v1101, %v1102
  %v1104 = vtanh.pop %v1103
  %v1105 = vmul.f32 %v1100, %v1104
  %s1106 = scalar_lea.vmem %s6, 24
  %1107 = vst [vmem:[%s1106] sm:$0xff] %v1105
  %s1108 = smul.u32 4, 4
  %s1109 = smul.addr %s1108, 8
  %s1110 = scalar_lea.vmem [#allocation4], %s1109
  %v1111 = vld [vmem:[%s1110] sm:$0xff]
  %v1112 = vld [vmem:[%s1110 + $0x8] sm:$0xff]
  %v1113 = vld [vmem:[%s1110 + $0x10] sm:$0xff]
  %v1114 = vld [vmem:[%s1110 + $0x18] sm:$0xff]
  %v1115 = vpack.c.bf16 %v1105, %v1105
  %1116 = vmatprep.subr.bf16.mxu0 %v626
  %1117 = vmatpush1.bf16.msra.mxu0 %v625
  %1118 = vmatprep.subr.bf16.mxu0 %v622
  %1119 = vmatpush1.bf16.msra.mxu0 %v621
  %1120 = vmatprep.subr.bf16.mxu0 %v618
  %1121 = vmatpush1.bf16.msra.mxu0 %v617
  %1122 = vmatprep.subr.bf16.mxu0 %v614
  %1123 = vmatpush1.bf16.msra.mxu0 %v613
  %1124 = vmatprep.subr.bf16.mxu0 %v610
  %1125 = vmatpush1.bf16.msra.mxu0 %v609
  %1126 = vmatprep.subr.bf16.mxu0 %v606
  %1127 = vmatpush1.bf16.msra.mxu0 %v605
  %1128 = vmatprep.subr.bf16.mxu0 %v602
  %1129 = vmatpush1.bf16.msra.mxu0 %v601
  %1130 = vmatprep.subr.bf16.mxu0 %v598
  %1131 = vmatpush1.bf16.msra.mxu0 %v597
  %1132 = vmatprep.subr.bf16.mxu0 0
  %1133 = vmatpush2.bf16.msra.mxu0 0
  %1134 = vmatprep.subr.bf16.mxu0 0
  %1135 = vmatpush2.bf16.msra.mxu0 0
  %1136 = vmatprep.subr.bf16.mxu0 0
  %1137 = vmatpush2.bf16.msra.mxu0 0
  %1138 = vmatprep.subr.bf16.mxu0 0
  %1139 = vmatpush2.bf16.msra.mxu0 0
  %1140 = vmatprep.subr.bf16.mxu0 0
  %1141 = vmatpush2.bf16.msra.mxu0 0
  %1142 = vmatprep.subr.bf16.mxu0 0
  %1143 = vmatpush2.bf16.msra.mxu0 0
  %1144 = vmatprep.subr.bf16.mxu0 0
  %1145 = vmatpush2.bf16.msra.mxu0 0
  %1146 = vmatprep.subr.bf16.mxu0 0
  %1147 = vmatpush2.bf16.msra.mxu0 0
  %1148 = vmatprep.mubr.bf16.mxu0 0
  %1149 = vmatmul.mubr.bf16.gmra.mxu0 %v1115
  %v1150 = vpop.f32.mrf.mxu0
  %v1151 = vadd.f32 0.0, %v1150
  %v1152 = vpop.f32.mrf.mxu0
  %v1153 = vadd.f32 0.0, %v1152
  %v1154 = vpop.f32.mrf.mxu0
  %v1155 = vpop.f32.mrf.mxu0
  %1156 = vdwg.mxu0
  %1157 = vmatprep.subr.bf16.mxu0 %v628
  %1158 = vmatpush1.bf16.msra.mxu0 %v627
  %1159 = vmatprep.subr.bf16.mxu0 %v624
  %1160 = vmatpush1.bf16.msra.mxu0 %v623
  %1161 = vmatprep.subr.bf16.mxu0 %v620
  %1162 = vmatpush1.bf16.msra.mxu0 %v619
  %1163 = vmatprep.subr.bf16.mxu0 %v616
  %1164 = vmatpush1.bf16.msra.mxu0 %v615
  %1165 = vmatprep.subr.bf16.mxu0 %v612
  %1166 = vmatpush1.bf16.msra.mxu0 %v611
  %1167 = vmatprep.subr.bf16.mxu0 %v608
  %1168 = vmatpush1.bf16.msra.mxu0 %v607
  %1169 = vmatprep.subr.bf16.mxu0 %v604
  %1170 = vmatpush1.bf16.msra.mxu0 %v603
  %1171 = vmatprep.subr.bf16.mxu0 %v600
  %1172 = vmatpush1.bf16.msra.mxu0 %v599
  %1173 = vmatprep.subr.bf16.mxu0 0
  %1174 = vmatpush2.bf16.msra.mxu0 0
  %1175 = vmatprep.subr.bf16.mxu0 0
  %1176 = vmatpush2.bf16.msra.mxu0 0
  %1177 = vmatprep.subr.bf16.mxu0 0
  %1178 = vmatpush2.bf16.msra.mxu0 0
  %1179 = vmatprep.subr.bf16.mxu0 0
  %1180 = vmatpush2.bf16.msra.mxu0 0
  %1181 = vmatprep.subr.bf16.mxu0 0
  %1182 = vmatpush2.bf16.msra.mxu0 0
  %1183 = vmatprep.subr.bf16.mxu0 0
  %1184 = vmatpush2.bf16.msra.mxu0 0
  %1185 = vmatprep.subr.bf16.mxu0 0
  %1186 = vmatpush2.bf16.msra.mxu0 0
  %1187 = vmatprep.subr.bf16.mxu0 0
  %1188 = vmatpush2.bf16.msra.mxu0 0
  %1189 = vmatprep.mubr.bf16.mxu0 0
  %1190 = vmatmul.mubr.bf16.gmra.mxu0 %v1115
  %v1191 = vpop.f32.mrf.mxu0
  %v1192 = vadd.f32 0.0, %v1191
  %v1193 = vpop.f32.mrf.mxu0
  %v1194 = vadd.f32 0.0, %v1193
  %v1195 = vpop.f32.mrf.mxu0
  %v1196 = vpop.f32.mrf.mxu0
  %1197 = vdwg.mxu0
  %v1198 = vadd.f32 %v1111, %v1151
  %v1199 = vadd.f32 %v1112, %v1153
  %v1200 = vadd.f32 %v1113, %v1192
  %v1201 = vadd.f32 %v1114, %v1194
  %v1202 = vmul.f32 %v1198, 0.5
  %v1203 = vtanh.pop %v1202
  %v1204 = vmul.f32 %v1203, 0.5
  %v1205 = vadd.f32 %v1204, 0.5
  %v1206 = vmul.f32 %v1199, 0.5
  %v1207 = vtanh.pop %v1206
  %v1208 = vmul.f32 %v1207, 0.5
  %v1209 = vadd.f32 %v1208, 0.5
  %v1210 = vtanh.pop %v1200
  %v1211 = vmul.f32 %v1201, 0.5
  %v1212 = vtanh.pop %v1211
  %v1213 = vmul.f32 %v1212, 0.5
  %v1214 = vadd.f32 %v1213, 0.5
  %v1215 = vmul.f32 %v1209, %v1103
  %v1216 = vmul.f32 %v1205, %v1210
  %v1217 = vadd.f32 %v1215, %v1216
  %v1218 = vtanh.pop %v1217
  %v1219 = vmul.f32 %v1214, %v1218
  %s1220 = scalar_lea.vmem %s6, 32
  %1221 = vst [vmem:[%s1220] sm:$0xff] %v1219
  %s1222 = smul.u32 5, 4
  %s1223 = smul.addr %s1222, 8
  %s1224 = scalar_lea.vmem [#allocation4], %s1223
  %v1225 = vld [vmem:[%s1224] sm:$0xff]
  %v1226 = vld [vmem:[%s1224 + $0x8] sm:$0xff]
  %v1227 = vld [vmem:[%s1224 + $0x10] sm:$0xff]
  %v1228 = vld [vmem:[%s1224 + $0x18] sm:$0xff]
  %v1229 = vpack.c.bf16 %v1219, %v1219
  %1230 = vmatprep.subr.bf16.mxu0 %v626
  %1231 = vmatpush1.bf16.msra.mxu0 %v625
  %1232 = vmatprep.subr.bf16.mxu0 %v622
  %1233 = vmatpush1.bf16.msra.mxu0 %v621
  %1234 = vmatprep.subr.bf16.mxu0 %v618
  %1235 = vmatpush1.bf16.msra.mxu0 %v617
  %1236 = vmatprep.subr.bf16.mxu0 %v614
  %1237 = vmatpush1.bf16.msra.mxu0 %v613
  %1238 = vmatprep.subr.bf16.mxu0 %v610
  %1239 = vmatpush1.bf16.msra.mxu0 %v609
  %1240 = vmatprep.subr.bf16.mxu0 %v606
  %1241 = vmatpush1.bf16.msra.mxu0 %v605
  %1242 = vmatprep.subr.bf16.mxu0 %v602
  %1243 = vmatpush1.bf16.msra.mxu0 %v601
  %1244 = vmatprep.subr.bf16.mxu0 %v598
  %1245 = vmatpush1.bf16.msra.mxu0 %v597
  %1246 = vmatprep.subr.bf16.mxu0 0
  %1247 = vmatpush2.bf16.msra.mxu0 0
  %1248 = vmatprep.subr.bf16.mxu0 0
  %1249 = vmatpush2.bf16.msra.mxu0 0
  %1250 = vmatprep.subr.bf16.mxu0 0
  %1251 = vmatpush2.bf16.msra.mxu0 0
  %1252 = vmatprep.subr.bf16.mxu0 0
  %1253 = vmatpush2.bf16.msra.mxu0 0
  %1254 = vmatprep.subr.bf16.mxu0 0
  %1255 = vmatpush2.bf16.msra.mxu0 0
  %1256 = vmatprep.subr.bf16.mxu0 0
  %1257 = vmatpush2.bf16.msra.mxu0 0
  %1258 = vmatprep.subr.bf16.mxu0 0
  %1259 = vmatpush2.bf16.msra.mxu0 0
  %1260 = vmatprep.subr.bf16.mxu0 0
  %1261 = vmatpush2.bf16.msra.mxu0 0
  %1262 = vmatprep.mubr.bf16.mxu0 0
  %1263 = vmatmul.mubr.bf16.gmra.mxu0 %v1229
  %v1264 = vpop.f32.mrf.mxu0
  %v1265 = vadd.f32 0.0, %v1264
  %v1266 = vpop.f32.mrf.mxu0
  %v1267 = vadd.f32 0.0, %v1266
  %v1268 = vpop.f32.mrf.mxu0
  %v1269 = vpop.f32.mrf.mxu0
  %1270 = vdwg.mxu0
  %1271 = vmatprep.subr.bf16.mxu0 %v628
  %1272 = vmatpush1.bf16.msra.mxu0 %v627
  %1273 = vmatprep.subr.bf16.mxu0 %v624
  %1274 = vmatpush1.bf16.msra.mxu0 %v623
  %1275 = vmatprep.subr.bf16.mxu0 %v620
  %1276 = vmatpush1.bf16.msra.mxu0 %v619
  %1277 = vmatprep.subr.bf16.mxu0 %v616
  %1278 = vmatpush1.bf16.msra.mxu0 %v615
  %1279 = vmatprep.subr.bf16.mxu0 %v612
  %1280 = vmatpush1.bf16.msra.mxu0 %v611
  %1281 = vmatprep.subr.bf16.mxu0 %v608
  %1282 = vmatpush1.bf16.msra.mxu0 %v607
  %1283 = vmatprep.subr.bf16.mxu0 %v604
  %1284 = vmatpush1.bf16.msra.mxu0 %v603
  %1285 = vmatprep.subr.bf16.mxu0 %v600
  %1286 = vmatpush1.bf16.msra.mxu0 %v599
  %1287 = vmatprep.subr.bf16.mxu0 0
  %1288 = vmatpush2.bf16.msra.mxu0 0
  %1289 = vmatprep.subr.bf16.mxu0 0
  %1290 = vmatpush2.bf16.msra.mxu0 0
  %1291 = vmatprep.subr.bf16.mxu0 0
  %1292 = vmatpush2.bf16.msra.mxu0 0
  %1293 = vmatprep.subr.bf16.mxu0 0
  %1294 = vmatpush2.bf16.msra.mxu0 0
  %1295 = vmatprep.subr.bf16.mxu0 0
  %1296 = vmatpush2.bf16.msra.mxu0 0
  %1297 = vmatprep.subr.bf16.mxu0 0
  %1298 = vmatpush2.bf16.msra.mxu0 0
  %1299 = vmatprep.subr.bf16.mxu0 0
  %1300 = vmatpush2.bf16.msra.mxu0 0
  %1301 = vmatprep.subr.bf16.mxu0 0
  %1302 = vmatpush2.bf16.msra.mxu0 0
  %1303 = vmatprep.mubr.bf16.mxu0 0
  %1304 = vmatmul.mubr.bf16.gmra.mxu0 %v1229
  %v1305 = vpop.f32.mrf.mxu0
  %v1306 = vadd.f32 0.0, %v1305
  %v1307 = vpop.f32.mrf.mxu0
  %v1308 = vadd.f32 0.0, %v1307
  %v1309 = vpop.f32.mrf.mxu0
  %v1310 = vpop.f32.mrf.mxu0
  %1311 = vdwg.mxu0
  %v1312 = vadd.f32 %v1225, %v1265
  %v1313 = vadd.f32 %v1226, %v1267
  %v1314 = vadd.f32 %v1227, %v1306
  %v1315 = vadd.f32 %v1228, %v1308
  %v1316 = vmul.f32 %v1312, 0.5
  %v1317 = vtanh.pop %v1316
  %v1318 = vmul.f32 %v1317, 0.5
  %v1319 = vadd.f32 %v1318, 0.5
  %v1320 = vmul.f32 %v1313, 0.5
  %v1321 = vtanh.pop %v1320
  %v1322 = vmul.f32 %v1321, 0.5
  %v1323 = vadd.f32 %v1322, 0.5
  %v1324 = vtanh.pop %v1314
  %v1325 = vmul.f32 %v1315, 0.5
  %v1326 = vtanh.pop %v1325
  %v1327 = vmul.f32 %v1326, 0.5
  %v1328 = vadd.f32 %v1327, 0.5
  %v1329 = vmul.f32 %v1323, %v1217
  %v1330 = vmul.f32 %v1319, %v1324
  %v1331 = vadd.f32 %v1329, %v1330
  %v1332 = vtanh.pop %v1331
  %v1333 = vmul.f32 %v1328, %v1332
  %s1334 = scalar_lea.vmem %s6, 40
  %1335 = vst [vmem:[%s1334] sm:$0xff] %v1333
  %s1336 = smul.u32 6, 4
  %s1337 = smul.addr %s1336, 8
  %s1338 = scalar_lea.vmem [#allocation4], %s1337
  %v1339 = vld [vmem:[%s1338] sm:$0xff]
  %v1340 = vld [vmem:[%s1338 + $0x8] sm:$0xff]
  %v1341 = vld [vmem:[%s1338 + $0x10] sm:$0xff]
  %v1342 = vld [vmem:[%s1338 + $0x18] sm:$0xff]
  %v1343 = vpack.c.bf16 %v1333, %v1333
  %1344 = vmatprep.subr.bf16.mxu0 %v626
  %1345 = vmatpush1.bf16.msra.mxu0 %v625
  %1346 = vmatprep.subr.bf16.mxu0 %v622
  %1347 = vmatpush1.bf16.msra.mxu0 %v621
  %1348 = vmatprep.subr.bf16.mxu0 %v618
  %1349 = vmatpush1.bf16.msra.mxu0 %v617
  %1350 = vmatprep.subr.bf16.mxu0 %v614
  %1351 = vmatpush1.bf16.msra.mxu0 %v613
  %1352 = vmatprep.subr.bf16.mxu0 %v610
  %1353 = vmatpush1.bf16.msra.mxu0 %v609
  %1354 = vmatprep.subr.bf16.mxu0 %v606
  %1355 = vmatpush1.bf16.msra.mxu0 %v605
  %1356 = vmatprep.subr.bf16.mxu0 %v602
  %1357 = vmatpush1.bf16.msra.mxu0 %v601
  %1358 = vmatprep.subr.bf16.mxu0 %v598
  %1359 = vmatpush1.bf16.msra.mxu0 %v597
  %1360 = vmatprep.subr.bf16.mxu0 0
  %1361 = vmatpush2.bf16.msra.mxu0 0
  %1362 = vmatprep.subr.bf16.mxu0 0
  %1363 = vmatpush2.bf16.msra.mxu0 0
  %1364 = vmatprep.subr.bf16.mxu0 0
  %1365 = vmatpush2.bf16.msra.mxu0 0
  %1366 = vmatprep.subr.bf16.mxu0 0
  %1367 = vmatpush2.bf16.msra.mxu0 0
  %1368 = vmatprep.subr.bf16.mxu0 0
  %1369 = vmatpush2.bf16.msra.mxu0 0
  %1370 = vmatprep.subr.bf16.mxu0 0
  %1371 = vmatpush2.bf16.msra.mxu0 0
  %1372 = vmatprep.subr.bf16.mxu0 0
  %1373 = vmatpush2.bf16.msra.mxu0 0
  %1374 = vmatprep.subr.bf16.mxu0 0
  %1375 = vmatpush2.bf16.msra.mxu0 0
  %1376 = vmatprep.mubr.bf16.mxu0 0
  %1377 = vmatmul.mubr.bf16.gmra.mxu0 %v1343
  %v1378 = vpop.f32.mrf.mxu0
  %v1379 = vadd.f32 0.0, %v1378
  %v1380 = vpop.f32.mrf.mxu0
  %v1381 = vadd.f32 0.0, %v1380
  %v1382 = vpop.f32.mrf.mxu0
  %v1383 = vpop.f32.mrf.mxu0
  %1384 = vdwg.mxu0
  %1385 = vmatprep.subr.bf16.mxu0 %v628
  %1386 = vmatpush1.bf16.msra.mxu0 %v627
  %1387 = vmatprep.subr.bf16.mxu0 %v624
  %1388 = vmatpush1.bf16.msra.mxu0 %v623
  %1389 = vmatprep.subr.bf16.mxu0 %v620
  %1390 = vmatpush1.bf16.msra.mxu0 %v619
  %1391 = vmatprep.subr.bf16.mxu0 %v616
  %1392 = vmatpush1.bf16.msra.mxu0 %v615
  %1393 = vmatprep.subr.bf16.mxu0 %v612
  %1394 = vmatpush1.bf16.msra.mxu0 %v611
  %1395 = vmatprep.subr.bf16.mxu0 %v608
  %1396 = vmatpush1.bf16.msra.mxu0 %v607
  %1397 = vmatprep.subr.bf16.mxu0 %v604
  %1398 = vmatpush1.bf16.msra.mxu0 %v603
  %1399 = vmatprep.subr.bf16.mxu0 %v600
  %1400 = vmatpush1.bf16.msra.mxu0 %v599
  %1401 = vmatprep.subr.bf16.mxu0 0
  %1402 = vmatpush2.bf16.msra.mxu0 0
  %1403 = vmatprep.subr.bf16.mxu0 0
  %1404 = vmatpush2.bf16.msra.mxu0 0
  %1405 = vmatprep.subr.bf16.mxu0 0
  %1406 = vmatpush2.bf16.msra.mxu0 0
  %1407 = vmatprep.subr.bf16.mxu0 0
  %1408 = vmatpush2.bf16.msra.mxu0 0
  %1409 = vmatprep.subr.bf16.mxu0 0
  %1410 = vmatpush2.bf16.msra.mxu0 0
  %1411 = vmatprep.subr.bf16.mxu0 0
  %1412 = vmatpush2.bf16.msra.mxu0 0
  %1413 = vmatprep.subr.bf16.mxu0 0
  %1414 = vmatpush2.bf16.msra.mxu0 0
  %1415 = vmatprep.subr.bf16.mxu0 0
  %1416 = vmatpush2.bf16.msra.mxu0 0
  %1417 = vmatprep.mubr.bf16.mxu0 0
  %1418 = vmatmul.mubr.bf16.gmra.mxu0 %v1343
  %v1419 = vpop.f32.mrf.mxu0
  %v1420 = vadd.f32 0.0, %v1419
  %v1421 = vpop.f32.mrf.mxu0
  %v1422 = vadd.f32 0.0, %v1421
  %v1423 = vpop.f32.mrf.mxu0
  %v1424 = vpop.f32.mrf.mxu0
  %1425 = vdwg.mxu0
  %v1426 = vadd.f32 %v1339, %v1379
  %v1427 = vadd.f32 %v1340, %v1381
  %v1428 = vadd.f32 %v1341, %v1420
  %v1429 = vadd.f32 %v1342, %v1422
  %v1430 = vmul.f32 %v1426, 0.5
  %v1431 = vtanh.pop %v1430
  %v1432 = vmul.f32 %v1431, 0.5
  %v1433 = vadd.f32 %v1432, 0.5
  %v1434 = vmul.f32 %v1427, 0.5
  %v1435 = vtanh.pop %v1434
  %v1436 = vmul.f32 %v1435, 0.5
  %v1437 = vadd.f32 %v1436, 0.5
  %v1438 = vtanh.pop %v1428
  %v1439 = vmul.f32 %v1429, 0.5
  %v1440 = vtanh.pop %v1439
  %v1441 = vmul.f32 %v1440, 0.5
  %v1442 = vadd.f32 %v1441, 0.5
  %v1443 = vmul.f32 %v1437, %v1331
  %v1444 = vmul.f32 %v1433, %v1438
  %v1445 = vadd.f32 %v1443, %v1444
  %v1446 = vtanh.pop %v1445
  %v1447 = vmul.f32 %v1442, %v1446
  %s1448 = scalar_lea.vmem %s6, 48
  %1449 = vst [vmem:[%s1448] sm:$0xff] %v1447
  %s1450 = smul.u32 7, 4
  %s1451 = smul.addr %s1450, 8
  %s1452 = scalar_lea.vmem [#allocation4], %s1451
  %v1453 = vld [vmem:[%s1452] sm:$0xff]
  %v1454 = vld [vmem:[%s1452 + $0x8] sm:$0xff]
  %v1455 = vld [vmem:[%s1452 + $0x10] sm:$0xff]
  %v1456 = vld [vmem:[%s1452 + $0x18] sm:$0xff]
  %v1457 = vpack.c.bf16 %v1447, %v1447
  %1458 = vmatprep.subr.bf16.mxu0 %v626
  %1459 = vmatpush1.bf16.msra.mxu0 %v625
  %1460 = vmatprep.subr.bf16.mxu0 %v622
  %1461 = vmatpush1.bf16.msra.mxu0 %v621
  %1462 = vmatprep.subr.bf16.mxu0 %v618
  %1463 = vmatpush1.bf16.msra.mxu0 %v617
  %1464 = vmatprep.subr.bf16.mxu0 %v614
  %1465 = vmatpush1.bf16.msra.mxu0 %v613
  %1466 = vmatprep.subr.bf16.mxu0 %v610
  %1467 = vmatpush1.bf16.msra.mxu0 %v609
  %1468 = vmatprep.subr.bf16.mxu0 %v606
  %1469 = vmatpush1.bf16.msra.mxu0 %v605
  %1470 = vmatprep.subr.bf16.mxu0 %v602
  %1471 = vmatpush1.bf16.msra.mxu0 %v601
  %1472 = vmatprep.subr.bf16.mxu0 %v598
  %1473 = vmatpush1.bf16.msra.mxu0 %v597
  %1474 = vmatprep.subr.bf16.mxu0 0
  %1475 = vmatpush2.bf16.msra.mxu0 0
  %1476 = vmatprep.subr.bf16.mxu0 0
  %1477 = vmatpush2.bf16.msra.mxu0 0
  %1478 = vmatprep.subr.bf16.mxu0 0
  %1479 = vmatpush2.bf16.msra.mxu0 0
  %1480 = vmatprep.subr.bf16.mxu0 0
  %1481 = vmatpush2.bf16.msra.mxu0 0
  %1482 = vmatprep.subr.bf16.mxu0 0
  %1483 = vmatpush2.bf16.msra.mxu0 0
  %1484 = vmatprep.subr.bf16.mxu0 0
  %1485 = vmatpush2.bf16.msra.mxu0 0
  %1486 = vmatprep.subr.bf16.mxu0 0
  %1487 = vmatpush2.bf16.msra.mxu0 0
  %1488 = vmatprep.subr.bf16.mxu0 0
  %1489 = vmatpush2.bf16.msra.mxu0 0
  %1490 = vmatprep.mubr.bf16.mxu0 0
  %1491 = vmatmul.mubr.bf16.gmra.mxu0 %v1457
  %v1492 = vpop.f32.mrf.mxu0
  %v1493 = vadd.f32 0.0, %v1492
  %v1494 = vpop.f32.mrf.mxu0
  %v1495 = vadd.f32 0.0, %v1494
  %v1496 = vpop.f32.mrf.mxu0
  %v1497 = vpop.f32.mrf.mxu0
  %1498 = vdwg.mxu0
  %1499 = vmatprep.subr.bf16.mxu0 %v628
  %1500 = vmatpush1.bf16.msra.mxu0 %v627
  %1501 = vmatprep.subr.bf16.mxu0 %v624
  %1502 = vmatpush1.bf16.msra.mxu0 %v623
  %1503 = vmatprep.subr.bf16.mxu0 %v620
  %1504 = vmatpush1.bf16.msra.mxu0 %v619
  %1505 = vmatprep.subr.bf16.mxu0 %v616
  %1506 = vmatpush1.bf16.msra.mxu0 %v615
  %1507 = vmatprep.subr.bf16.mxu0 %v612
  %1508 = vmatpush1.bf16.msra.mxu0 %v611
  %1509 = vmatprep.subr.bf16.mxu0 %v608
  %1510 = vmatpush1.bf16.msra.mxu0 %v607
  %1511 = vmatprep.subr.bf16.mxu0 %v604
  %1512 = vmatpush1.bf16.msra.mxu0 %v603
  %1513 = vmatprep.subr.bf16.mxu0 %v600
  %1514 = vmatpush1.bf16.msra.mxu0 %v599
  %1515 = vmatprep.subr.bf16.mxu0 0
  %1516 = vmatpush2.bf16.msra.mxu0 0
  %1517 = vmatprep.subr.bf16.mxu0 0
  %1518 = vmatpush2.bf16.msra.mxu0 0
  %1519 = vmatprep.subr.bf16.mxu0 0
  %1520 = vmatpush2.bf16.msra.mxu0 0
  %1521 = vmatprep.subr.bf16.mxu0 0
  %1522 = vmatpush2.bf16.msra.mxu0 0
  %1523 = vmatprep.subr.bf16.mxu0 0
  %1524 = vmatpush2.bf16.msra.mxu0 0
  %1525 = vmatprep.subr.bf16.mxu0 0
  %1526 = vmatpush2.bf16.msra.mxu0 0
  %1527 = vmatprep.subr.bf16.mxu0 0
  %1528 = vmatpush2.bf16.msra.mxu0 0
  %1529 = vmatprep.subr.bf16.mxu0 0
  %1530 = vmatpush2.bf16.msra.mxu0 0
  %1531 = vmatprep.mubr.bf16.mxu0 0
  %1532 = vmatmul.mubr.bf16.gmra.mxu0 %v1457
  %v1533 = vpop.f32.mrf.mxu0
  %v1534 = vadd.f32 0.0, %v1533
  %v1535 = vpop.f32.mrf.mxu0
  %v1536 = vadd.f32 0.0, %v1535
  %v1537 = vpop.f32.mrf.mxu0
  %v1538 = vpop.f32.mrf.mxu0
  %1539 = vdwg.mxu0
  %v1540 = vadd.f32 %v1453, %v1493
  %v1541 = vadd.f32 %v1454, %v1495
  %v1542 = vadd.f32 %v1455, %v1534
  %v1543 = vadd.f32 %v1456, %v1536
  %v1544 = vmul.f32 %v1540, 0.5
  %v1545 = vtanh.pop %v1544
  %v1546 = vmul.f32 %v1545, 0.5
  %v1547 = vadd.f32 %v1546, 0.5
  %v1548 = vmul.f32 %v1541, 0.5
  %v1549 = vtanh.pop %v1548
  %v1550 = vmul.f32 %v1549, 0.5
  %v1551 = vadd.f32 %v1550, 0.5
  %v1552 = vtanh.pop %v1542
  %v1553 = vmul.f32 %v1543, 0.5
  %v1554 = vtanh.pop %v1553
  %v1555 = vmul.f32 %v1554, 0.5
  %v1556 = vadd.f32 %v1555, 0.5
  %v1557 = vmul.f32 %v1551, %v1445
  %v1558 = vmul.f32 %v1547, %v1552
  %v1559 = vadd.f32 %v1557, %v1558
  %v1560 = vtanh.pop %v1559
  %v1561 = vmul.f32 %v1556, %v1560
  %s1562 = scalar_lea.vmem %s6, 56
  %1563 = vst [vmem:[%s1562] sm:$0xff] %v1561
  %1564 = vst [vmem:[#allocation2] sm:$0xff] %v1561
  %1565 = vst [vmem:[#allocation3] sm:$0xff] %v1559
  // Predicated region
  $region30: #{uni_lstm_forward.3} parent=0 // pred_check
    %p1566 = pneg %p27
  $region31: #{uni_lstm_forward.3} parent=0 // pred_check_branch
    %1568 = sbr.rel (%p1566) target = $region33
  $region32: #{uni_lstm_forward.3} parent=0 // pred_region
    %1569 = vst [vmem:[%s7] sm:$0xff] %v1561
    %1570 = vst [vmem:[%s8] sm:$0xff] %v1559
  $region33: #{uni_lstm_forward.3} parent=0 // pred_fallthru
    _
  // Predicated region
  $region34: #{uni_lstm_forward.3} parent=0 // pred_check
    _
  $region35: #{uni_lstm_forward.3} parent=0 // pred_check_branch
    %1572 = sbr.rel (0) target = $region37
  $region36: #{uni_lstm_forward.3} parent=0 // pred_region
    _
  $region37: #{uni_lstm_forward.3} parent=0 // pred_fallthru
    _
  // Predicated region
  $region38: #{uni_lstm_forward.3} parent=0 // pred_check
    _
  $region39: #{uni_lstm_forward.3} parent=0 // pred_check_branch
    %1574 = sbr.rel (0) target = $region41
  $region40: #{uni_lstm_forward.3} parent=0 // pred_region
    _
  $region41: #{uni_lstm_forward.3} parent=0 // pred_fallthru
    _
  // Predicated region
  $region42: #{uni_lstm_forward.3} parent=0 // pred_check
    _
  $region43: #{uni_lstm_forward.3} parent=0 // pred_check_branch
    %1576 = sbr.rel (0) target = $region45
  $region44: #{uni_lstm_forward.3} parent=0 // pred_region
    _
  $region45: #{uni_lstm_forward.3} parent=0 // pred_fallthru
    _
  // Predicated region
  $region46: #{uni_lstm_forward.3} parent=0 // pred_check
    _
  $region47: #{uni_lstm_forward.3} parent=0 // pred_check_branch
    %1578 = sbr.rel (0) target = $region49
  $region48: #{uni_lstm_forward.3} parent=0 // pred_region
    _
  $region49: #{uni_lstm_forward.3} parent=0 // pred_fallthru
    _
  // Predicated region
  $region50: #{uni_lstm_forward.3} parent=0 // pred_check
    _
  $region51: #{uni_lstm_forward.3} parent=0 // pred_check_branch
    %1580 = sbr.rel (0) target = $region53
  $region52: #{uni_lstm_forward.3} parent=0 // pred_region
    _
  $region53: #{uni_lstm_forward.3} parent=0 // pred_fallthru
    _
  // Predicated region
  $region54: #{uni_lstm_forward.3} parent=0 // pred_check
    _
  $region55: #{uni_lstm_forward.3} parent=0 // pred_check_branch
    %1582 = sbr.rel (0) target = $region57
  $region56: #{uni_lstm_forward.3} parent=0 // pred_region
    _
  $region57: #{uni_lstm_forward.3} parent=0 // pred_fallthru
    _

</llo_original>
